<compile_context>
chip_gen: v7x
topology: tpu7x:2x2x1
jax: 0.10.0
libtpu: 0.0.40
codegen_flags: <defaults>
</compile_context>

<pallas_src>
import functools

import jax
import jax.numpy as jnp
from jax import lax
from jax.experimental import pallas as pl
from jax.experimental.pallas import tpu as pltpu

_VMEM_LIMIT = 32 * 1024 * 1024  # >= default on v6e/v7x, raises v5e's 16 MiB default


def _round_up(x, m):
    return ((x + m - 1) // m) * m


# -----------------------------------------------------------------------------
# Kernel 1: tiled linear  y = x @ w + b   (vocab projection)
# Grid is (N tiles, M tiles) with M innermost so the weight tile (index (0, n))
# is the resident operand (read from HBM exactly once) and x row tiles stream.
# -----------------------------------------------------------------------------
def _linear_kernel(x_ref, w_ref, b_ref, y_ref):
    y_ref[...] = (
        jnp.dot(x_ref[...], w_ref[...], preferred_element_type=jnp.float32)
        + b_ref[...]
    ).astype(y_ref.dtype)


def _pick_linear_tiles(M, K, N, xw_bytes):
    """Pick (TM, TN) so the double-buffered footprint stays well under 32 MiB."""
    TM = 512 if M >= 512 else _round_up(M, 8)
    tn_opts = [c for c in (1024, 512, 256, 128) if N % c == 0]
    budget = 20 * 1024 * 1024

    def footprint(tm, tn):
        return 2 * (tm * K + K * tn) * xw_bytes + 2 * (tm * tn + tn) * 4

    TN = tn_opts[-1]
    for tn in tn_opts:
        if footprint(TM, tn) <= budget:
            TN = tn
            break
    while footprint(TM, TN) > budget and TM > 256:
        TM //= 2
    return TM, TN


def _pallas_linear(x, w, b, *, compute_dtype):
    """x: (M, K), w: (K, N), b: (1, N). N must be a multiple of 128.

    Returns (M, N) f32. Rows are padded to the row tile internally.
    """
    M, K = x.shape
    _, N = w.shape

    xw_bytes = jnp.dtype(compute_dtype).itemsize
    TM, TN = _pick_linear_tiles(M, K, N, xw_bytes)
    Mp = _round_up(M, TM)

    if Mp != M:
        x = jnp.pad(x, ((0, Mp - M), (0, 0)))

    y = pl.pallas_call(
        _linear_kernel,
        out_shape=jax.ShapeDtypeStruct((Mp, N), jnp.float32),
        grid_spec=pltpu.PrefetchScalarGridSpec(
            num_scalar_prefetch=0,
            # N tiles outer, M tiles inner: the weight block index (0, n) is constant
            # across the inner axis -> weight resident, x streams.
            grid=(N // TN, Mp // TM),
            in_specs=[
                pl.BlockSpec((TM, K), lambda n, m: (m, 0)),
                pl.BlockSpec((K, TN), lambda n, m: (0, n)),
                pl.BlockSpec((1, TN), lambda n, m: (0, n)),
            ],
            out_specs=pl.BlockSpec((TM, TN), lambda n, m: (m, n)),
        ),
        compiler_params=pltpu.CompilerParams(
            dimension_semantics=("parallel", "parallel"),
            vmem_limit_bytes=_VMEM_LIMIT),
    )(x.astype(compute_dtype), w.astype(compute_dtype), b.astype(jnp.float32))
    return y[:M]


# -----------------------------------------------------------------------------
# Kernel 2: fused LSTM recurrence. One grid step = TT timesteps for one batch chunk.
#   - W_ih / W_hh / bias are resident (constant index_map).
#   - One big MXU matmul produces all TT steps' input-gate contributions
#     (x @ W_ih^T + b) into a VMEM scratch (no gates_x HBM intermediate).
#   - The unrolled per-step loop then only does h_prev @ W_hh + gx[t].
# Gate slices are lane-aligned (each gate occupies lanes [k*Hp, (k+1)*Hp)).
# h/c live in VMEM scratch and persist across the (sequential) time grid axis.
# -----------------------------------------------------------------------------
def _lstm_fused_kernel(emb_ref, wih_ref, bg_ref, whh_ref, h_ref,
                       gx_scr, h_scr, c_scr, *, hp, e, tt, bb, compute_dtype):
    @pl.when(pl.program_id(1) == 0)   # first time-chunk of this batch chunk
    def _():
        h_scr[...] = jnp.zeros_like(h_scr)
        c_scr[...] = jnp.zeros_like(c_scr)

    # Hoisted input->gates for this whole TT-step chunk: one MXU matmul.
    x = emb_ref[...].reshape(tt * bb, e)                       # (TT*BB, E)
    gx = jnp.dot(x, wih_ref[...],
                 preferred_element_type=jnp.float32) + bg_ref[...]
    gx_scr[...] = gx.reshape(tt, bb, 4 * hp)                   # f32 in VMEM

    def step(i, carry):
        h_prev, c_prev = carry
        # NOTE: W_hh is read from VMEM inside the step (NOT hoisted) so the fully
        # unrolled loop does not pin a 256 KB value across all iterations (spills).
        gates = gx_scr[i] + jnp.dot(
            h_prev.astype(compute_dtype), whh_ref[...],
            preferred_element_type=jnp.float32)                # (BB, 4*Hp), f32
        # PyTorch gate order [i, f, g, o]; boundaries fall on 128-lane multiples.
        i_g = jax.nn.sigmoid(gates[:, 0 * hp:1 * hp])
        f_g = jax.nn.sigmoid(gates[:, 1 * hp:2 * hp])
        g_g = jnp.tanh(gates[:, 2 * hp:3 * hp])
        o_g = jax.nn.sigmoid(gates[:, 3 * hp:4 * hp])
        c = f_g * c_prev + i_g * g_g
        h = o_g * jnp.tanh(c)
        h_ref[i] = h.astype(h_ref.dtype)
        return h, c

    h, c = lax.fori_loop(0, tt, step, (h_scr[...], c_scr[...]), unroll=True)
    h_scr[...] = h
    c_scr[...] = c


# -----------------------------------------------------------------------------
# Forward pass (== LM_LSTM.forward)
# -----------------------------------------------------------------------------
def lm_lstm_forward(input_sequence, params, *, compute_dtype=jnp.float32,
                    recurrence_batch_chunks=1):
    """recurrence_batch_chunks: set to 2 on v7x (2 TensorCores/chip) when the padded
    batch is large enough (>= 2 * sublane-min) so the 'parallel' batch grid axis
    shards across both cores; keep 1 on v5e/v6e."""
    emb_table = params["emb_table"]   # (V, E)  (padding_idx row already zero)
    w_ih = params["w_ih"]             # (4H, E)
    w_hh = params["w_hh"]             # (4H, H)
    b_ih = params["b_ih"]             # (4H,)
    b_hh = params["b_hh"]             # (4H,)
    w_out = params["w_out"]           # (V, H)
    b_out = params["b_out"]           # (V,)

    B, T = input_sequence.shape
    V, E = emb_table.shape
    H = w_hh.shape[1]

    is_bf16 = jnp.dtype(compute_dtype) == jnp.dtype(jnp.bfloat16)
    min_b = 16 if is_bf16 else 8

    Hp = _round_up(H, 128)            # lane-aligned per-gate width
    Vp = _round_up(V, 128)            # lane-dense logits
    Bp = _round_up(B, min_b)          # full sublane tiles for the compute dtype
    TT = min(T, 16)                   # timesteps per grid iteration (fully unrolled)
    Tp = _round_up(T, TT)

    # Batch chunking (v7x megacore). Only split if each chunk keeps a full sublane tile.
    BB = Bp
    if recurrence_batch_chunks > 1 and Bp % (recurrence_batch_chunks * min_b) == 0:
        BB = Bp // recurrence_batch_chunks

    # ---- Pack / pad weights. Zero padding keeps the math exact:
    #      padded W_hh rows / W_out rows are zero, so garbage in padded h lanes
    #      contributes nothing; padded gate lanes stay at sigmoid(0)*tanh(0)=0
    #      (relies on zero initial h0/c0 and zero padded bias lanes).
    def pack_gate_weight(w, din):     # (4H, din) -> (din, 4*Hp)
        out = jnp.zeros((din, 4 * Hp), jnp.float32)
        for k in range(4):            # PyTorch gate order [i, f, g, o]
            out = out.at[:, k * Hp:k * Hp + H].set(w[k * H:(k + 1) * H, :].T)
        return out

    w_ih_p = pack_gate_weight(w_ih, E)                               # (E, 4*Hp)
    w_hh_p = jnp.zeros((Hp, 4 * Hp), jnp.float32).at[:H].set(
        pack_gate_weight(w_hh, H))                                   # (Hp, 4*Hp)
    b_gates_p = jnp.zeros((1, 4 * Hp), jnp.float32)
    for k in range(4):
        b_gates_p = b_gates_p.at[0, k * Hp:k * Hp + H].set(
            b_ih[k * H:(k + 1) * H] + b_hh[k * H:(k + 1) * H])
    w_out_p = jnp.zeros((Hp, Vp), jnp.float32).at[:H, :V].set(w_out.T)
    b_out_p = jnp.zeros((1, Vp), jnp.float32).at[0, :V].set(b_out)

    # ---- Embedding gather, directly time-major (transpose the tiny id matrix,
    #      not the activations), single pad for both T and B. ----
    emb_tm = jnp.take(emb_table.astype(compute_dtype),
                      input_sequence.T, axis=0)                      # (T, B, E)
    emb_tm = jnp.pad(emb_tm, ((0, Tp - T), (0, Bp - B), (0, 0)))     # (Tp, Bp, E)

    # ---- Fused recurrence: input->gates matmul + LSTM steps in one kernel ----
    # Leading batch-chunk axis is "parallel" (batch rows are independent); the
    # time axis must stay "arbitrary" (h/c scratch carries across it).
    h_dtype = compute_dtype if is_bf16 else jnp.float32
    rec_kernel = functools.partial(
        _lstm_fused_kernel, hp=Hp, e=E, tt=TT, bb=BB, compute_dtype=compute_dtype)
    h_all = pl.pallas_call(
        rec_kernel,
        out_shape=jax.ShapeDtypeStruct((Tp, Bp, Hp), h_dtype),
        grid_spec=pltpu.PrefetchScalarGridSpec(
            num_scalar_prefetch=0,
            grid=(Bp // BB, Tp // TT),
            in_specs=[
                pl.BlockSpec((TT, BB, E), lambda b, t: (t, b, 0)),     # emb chunk
                pl.BlockSpec((E, 4 * Hp), lambda b, t: (0, 0)),        # W_ih (resident)
                pl.BlockSpec((1, 4 * Hp), lambda b, t: (0, 0)),        # bias (resident)
                pl.BlockSpec((Hp, 4 * Hp), lambda b, t: (0, 0)),       # W_hh (resident)
            ],
            out_specs=pl.BlockSpec((TT, BB, Hp), lambda b, t: (t, b, 0)),
            scratch_shapes=[
                pltpu.VMEM((TT, BB, 4 * Hp), jnp.float32),  # per-chunk gate block
                pltpu.VMEM((BB, Hp), jnp.float32),          # h state
                pltpu.VMEM((BB, Hp), jnp.float32),          # c state
            ],
        ),
        compiler_params=pltpu.CompilerParams(
            dimension_semantics=("parallel", "arbitrary"),
            vmem_limit_bytes=_VMEM_LIMIT),
    )(emb_tm, w_ih_p.astype(compute_dtype), b_gates_p,
      w_hh_p.astype(compute_dtype))

    # ---- Hoisted output projection as one big matmul (weight resident, rows stream).
    # Feed all Tp*Bp rows (no pre-slice -> no XLA copy); slice the logits afterwards.
    h_flat = h_all.reshape(Tp * Bp, Hp)
    logits = _pallas_linear(h_flat, w_out_p, b_out_p,
                            compute_dtype=compute_dtype)     # (Tp*Bp, Vp) f32
    logits = logits.reshape(Tp, Bp, Vp)[:T, :B, :V]          # (T, B, V)

    # (T, B, V) -> (B, V, T)  == PyTorch `.permute(0, 2, 1)` on batch_first output.
    # TODO(synk): if the downstream consumer accepts (B, T, V), drop this HBM-round-trip
    # transpose (T-minor layout is lane-hostile for large V).
    return jnp.transpose(logits, (1, 2, 0))


if __name__ == "__main__":
    emb_size, hidden_size, output_size, pad_index = 16, 32, 32, 0
    B, T = 2, 8

    key = jax.random.PRNGKey(0)
    keys = jax.random.split(key, 8)
    k = 1.0 / float(jnp.sqrt(hidden_size))

    # Deterministic parameter init (shapes follow nn.Embedding / nn.LSTM / nn.Linear).
    emb_table = 0.1 * jax.random.normal(keys[0], (output_size, emb_size), jnp.float32)
    emb_table = emb_table.at[pad_index].set(0.0)   # padding_idx row zeroed

    w_ih = jax.random.uniform(keys[1], (4 * hidden_size, emb_size), jnp.float32, -k, k)
    w_hh = jax.random.uniform(keys[2], (4 * hidden_size, hidden_size), jnp.float32, -k, k)
    b_ih = jax.random.uniform(keys[3], (4 * hidden_size,), jnp.float32, -k, k)
    b_hh = jax.random.uniform(keys[4], (4 * hidden_size,), jnp.float32, -k, k)
    w_out = jax.random.uniform(keys[5], (output_size, hidden_size), jnp.float32, -k, k)
    b_out = jax.random.uniform(keys[6], (output_size,), jnp.float32, -k, k)

    params = {
        "emb_table": emb_table, "w_ih": w_ih, "w_hh": w_hh,
        "b_ih": b_ih, "b_hh": b_hh, "w_out": w_out, "b_out": b_out,
    }

    input_sequence = jax.random.randint(keys[7], (B, T), 0, output_size, dtype=jnp.int32)

    # ---- f32 path (tight correctness check against the PyTorch-equivalent reference)
    fwd_f32 = jax.jit(functools.partial(lm_lstm_forward, compute_dtype=jnp.float32))
    out = jax.block_until_ready(fwd_f32(input_sequence, params))
    assert out.shape == (B, output_size, T), out.shape

    def ref_forward(ids):
        emb = jnp.take(emb_table, ids, axis=0)                   # (B, T, E)

        def step(carry, x_t):
            h, c = carry
            gates = x_t @ w_ih.T + b_ih + h @ w_hh.T + b_hh
            i, f, g, o = jnp.split(gates, 4, axis=-1)
            c = jax.nn.sigmoid(f) * c + jax.nn.sigmoid(i) * jnp.tanh(g)
            h = jax.nn.sigmoid(o) * jnp.tanh(c)
            return (h, c), h

        h0 = jnp.zeros((B, hidden_size), jnp.float32)
        c0 = jnp.zeros((B, hidden_size), jnp.float32)
        _, hs = jax.lax.scan(step, (h0, c0), jnp.transpose(emb, (1, 0, 2)))  # (T,B,H)
        logits = hs @ w_out.T + b_out                            # (T, B, V)
        return jnp.transpose(logits, (1, 2, 0))                  # (B, V, T)

    ref = ref_forward(input_sequence)
    max_err = float(jnp.max(jnp.abs(out - ref)))
    assert jnp.allclose(out, ref, atol=2e-4, rtol=2e-3), max_err

    # ---- bf16-weight path (v6e/v7x MXU-friendly), loose check
    fwd_bf16 = jax.jit(functools.partial(lm_lstm_forward, compute_dtype=jnp.bfloat16))
    out_bf16 = jax.block_until_ready(fwd_bf16(input_sequence, params))
    assert out_bf16.shape == (B, output_size, T)
    assert float(jnp.max(jnp.abs(out_bf16 - ref))) < 5e-2

    print("KERNEL_OK")
</pallas_src>

<mosaic_0001>
module attributes {stable_mosaic.version = 11 : i64} {
  func.func @_lstm_fused_kernel(%arg0: i32, %arg1: i32, %arg2: memref<8x8x16xf32, #tpu.memory_space<vmem>>, %arg3: memref<16x512xf32, #tpu.memory_space<vmem>>, %arg4: memref<1x512xf32, #tpu.memory_space<vmem>>, %arg5: memref<128x512xf32, #tpu.memory_space<vmem>>, %arg6: memref<8x8x128xf32, #tpu.memory_space<vmem>>, %arg7: memref<8x8x512xf32, #tpu.memory_space<vmem>>, %arg8: memref<8x128xf32, #tpu.memory_space<vmem>>, %arg9: memref<8x128xf32, #tpu.memory_space<vmem>>) attributes {dimension_semantics = [#tpu.dimension_semantics<parallel>, #tpu.dimension_semantics<arbitrary>], iteration_bounds = array<i64: 1, 1>, scalar_prefetch = 0 : i64, scratch_operands = 3 : i64, tpu.core_type = #tpu.core_type<tc>, window_params = [{transform_indices = @transform_0, window_bounds = array<i64: 8, 8, 16>}, {pipeline_mode = #tpu.pipeline_mode<synchronous>, transform_indices = @transform_1, window_bounds = array<i64: 16, 512>}, {pipeline_mode = #tpu.pipeline_mode<synchronous>, transform_indices = @transform_2, window_bounds = array<i64: 1, 512>}, {pipeline_mode = #tpu.pipeline_mode<synchronous>, transform_indices = @transform_3, window_bounds = array<i64: 128, 512>}, {transform_indices = @transform_4, window_bounds = array<i64: 8, 8, 128>}]} {
    %c0_i32 = arith.constant 0 : i32
    %0 = arith.cmpi eq, %arg1, %c0_i32 : i32
    %1 = arith.extui %0 : i1 to i32
    %c0_i32_0 = arith.constant 0 : i32
    %2 = arith.cmpi ne, %1, %c0_i32_0 : i32
    scf.if %2 {
      %cst_99 = arith.constant 0.000000e+00 : f32
      %296 = vector.broadcast %cst_99 : f32 to vector<8x128xf32>
      %c0_100 = arith.constant 0 : index
      %c0_101 = arith.constant 0 : index
      %297 = vector.load %arg8[%c0_100, %c0_101] : memref<8x128xf32, #tpu.memory_space<vmem>>, vector<8x128xf32>
      tpu.vector_store %arg8[%c0_100, %c0_101], %296 {strides = array<i32>} : memref<8x128xf32, #tpu.memory_space<vmem>>, vector<8x128xf32>,
      %cst_102 = arith.constant 0.000000e+00 : f32
      %298 = vector.broadcast %cst_102 : f32 to vector<8x128xf32>
      %c0_103 = arith.constant 0 : index
      %c0_104 = arith.constant 0 : index
      %299 = vector.load %arg9[%c0_103, %c0_104] : memref<8x128xf32, #tpu.memory_space<vmem>>, vector<8x128xf32>
      tpu.vector_store %arg9[%c0_103, %c0_104], %298 {strides = array<i32>} : memref<8x128xf32, #tpu.memory_space<vmem>>, vector<8x128xf32>,
    } else {
    }
    %c0 = arith.constant 0 : index
    %c0_1 = arith.constant 0 : index
    %c0_2 = arith.constant 0 : index
    %3 = vector.load %arg2[%c0, %c0_1, %c0_2] : memref<8x8x16xf32, #tpu.memory_space<vmem>>, vector<8x8x16xf32>
    %4 = vector.shape_cast %3 : vector<8x8x16xf32> to vector<64x16xf32>
    %c0_3 = arith.constant 0 : index
    %c0_4 = arith.constant 0 : index
    %5 = vector.load %arg3[%c0_3, %c0_4] : memref<16x512xf32, #tpu.memory_space<vmem>>, vector<16x512xf32>
    %cst = arith.constant dense<0.000000e+00> : vector<64x512xf32>
    %6 = tpu.matmul %4, %5, %cst {dimension_numbers = #tpu.dot_dimension_numbers<[1], [0], [0], [1], [0, 0, 1, 1], [], []>} : vector<64x16xf32>, vector<16x512xf32>, vector<64x512xf32> -> vector<64x512xf32>
    %c0_5 = arith.constant 0 : index
    %c0_6 = arith.constant 0 : index
    %7 = vector.load %arg4[%c0_5, %c0_6] : memref<1x512xf32, #tpu.memory_space<vmem>>, vector<1x512xf32>
    %8 = vector.broadcast %7 : vector<1x512xf32> to vector<64x512xf32>
    %9 = arith.addf %6, %8 : vector<64x512xf32>
    %10 = vector.shape_cast %9 : vector<64x512xf32> to vector<8x8x512xf32>
    %c0_7 = arith.constant 0 : index
    %c0_8 = arith.constant 0 : index
    %c0_9 = arith.constant 0 : index
    %11 = vector.load %arg7[%c0_7, %c0_8, %c0_9] : memref<8x8x512xf32, #tpu.memory_space<vmem>>, vector<8x8x512xf32>
    tpu.vector_store %arg7[%c0_7, %c0_8, %c0_9], %10 {strides = array<i32>} : memref<8x8x512xf32, #tpu.memory_space<vmem>>, vector<8x8x512xf32>,
    %c0_10 = arith.constant 0 : index
    %c0_11 = arith.constant 0 : index
    %12 = vector.load %arg8[%c0_10, %c0_11] : memref<8x128xf32, #tpu.memory_space<vmem>>, vector<8x128xf32>
    %c0_12 = arith.constant 0 : index
    %c0_13 = arith.constant 0 : index
    %13 = vector.load %arg9[%c0_12, %c0_13] : memref<8x128xf32, #tpu.memory_space<vmem>>, vector<8x128xf32>
    %c0_i32_14 = arith.constant 0 : i32
    %14 = arith.index_cast %c0_i32_14 : i32 to index
    %c0_15 = arith.constant 0 : index
    %c0_16 = arith.constant 0 : index
    %15 = vector.load %arg7[%14, %c0_15, %c0_16] : memref<8x8x512xf32, #tpu.memory_space<vmem>>, vector<1x8x512xf32>
    %16 = vector.shape_cast %15 : vector<1x8x512xf32> to vector<8x512xf32>
    %c0_17 = arith.constant 0 : index
    %c0_18 = arith.constant 0 : index
    %17 = vector.load %arg5[%c0_17, %c0_18] : memref<128x512xf32, #tpu.memory_space<vmem>>, vector<128x512xf32>
    %cst_19 = arith.constant dense<0.000000e+00> : vector<8x512xf32>
    %18 = tpu.matmul %12, %17, %cst_19 {dimension_numbers = #tpu.dot_dimension_numbers<[1], [0], [0], [1], [0, 0, 1, 1], [], []>} : vector<8x128xf32>, vector<128x512xf32>, vector<8x512xf32> -> vector<8x512xf32>
    %19 = arith.addf %16, %18 : vector<8x512xf32>
    %20 = vector.extract_strided_slice %19 {offsets = [0, 0], sizes = [8, 128], strides = [1, 1]} : vector<8x512xf32> to vector<8x128xf32>
    %21 = arith.negf %20 : vector<8x128xf32>
    %22 = math.exp %21 : vector<8x128xf32>
    %cst_20 = arith.constant 1.000000e+00 : f32
    %23 = vector.broadcast %cst_20 : f32 to vector<8x128xf32>
    %24 = arith.addf %23, %22 : vector<8x128xf32>
    %25 = arith.divf %23, %24 : vector<8x128xf32>
    %26 = vector.extract_strided_slice %19 {offsets = [0, 128], sizes = [8, 128], strides = [1, 1]} : vector<8x512xf32> to vector<8x128xf32>
    %27 = arith.negf %26 : vector<8x128xf32>
    %28 = math.exp %27 : vector<8x128xf32>
    %cst_21 = arith.constant 1.000000e+00 : f32
    %29 = vector.broadcast %cst_21 : f32 to vector<8x128xf32>
    %30 = arith.addf %29, %28 : vector<8x128xf32>
    %31 = arith.divf %29, %30 : vector<8x128xf32>
    %32 = vector.extract_strided_slice %19 {offsets = [0, 256], sizes = [8, 128], strides = [1, 1]} : vector<8x512xf32> to vector<8x128xf32>
    %33 = math.tanh %32 : vector<8x128xf32>
    %34 = vector.extract_strided_slice %19 {offsets = [0, 384], sizes = [8, 128], strides = [1, 1]} : vector<8x512xf32> to vector<8x128xf32>
    %35 = arith.negf %34 : vector<8x128xf32>
    %36 = math.exp %35 : vector<8x128xf32>
    %cst_22 = arith.constant 1.000000e+00 : f32
    %37 = vector.broadcast %cst_22 : f32 to vector<8x128xf32>
    %38 = arith.addf %37, %36 : vector<8x128xf32>
    %39 = arith.divf %37, %38 : vector<8x128xf32>
    %40 = arith.mulf %31, %13 : vector<8x128xf32>
    %41 = arith.mulf %25, %33 : vector<8x128xf32>
    %42 = arith.addf %40, %41 : vector<8x128xf32>
    %43 = math.tanh %42 : vector<8x128xf32>
    %44 = arith.mulf %39, %43 : vector<8x128xf32>
    %45 = arith.index_cast %c0_i32_14 : i32 to index
    %c0_23 = arith.constant 0 : index
    %c0_24 = arith.constant 0 : index
    %46 = vector.load %arg6[%45, %c0_23, %c0_24] : memref<8x8x128xf32, #tpu.memory_space<vmem>>, vector<1x8x128xf32>
    %47 = vector.shape_cast %46 : vector<1x8x128xf32> to vector<8x128xf32>
    %48 = vector.shape_cast %44 : vector<8x128xf32> to vector<1x8x128xf32>
    tpu.vector_store %arg6[%45, %c0_23, %c0_24], %48 {strides = array<i32>} : memref<8x8x128xf32, #tpu.memory_space<vmem>>, vector<1x8x128xf32>,
    %c1_i32 = arith.constant 1 : i32
    %49 = arith.index_cast %c1_i32 : i32 to index
    %c0_25 = arith.constant 0 : index
    %c0_26 = arith.constant 0 : index
    %50 = vector.load %arg7[%49, %c0_25, %c0_26] : memref<8x8x512xf32, #tpu.memory_space<vmem>>, vector<1x8x512xf32>
    %51 = vector.shape_cast %50 : vector<1x8x512xf32> to vector<8x512xf32>
    %c0_27 = arith.constant 0 : index
    %c0_28 = arith.constant 0 : index
    %52 = vector.load %arg5[%c0_27, %c0_28] : memref<128x512xf32, #tpu.memory_space<vmem>>, vector<128x512xf32>
    %cst_29 = arith.constant dense<0.000000e+00> : vector<8x512xf32>
    %53 = tpu.matmul %44, %52, %cst_29 {dimension_numbers = #tpu.dot_dimension_numbers<[1], [0], [0], [1], [0, 0, 1, 1], [], []>} : vector<8x128xf32>, vector<128x512xf32>, vector<8x512xf32> -> vector<8x512xf32>
    %54 = arith.addf %51, %53 : vector<8x512xf32>
    %55 = vector.extract_strided_slice %54 {offsets = [0, 0], sizes = [8, 128], strides = [1, 1]} : vector<8x512xf32> to vector<8x128xf32>
    %56 = arith.negf %55 : vector<8x128xf32>
    %57 = math.exp %56 : vector<8x128xf32>
    %cst_30 = arith.constant 1.000000e+00 : f32
    %58 = vector.broadcast %cst_30 : f32 to vector<8x128xf32>
    %59 = arith.addf %58, %57 : vector<8x128xf32>
    %60 = arith.divf %58, %59 : vector<8x128xf32>
    %61 = vector.extract_strided_slice %54 {offsets = [0, 128], sizes = [8, 128], strides = [1, 1]} : vector<8x512xf32> to vector<8x128xf32>
    %62 = arith.negf %61 : vector<8x128xf32>
    %63 = math.exp %62 : vector<8x128xf32>
    %cst_31 = arith.constant 1.000000e+00 : f32
    %64 = vector.broadcast %cst_31 : f32 to vector<8x128xf32>
    %65 = arith.addf %64, %63 : vector<8x128xf32>
    %66 = arith.divf %64, %65 : vector<8x128xf32>
    %67 = vector.extract_strided_slice %54 {offsets = [0, 256], sizes = [8, 128], strides = [1, 1]} : vector<8x512xf32> to vector<8x128xf32>
    %68 = math.tanh %67 : vector<8x128xf32>
    %69 = vector.extract_strided_slice %54 {offsets = [0, 384], sizes = [8, 128], strides = [1, 1]} : vector<8x512xf32> to vector<8x128xf32>
    %70 = arith.negf %69 : vector<8x128xf32>
    %71 = math.exp %70 : vector<8x128xf32>
    %cst_32 = arith.constant 1.000000e+00 : f32
    %72 = vector.broadcast %cst_32 : f32 to vector<8x128xf32>
    %73 = arith.addf %72, %71 : vector<8x128xf32>
    %74 = arith.divf %72, %73 : vector<8x128xf32>
    %75 = arith.mulf %66, %42 : vector<8x128xf32>
    %76 = arith.mulf %60, %68 : vector<8x128xf32>
    %77 = arith.addf %75, %76 : vector<8x128xf32>
    %78 = math.tanh %77 : vector<8x128xf32>
    %79 = arith.mulf %74, %78 : vector<8x128xf32>
    %80 = arith.index_cast %c1_i32 : i32 to index
    %c0_33 = arith.constant 0 : index
    %c0_34 = arith.constant 0 : index
    %81 = vector.load %arg6[%80, %c0_33, %c0_34] : memref<8x8x128xf32, #tpu.memory_space<vmem>>, vector<1x8x128xf32>
    %82 = vector.shape_cast %81 : vector<1x8x128xf32> to vector<8x128xf32>
    %83 = vector.shape_cast %79 : vector<8x128xf32> to vector<1x8x128xf32>
    tpu.vector_store %arg6[%80, %c0_33, %c0_34], %83 {strides = array<i32>} : memref<8x8x128xf32, #tpu.memory_space<vmem>>, vector<1x8x128xf32>,
    %c2_i32 = arith.constant 2 : i32
    %84 = arith.index_cast %c2_i32 : i32 to index
    %c0_35 = arith.constant 0 : index
    %c0_36 = arith.constant 0 : index
    %85 = vector.load %arg7[%84, %c0_35, %c0_36] : memref<8x8x512xf32, #tpu.memory_space<vmem>>, vector<1x8x512xf32>
    %86 = vector.shape_cast %85 : vector<1x8x512xf32> to vector<8x512xf32>
    %c0_37 = arith.constant 0 : index
    %c0_38 = arith.constant 0 : index
    %87 = vector.load %arg5[%c0_37, %c0_38] : memref<128x512xf32, #tpu.memory_space<vmem>>, vector<128x512xf32>
    %cst_39 = arith.constant dense<0.000000e+00> : vector<8x512xf32>
    %88 = tpu.matmul %79, %87, %cst_39 {dimension_numbers = #tpu.dot_dimension_numbers<[1], [0], [0], [1], [0, 0, 1, 1], [], []>} : vector<8x128xf32>, vector<128x512xf32>, vector<8x512xf32> -> vector<8x512xf32>
    %89 = arith.addf %86, %88 : vector<8x512xf32>
    %90 = vector.extract_strided_slice %89 {offsets = [0, 0], sizes = [8, 128], strides = [1, 1]} : vector<8x512xf32> to vector<8x128xf32>
    %91 = arith.negf %90 : vector<8x128xf32>
    %92 = math.exp %91 : vector<8x128xf32>
    %cst_40 = arith.constant 1.000000e+00 : f32
    %93 = vector.broadcast %cst_40 : f32 to vector<8x128xf32>
    %94 = arith.addf %93, %92 : vector<8x128xf32>
    %95 = arith.divf %93, %94 : vector<8x128xf32>
    %96 = vector.extract_strided_slice %89 {offsets = [0, 128], sizes = [8, 128], strides = [1, 1]} : vector<8x512xf32> to vector<8x128xf32>
    %97 = arith.negf %96 : vector<8x128xf32>
    %98 = math.exp %97 : vector<8x128xf32>
    %cst_41 = arith.constant 1.000000e+00 : f32
    %99 = vector.broadcast %cst_41 : f32 to vector<8x128xf32>
    %100 = arith.addf %99, %98 : vector<8x128xf32>
    %101 = arith.divf %99, %100 : vector<8x128xf32>
    %102 = vector.extract_strided_slice %89 {offsets = [0, 256], sizes = [8, 128], strides = [1, 1]} : vector<8x512xf32> to vector<8x128xf32>
    %103 = math.tanh %102 : vector<8x128xf32>
    %104 = vector.extract_strided_slice %89 {offsets = [0, 384], sizes = [8, 128], strides = [1, 1]} : vector<8x512xf32> to vector<8x128xf32>
    %105 = arith.negf %104 : vector<8x128xf32>
    %106 = math.exp %105 : vector<8x128xf32>
    %cst_42 = arith.constant 1.000000e+00 : f32
    %107 = vector.broadcast %cst_42 : f32 to vector<8x128xf32>
    %108 = arith.addf %107, %106 : vector<8x128xf32>
    %109 = arith.divf %107, %108 : vector<8x128xf32>
    %110 = arith.mulf %101, %77 : vector<8x128xf32>
    %111 = arith.mulf %95, %103 : vector<8x128xf32>
    %112 = arith.addf %110, %111 : vector<8x128xf32>
    %113 = math.tanh %112 : vector<8x128xf32>
    %114 = arith.mulf %109, %113 : vector<8x128xf32>
    %115 = arith.index_cast %c2_i32 : i32 to index
    %c0_43 = arith.constant 0 : index
    %c0_44 = arith.constant 0 : index
    %116 = vector.load %arg6[%115, %c0_43, %c0_44] : memref<8x8x128xf32, #tpu.memory_space<vmem>>, vector<1x8x128xf32>
    %117 = vector.shape_cast %116 : vector<1x8x128xf32> to vector<8x128xf32>
    %118 = vector.shape_cast %114 : vector<8x128xf32> to vector<1x8x128xf32>
    tpu.vector_store %arg6[%115, %c0_43, %c0_44], %118 {strides = array<i32>} : memref<8x8x128xf32, #tpu.memory_space<vmem>>, vector<1x8x128xf32>,
    %c3_i32 = arith.constant 3 : i32
    %119 = arith.index_cast %c3_i32 : i32 to index
    %c0_45 = arith.constant 0 : index
    %c0_46 = arith.constant 0 : index
    %120 = vector.load %arg7[%119, %c0_45, %c0_46] : memref<8x8x512xf32, #tpu.memory_space<vmem>>, vector<1x8x512xf32>
    %121 = vector.shape_cast %120 : vector<1x8x512xf32> to vector<8x512xf32>
    %c0_47 = arith.constant 0 : index
    %c0_48 = arith.constant 0 : index
    %122 = vector.load %arg5[%c0_47, %c0_48] : memref<128x512xf32, #tpu.memory_space<vmem>>, vector<128x512xf32>
    %cst_49 = arith.constant dense<0.000000e+00> : vector<8x512xf32>
    %123 = tpu.matmul %114, %122, %cst_49 {dimension_numbers = #tpu.dot_dimension_numbers<[1], [0], [0], [1], [0, 0, 1, 1], [], []>} : vector<8x128xf32>, vector<128x512xf32>, vector<8x512xf32> -> vector<8x512xf32>
    %124 = arith.addf %121, %123 : vector<8x512xf32>
    %125 = vector.extract_strided_slice %124 {offsets = [0, 0], sizes = [8, 128], strides = [1, 1]} : vector<8x512xf32> to vector<8x128xf32>
    %126 = arith.negf %125 : vector<8x128xf32>
    %127 = math.exp %126 : vector<8x128xf32>
    %cst_50 = arith.constant 1.000000e+00 : f32
    %128 = vector.broadcast %cst_50 : f32 to vector<8x128xf32>
    %129 = arith.addf %128, %127 : vector<8x128xf32>
    %130 = arith.divf %128, %129 : vector<8x128xf32>
    %131 = vector.extract_strided_slice %124 {offsets = [0, 128], sizes = [8, 128], strides = [1, 1]} : vector<8x512xf32> to vector<8x128xf32>
    %132 = arith.negf %131 : vector<8x128xf32>
    %133 = math.exp %132 : vector<8x128xf32>
    %cst_51 = arith.constant 1.000000e+00 : f32
    %134 = vector.broadcast %cst_51 : f32 to vector<8x128xf32>
    %135 = arith.addf %134, %133 : vector<8x128xf32>
    %136 = arith.divf %134, %135 : vector<8x128xf32>
    %137 = vector.extract_strided_slice %124 {offsets = [0, 256], sizes = [8, 128], strides = [1, 1]} : vector<8x512xf32> to vector<8x128xf32>
    %138 = math.tanh %137 : vector<8x128xf32>
    %139 = vector.extract_strided_slice %124 {offsets = [0, 384], sizes = [8, 128], strides = [1, 1]} : vector<8x512xf32> to vector<8x128xf32>
    %140 = arith.negf %139 : vector<8x128xf32>
    %141 = math.exp %140 : vector<8x128xf32>
    %cst_52 = arith.constant 1.000000e+00 : f32
    %142 = vector.broadcast %cst_52 : f32 to vector<8x128xf32>
    %143 = arith.addf %142, %141 : vector<8x128xf32>
    %144 = arith.divf %142, %143 : vector<8x128xf32>
    %145 = arith.mulf %136, %112 : vector<8x128xf32>
    %146 = arith.mulf %130, %138 : vector<8x128xf32>
    %147 = arith.addf %145, %146 : vector<8x128xf32>
    %148 = math.tanh %147 : vector<8x128xf32>
    %149 = arith.mulf %144, %148 : vector<8x128xf32>
    %150 = arith.index_cast %c3_i32 : i32 to index
    %c0_53 = arith.constant 0 : index
    %c0_54 = arith.constant 0 : index
    %151 = vector.load %arg6[%150, %c0_53, %c0_54] : memref<8x8x128xf32, #tpu.memory_space<vmem>>, vector<1x8x128xf32>
    %152 = vector.shape_cast %151 : vector<1x8x128xf32> to vector<8x128xf32>
    %153 = vector.shape_cast %149 : vector<8x128xf32> to vector<1x8x128xf32>
    tpu.vector_store %arg6[%150, %c0_53, %c0_54], %153 {strides = array<i32>} : memref<8x8x128xf32, #tpu.memory_space<vmem>>, vector<1x8x128xf32>,
    %c4_i32 = arith.constant 4 : i32
    %154 = arith.index_cast %c4_i32 : i32 to index
    %c0_55 = arith.constant 0 : index
    %c0_56 = arith.constant 0 : index
    %155 = vector.load %arg7[%154, %c0_55, %c0_56] : memref<8x8x512xf32, #tpu.memory_space<vmem>>, vector<1x8x512xf32>
    %156 = vector.shape_cast %155 : vector<1x8x512xf32> to vector<8x512xf32>
    %c0_57 = arith.constant 0 : index
    %c0_58 = arith.constant 0 : index
    %157 = vector.load %arg5[%c0_57, %c0_58] : memref<128x512xf32, #tpu.memory_space<vmem>>, vector<128x512xf32>
    %cst_59 = arith.constant dense<0.000000e+00> : vector<8x512xf32>
    %158 = tpu.matmul %149, %157, %cst_59 {dimension_numbers = #tpu.dot_dimension_numbers<[1], [0], [0], [1], [0, 0, 1, 1], [], []>} : vector<8x128xf32>, vector<128x512xf32>, vector<8x512xf32> -> vector<8x512xf32>
    %159 = arith.addf %156, %158 : vector<8x512xf32>
    %160 = vector.extract_strided_slice %159 {offsets = [0, 0], sizes = [8, 128], strides = [1, 1]} : vector<8x512xf32> to vector<8x128xf32>
    %161 = arith.negf %160 : vector<8x128xf32>
    %162 = math.exp %161 : vector<8x128xf32>
    %cst_60 = arith.constant 1.000000e+00 : f32
    %163 = vector.broadcast %cst_60 : f32 to vector<8x128xf32>
    %164 = arith.addf %163, %162 : vector<8x128xf32>
    %165 = arith.divf %163, %164 : vector<8x128xf32>
    %166 = vector.extract_strided_slice %159 {offsets = [0, 128], sizes = [8, 128], strides = [1, 1]} : vector<8x512xf32> to vector<8x128xf32>
    %167 = arith.negf %166 : vector<8x128xf32>
    %168 = math.exp %167 : vector<8x128xf32>
    %cst_61 = arith.constant 1.000000e+00 : f32
    %169 = vector.broadcast %cst_61 : f32 to vector<8x128xf32>
    %170 = arith.addf %169, %168 : vector<8x128xf32>
    %171 = arith.divf %169, %170 : vector<8x128xf32>
    %172 = vector.extract_strided_slice %159 {offsets = [0, 256], sizes = [8, 128], strides = [1, 1]} : vector<8x512xf32> to vector<8x128xf32>
    %173 = math.tanh %172 : vector<8x128xf32>
    %174 = vector.extract_strided_slice %159 {offsets = [0, 384], sizes = [8, 128], strides = [1, 1]} : vector<8x512xf32> to vector<8x128xf32>
    %175 = arith.negf %174 : vector<8x128xf32>
    %176 = math.exp %175 : vector<8x128xf32>
    %cst_62 = arith.constant 1.000000e+00 : f32
    %177 = vector.broadcast %cst_62 : f32 to vector<8x128xf32>
    %178 = arith.addf %177, %176 : vector<8x128xf32>
    %179 = arith.divf %177, %178 : vector<8x128xf32>
    %180 = arith.mulf %171, %147 : vector<8x128xf32>
    %181 = arith.mulf %165, %173 : vector<8x128xf32>
    %182 = arith.addf %180, %181 : vector<8x128xf32>
    %183 = math.tanh %182 : vector<8x128xf32>
    %184 = arith.mulf %179, %183 : vector<8x128xf32>
    %185 = arith.index_cast %c4_i32 : i32 to index
    %c0_63 = arith.constant 0 : index
    %c0_64 = arith.constant 0 : index
    %186 = vector.load %arg6[%185, %c0_63, %c0_64] : memref<8x8x128xf32, #tpu.memory_space<vmem>>, vector<1x8x128xf32>
    %187 = vector.shape_cast %186 : vector<1x8x128xf32> to vector<8x128xf32>
    %188 = vector.shape_cast %184 : vector<8x128xf32> to vector<1x8x128xf32>
    tpu.vector_store %arg6[%185, %c0_63, %c0_64], %188 {strides = array<i32>} : memref<8x8x128xf32, #tpu.memory_space<vmem>>, vector<1x8x128xf32>,
    %c5_i32 = arith.constant 5 : i32
    %189 = arith.index_cast %c5_i32 : i32 to index
    %c0_65 = arith.constant 0 : index
    %c0_66 = arith.constant 0 : index
    %190 = vector.load %arg7[%189, %c0_65, %c0_66] : memref<8x8x512xf32, #tpu.memory_space<vmem>>, vector<1x8x512xf32>
    %191 = vector.shape_cast %190 : vector<1x8x512xf32> to vector<8x512xf32>
    %c0_67 = arith.constant 0 : index
    %c0_68 = arith.constant 0 : index
    %192 = vector.load %arg5[%c0_67, %c0_68] : memref<128x512xf32, #tpu.memory_space<vmem>>, vector<128x512xf32>
    %cst_69 = arith.constant dense<0.000000e+00> : vector<8x512xf32>
    %193 = tpu.matmul %184, %192, %cst_69 {dimension_numbers = #tpu.dot_dimension_numbers<[1], [0], [0], [1], [0, 0, 1, 1], [], []>} : vector<8x128xf32>, vector<128x512xf32>, vector<8x512xf32> -> vector<8x512xf32>
    %194 = arith.addf %191, %193 : vector<8x512xf32>
    %195 = vector.extract_strided_slice %194 {offsets = [0, 0], sizes = [8, 128], strides = [1, 1]} : vector<8x512xf32> to vector<8x128xf32>
    %196 = arith.negf %195 : vector<8x128xf32>
    %197 = math.exp %196 : vector<8x128xf32>
    %cst_70 = arith.constant 1.000000e+00 : f32
    %198 = vector.broadcast %cst_70 : f32 to vector<8x128xf32>
    %199 = arith.addf %198, %197 : vector<8x128xf32>
    %200 = arith.divf %198, %199 : vector<8x128xf32>
    %201 = vector.extract_strided_slice %194 {offsets = [0, 128], sizes = [8, 128], strides = [1, 1]} : vector<8x512xf32> to vector<8x128xf32>
    %202 = arith.negf %201 : vector<8x128xf32>
    %203 = math.exp %202 : vector<8x128xf32>
    %cst_71 = arith.constant 1.000000e+00 : f32
    %204 = vector.broadcast %cst_71 : f32 to vector<8x128xf32>
    %205 = arith.addf %204, %203 : vector<8x128xf32>
    %206 = arith.divf %204, %205 : vector<8x128xf32>
    %207 = vector.extract_strided_slice %194 {offsets = [0, 256], sizes = [8, 128], strides = [1, 1]} : vector<8x512xf32> to vector<8x128xf32>
    %208 = math.tanh %207 : vector<8x128xf32>
    %209 = vector.extract_strided_slice %194 {offsets = [0, 384], sizes = [8, 128], strides = [1, 1]} : vector<8x512xf32> to vector<8x128xf32>
    %210 = arith.negf %209 : vector<8x128xf32>
    %211 = math.exp %210 : vector<8x128xf32>
    %cst_72 = arith.constant 1.000000e+00 : f32
    %212 = vector.broadcast %cst_72 : f32 to vector<8x128xf32>
    %213 = arith.addf %212, %211 : vector<8x128xf32>
    %214 = arith.divf %212, %213 : vector<8x128xf32>
    %215 = arith.mulf %206, %182 : vector<8x128xf32>
    %216 = arith.mulf %200, %208 : vector<8x128xf32>
    %217 = arith.addf %215, %216 : vector<8x128xf32>
    %218 = math.tanh %217 : vector<8x128xf32>
    %219 = arith.mulf %214, %218 : vector<8x128xf32>
    %220 = arith.index_cast %c5_i32 : i32 to index
    %c0_73 = arith.constant 0 : index
    %c0_74 = arith.constant 0 : index
    %221 = vector.load %arg6[%220, %c0_73, %c0_74] : memref<8x8x128xf32, #tpu.memory_space<vmem>>, vector<1x8x128xf32>
    %222 = vector.shape_cast %221 : vector<1x8x128xf32> to vector<8x128xf32>
    %223 = vector.shape_cast %219 : vector<8x128xf32> to vector<1x8x128xf32>
    tpu.vector_store %arg6[%220, %c0_73, %c0_74], %223 {strides = array<i32>} : memref<8x8x128xf32, #tpu.memory_space<vmem>>, vector<1x8x128xf32>,
    %c6_i32 = arith.constant 6 : i32
    %224 = arith.index_cast %c6_i32 : i32 to index
    %c0_75 = arith.constant 0 : index
    %c0_76 = arith.constant 0 : index
    %225 = vector.load %arg7[%224, %c0_75, %c0_76] : memref<8x8x512xf32, #tpu.memory_space<vmem>>, vector<1x8x512xf32>
    %226 = vector.shape_cast %225 : vector<1x8x512xf32> to vector<8x512xf32>
    %c0_77 = arith.constant 0 : index
    %c0_78 = arith.constant 0 : index
    %227 = vector.load %arg5[%c0_77, %c0_78] : memref<128x512xf32, #tpu.memory_space<vmem>>, vector<128x512xf32>
    %cst_79 = arith.constant dense<0.000000e+00> : vector<8x512xf32>
    %228 = tpu.matmul %219, %227, %cst_79 {dimension_numbers = #tpu.dot_dimension_numbers<[1], [0], [0], [1], [0, 0, 1, 1], [], []>} : vector<8x128xf32>, vector<128x512xf32>, vector<8x512xf32> -> vector<8x512xf32>
    %229 = arith.addf %226, %228 : vector<8x512xf32>
    %230 = vector.extract_strided_slice %229 {offsets = [0, 0], sizes = [8, 128], strides = [1, 1]} : vector<8x512xf32> to vector<8x128xf32>
    %231 = arith.negf %230 : vector<8x128xf32>
    %232 = math.exp %231 : vector<8x128xf32>
    %cst_80 = arith.constant 1.000000e+00 : f32
    %233 = vector.broadcast %cst_80 : f32 to vector<8x128xf32>
    %234 = arith.addf %233, %232 : vector<8x128xf32>
    %235 = arith.divf %233, %234 : vector<8x128xf32>
    %236 = vector.extract_strided_slice %229 {offsets = [0, 128], sizes = [8, 128], strides = [1, 1]} : vector<8x512xf32> to vector<8x128xf32>
    %237 = arith.negf %236 : vector<8x128xf32>
    %238 = math.exp %237 : vector<8x128xf32>
    %cst_81 = arith.constant 1.000000e+00 : f32
    %239 = vector.broadcast %cst_81 : f32 to vector<8x128xf32>
    %240 = arith.addf %239, %238 : vector<8x128xf32>
    %241 = arith.divf %239, %240 : vector<8x128xf32>
    %242 = vector.extract_strided_slice %229 {offsets = [0, 256], sizes = [8, 128], strides = [1, 1]} : vector<8x512xf32> to vector<8x128xf32>
    %243 = math.tanh %242 : vector<8x128xf32>
    %244 = vector.extract_strided_slice %229 {offsets = [0, 384], sizes = [8, 128], strides = [1, 1]} : vector<8x512xf32> to vector<8x128xf32>
    %245 = arith.negf %244 : vector<8x128xf32>
    %246 = math.exp %245 : vector<8x128xf32>
    %cst_82 = arith.constant 1.000000e+00 : f32
    %247 = vector.broadcast %cst_82 : f32 to vector<8x128xf32>
    %248 = arith.addf %247, %246 : vector<8x128xf32>
    %249 = arith.divf %247, %248 : vector<8x128xf32>
    %250 = arith.mulf %241, %217 : vector<8x128xf32>
    %251 = arith.mulf %235, %243 : vector<8x128xf32>
    %252 = arith.addf %250, %251 : vector<8x128xf32>
    %253 = math.tanh %252 : vector<8x128xf32>
    %254 = arith.mulf %249, %253 : vector<8x128xf32>
    %255 = arith.index_cast %c6_i32 : i32 to index
    %c0_83 = arith.constant 0 : index
    %c0_84 = arith.constant 0 : index
    %256 = vector.load %arg6[%255, %c0_83, %c0_84] : memref<8x8x128xf32, #tpu.memory_space<vmem>>, vector<1x8x128xf32>
    %257 = vector.shape_cast %256 : vector<1x8x128xf32> to vector<8x128xf32>
    %258 = vector.shape_cast %254 : vector<8x128xf32> to vector<1x8x128xf32>
    tpu.vector_store %arg6[%255, %c0_83, %c0_84], %258 {strides = array<i32>} : memref<8x8x128xf32, #tpu.memory_space<vmem>>, vector<1x8x128xf32>,
    %c7_i32 = arith.constant 7 : i32
    %259 = arith.index_cast %c7_i32 : i32 to index
    %c0_85 = arith.constant 0 : index
    %c0_86 = arith.constant 0 : index
    %260 = vector.load %arg7[%259, %c0_85, %c0_86] : memref<8x8x512xf32, #tpu.memory_space<vmem>>, vector<1x8x512xf32>
    %261 = vector.shape_cast %260 : vector<1x8x512xf32> to vector<8x512xf32>
    %c0_87 = arith.constant 0 : index
    %c0_88 = arith.constant 0 : index
    %262 = vector.load %arg5[%c0_87, %c0_88] : memref<128x512xf32, #tpu.memory_space<vmem>>, vector<128x512xf32>
    %cst_89 = arith.constant dense<0.000000e+00> : vector<8x512xf32>
    %263 = tpu.matmul %254, %262, %cst_89 {dimension_numbers = #tpu.dot_dimension_numbers<[1], [0], [0], [1], [0, 0, 1, 1], [], []>} : vector<8x128xf32>, vector<128x512xf32>, vector<8x512xf32> -> vector<8x512xf32>
    %264 = arith.addf %261, %263 : vector<8x512xf32>
    %265 = vector.extract_strided_slice %264 {offsets = [0, 0], sizes = [8, 128], strides = [1, 1]} : vector<8x512xf32> to vector<8x128xf32>
    %266 = arith.negf %265 : vector<8x128xf32>
    %267 = math.exp %266 : vector<8x128xf32>
    %cst_90 = arith.constant 1.000000e+00 : f32
    %268 = vector.broadcast %cst_90 : f32 to vector<8x128xf32>
    %269 = arith.addf %268, %267 : vector<8x128xf32>
    %270 = arith.divf %268, %269 : vector<8x128xf32>
    %271 = vector.extract_strided_slice %264 {offsets = [0, 128], sizes = [8, 128], strides = [1, 1]} : vector<8x512xf32> to vector<8x128xf32>
    %272 = arith.negf %271 : vector<8x128xf32>
    %273 = math.exp %272 : vector<8x128xf32>
    %cst_91 = arith.constant 1.000000e+00 : f32
    %274 = vector.broadcast %cst_91 : f32 to vector<8x128xf32>
    %275 = arith.addf %274, %273 : vector<8x128xf32>
    %276 = arith.divf %274, %275 : vector<8x128xf32>
    %277 = vector.extract_strided_slice %264 {offsets = [0, 256], sizes = [8, 128], strides = [1, 1]} : vector<8x512xf32> to vector<8x128xf32>
    %278 = math.tanh %277 : vector<8x128xf32>
    %279 = vector.extract_strided_slice %264 {offsets = [0, 384], sizes = [8, 128], strides = [1, 1]} : vector<8x512xf32> to vector<8x128xf32>
    %280 = arith.negf %279 : vector<8x128xf32>
    %281 = math.exp %280 : vector<8x128xf32>
    %cst_92 = arith.constant 1.000000e+00 : f32
    %282 = vector.broadcast %cst_92 : f32 to vector<8x128xf32>
    %283 = arith.addf %282, %281 : vector<8x128xf32>
    %284 = arith.divf %282, %283 : vector<8x128xf32>
    %285 = arith.mulf %276, %252 : vector<8x128xf32>
    %286 = arith.mulf %270, %278 : vector<8x128xf32>
    %287 = arith.addf %285, %286 : vector<8x128xf32>
    %288 = math.tanh %287 : vector<8x128xf32>
    %289 = arith.mulf %284, %288 : vector<8x128xf32>
    %290 = arith.index_cast %c7_i32 : i32 to index
    %c0_93 = arith.constant 0 : index
    %c0_94 = arith.constant 0 : index
    %291 = vector.load %arg6[%290, %c0_93, %c0_94] : memref<8x8x128xf32, #tpu.memory_space<vmem>>, vector<1x8x128xf32>
    %292 = vector.shape_cast %291 : vector<1x8x128xf32> to vector<8x128xf32>
    %293 = vector.shape_cast %289 : vector<8x128xf32> to vector<1x8x128xf32>
    tpu.vector_store %arg6[%290, %c0_93, %c0_94], %293 {strides = array<i32>} : memref<8x8x128xf32, #tpu.memory_space<vmem>>, vector<1x8x128xf32>,
    %c8_i32 = arith.constant 8 : i32
    %c0_95 = arith.constant 0 : index
    %c0_96 = arith.constant 0 : index
    %294 = vector.load %arg8[%c0_95, %c0_96] : memref<8x128xf32, #tpu.memory_space<vmem>>, vector<8x128xf32>
    tpu.vector_store %arg8[%c0_95, %c0_96], %289 {strides = array<i32>} : memref<8x128xf32, #tpu.memory_space<vmem>>, vector<8x128xf32>,
    %c0_97 = arith.constant 0 : index
    %c0_98 = arith.constant 0 : index
    %295 = vector.load %arg9[%c0_97, %c0_98] : memref<8x128xf32, #tpu.memory_space<vmem>>, vector<8x128xf32>
    tpu.vector_store %arg9[%c0_97, %c0_98], %287 {strides = array<i32>} : memref<8x128xf32, #tpu.memory_space<vmem>>, vector<8x128xf32>,
    return
  }
  func.func @transform_0(%arg0: i32, %arg1: i32) -> (i32, i32, i32) {
    %c0_i32 = arith.constant 0 : i32
    %c0_i32_0 = arith.constant 0 : i32
    return %arg1, %arg0, %c0_i32 : i32, i32, i32
  }
  func.func @transform_1(%arg0: i32, %arg1: i32) -> (i32, i32) {
    %c0_i32 = arith.constant 0 : i32
    %c0_i32_0 = arith.constant 0 : i32
    %c0_i32_1 = arith.constant 0 : i32
    return %c0_i32, %c0_i32_0 : i32, i32
  }
  func.func @transform_2(%arg0: i32, %arg1: i32) -> (i32, i32) {
    %c0_i32 = arith.constant 0 : i32
    %c0_i32_0 = arith.constant 0 : i32
    %c0_i32_1 = arith.constant 0 : i32
    return %c0_i32, %c0_i32_0 : i32, i32
  }
  func.func @transform_3(%arg0: i32, %arg1: i32) -> (i32, i32) {
    %c0_i32 = arith.constant 0 : i32
    %c0_i32_0 = arith.constant 0 : i32
    %c0_i32_1 = arith.constant 0 : i32
    return %c0_i32, %c0_i32_0 : i32, i32
  }
  func.func @transform_4(%arg0: i32, %arg1: i32) -> (i32, i32, i32) {
    %c0_i32 = arith.constant 0 : i32
    %c0_i32_0 = arith.constant 0 : i32
    return %arg1, %arg0, %c0_i32 : i32, i32, i32
  }
}

module attributes {stable_mosaic.version = 11 : i64} {
  func.func @_linear_kernel(%arg0: i32, %arg1: i32, %arg2: memref<64x128xf32, #tpu.memory_space<vmem>>, %arg3: memref<128x128xf32, #tpu.memory_space<vmem>>, %arg4: memref<1x128xf32, #tpu.memory_space<vmem>>, %arg5: memref<64x128xf32, #tpu.memory_space<vmem>>) attributes {dimension_semantics = [#tpu.dimension_semantics<parallel>, #tpu.dimension_semantics<parallel>], iteration_bounds = array<i64: 1, 1>, scalar_prefetch = 0 : i64, scratch_operands = 0 : i64, tpu.core_type = #tpu.core_type<tc>, window_params = [{transform_indices = @transform_0, window_bounds = array<i64: 64, 128>}, {transform_indices = @transform_1, window_bounds = array<i64: 128, 128>}, {transform_indices = @transform_2, window_bounds = array<i64: 1, 128>}, {transform_indices = @transform_3, window_bounds = array<i64: 64, 128>}]} {
    %c0 = arith.constant 0 : index
    %c0_0 = arith.constant 0 : index
    %0 = vector.load %arg2[%c0, %c0_0] : memref<64x128xf32, #tpu.memory_space<vmem>>, vector<64x128xf32>
    %c0_1 = arith.constant 0 : index
    %c0_2 = arith.constant 0 : index
    %1 = vector.load %arg3[%c0_1, %c0_2] : memref<128x128xf32, #tpu.memory_space<vmem>>, vector<128x128xf32>
    %cst = arith.constant dense<0.000000e+00> : vector<64x128xf32>
    %2 = tpu.matmul %0, %1, %cst {dimension_numbers = #tpu.dot_dimension_numbers<[1], [0], [0], [1], [0, 0, 1, 1], [], []>} : vector<64x128xf32>, vector<128x128xf32>, vector<64x128xf32> -> vector<64x128xf32>
    %c0_3 = arith.constant 0 : index
    %c0_4 = arith.constant 0 : index
    %3 = vector.load %arg4[%c0_3, %c0_4] : memref<1x128xf32, #tpu.memory_space<vmem>>, vector<1x128xf32>
    %4 = vector.broadcast %3 : vector<1x128xf32> to vector<64x128xf32>
    %5 = arith.addf %2, %4 : vector<64x128xf32>
    %c0_5 = arith.constant 0 : index
    %c0_6 = arith.constant 0 : index
    %6 = vector.load %arg5[%c0_5, %c0_6] : memref<64x128xf32, #tpu.memory_space<vmem>>, vector<64x128xf32>
    tpu.vector_store %arg5[%c0_5, %c0_6], %5 {strides = array<i32>} : memref<64x128xf32, #tpu.memory_space<vmem>>, vector<64x128xf32>,
    return
  }
  func.func @transform_0(%arg0: i32, %arg1: i32) -> (i32, i32) {
    %c0_i32 = arith.constant 0 : i32
    %c0_i32_0 = arith.constant 0 : i32
    return %arg1, %c0_i32 : i32, i32
  }
  func.func @transform_1(%arg0: i32, %arg1: i32) -> (i32, i32) {
    %c0_i32 = arith.constant 0 : i32
    %c0_i32_0 = arith.constant 0 : i32
    return %c0_i32, %arg0 : i32, i32
  }
  func.func @transform_2(%arg0: i32, %arg1: i32) -> (i32, i32) {
    %c0_i32 = arith.constant 0 : i32
    %c0_i32_0 = arith.constant 0 : i32
    return %c0_i32, %arg0 : i32, i32
  }
  func.func @transform_3(%arg0: i32, %arg1: i32) -> (i32, i32) {
    %c0_i32 = arith.constant 0 : i32
    return %arg1, %arg0 : i32, i32
  }
}

</mosaic_0001>

<llo_original>
// kernel: lm_lstm_forward.3
$region0: #{lm_lstm_forward.3}
  #allocation0 [shape = 'u32[]', space=smem, size = 0x4, offset = 0x4, fixed_abs, tag = 'smem constant byte address 0x4 - core index']
  #allocation1 [shape = 'u32[144,128]{1,0:T(1,128)}', space=vmem, size = 0x12000, scoped, tag = 'internal scratch']
  %s0 = inlined_call_operand.vmem [shape: f32[64,128], index: 0, kind: input, shape index: {}]
  %s1 = inlined_call_operand.vmem [shape: f32[128,128], index: 1, kind: input, shape index: {}]
  %s2 = inlined_call_operand.vmem [shape: f32[1,128], index: 2, kind: input, shape index: {}]
  %s3 = inlined_call_operand.vmem [shape: f32[64,128], index: 3, kind: output, shape index: {}]
  %s4 = sld [smem:[#allocation0]]
  $region22: #{lm_lstm_forward.3} parent=0
    _
  %s6 = ssub.s32 1, %s4
  %s7 = scalar_select 0, %s6, %s4
  // Predicated region
  $region2: #{lm_lstm_forward.3} parent=0 // pred_check
    _
  $region3: #{lm_lstm_forward.3} parent=0 // pred_check_branch
    %9 = sbr.rel (0) target = $region5
  $region4: #{lm_lstm_forward.3} parent=0 // pred_region
    _
  $region5: #{lm_lstm_forward.3} parent=0 // pred_fallthru
    _
  // Predicated region
  $region6: #{lm_lstm_forward.3} parent=0 // pred_check
    _
  $region7: #{lm_lstm_forward.3} parent=0 // pred_check_branch
    %11 = sbr.rel (0) target = $region9
  $region8: #{lm_lstm_forward.3} parent=0 // pred_region
    _
  $region9: #{lm_lstm_forward.3} parent=0 // pred_fallthru
    _
  // Predicated region
  $region10: #{lm_lstm_forward.3} parent=0 // pred_check
    _
  $region11: #{lm_lstm_forward.3} parent=0 // pred_check_branch
    %13 = sbr.rel (0) target = $region13
  $region12: #{lm_lstm_forward.3} parent=0 // pred_region
    _
  $region13: #{lm_lstm_forward.3} parent=0 // pred_fallthru
    _
  %v14 = vld [vmem:[%s0] sm:$0xff]
  %v15 = vld [vmem:[%s0 + $0x8] sm:$0xff]
  %v16 = vld [vmem:[%s0 + $0x10] sm:$0xff]
  %v17 = vld [vmem:[%s0 + $0x18] sm:$0xff]
  %v18 = vld [vmem:[%s0 + $0x20] sm:$0xff]
  %v19 = vld [vmem:[%s0 + $0x28] sm:$0xff]
  %v20 = vld [vmem:[%s0 + $0x30] sm:$0xff]
  %v21 = vld [vmem:[%s0 + $0x38] sm:$0xff]
  %v22 = vld [vmem:[%s1] sm:$0xff]
  %v23 = vld [vmem:[%s1 + $0x8] sm:$0xff]
  %v24 = vld [vmem:[%s1 + $0x10] sm:$0xff]
  %v25 = vld [vmem:[%s1 + $0x18] sm:$0xff]
  %v26 = vld [vmem:[%s1 + $0x20] sm:$0xff]
  %v27 = vld [vmem:[%s1 + $0x28] sm:$0xff]
  %v28 = vld [vmem:[%s1 + $0x30] sm:$0xff]
  %v29 = vld [vmem:[%s1 + $0x38] sm:$0xff]
  %v30 = vld [vmem:[%s1 + $0x40] sm:$0xff]
  %v31 = vld [vmem:[%s1 + $0x48] sm:$0xff]
  %v32 = vld [vmem:[%s1 + $0x50] sm:$0xff]
  %v33 = vld [vmem:[%s1 + $0x58] sm:$0xff]
  %v34 = vld [vmem:[%s1 + $0x60] sm:$0xff]
  %v35 = vld [vmem:[%s1 + $0x68] sm:$0xff]
  %v36 = vld [vmem:[%s1 + $0x70] sm:$0xff]
  %v37 = vld [vmem:[%s1 + $0x78] sm:$0xff]
  %v38 = vld [vmem:[%s2] sm:$0x1]
  %v40 = vlaneseq
  %v41 = vshrl.u32 %v40, 7
  %v42 = vsub.s32 0, %v41
  %v43 = vrot.slane %v38, %v42
  %45 = vmatprep.subr.mxu0 0.0
  %46 = vmatpush1.msra.mxu0 %v22
  %47 = vmatprep.subr.mxu0 0.0
  %48 = vmatpush1.msra.mxu0 %v23
  %49 = vmatprep.subr.mxu0 0.0
  %50 = vmatpush1.msra.mxu0 %v24
  %51 = vmatprep.subr.mxu0 0.0
  %52 = vmatpush1.msra.mxu0 %v25
  %53 = vmatprep.subr.mxu0 0.0
  %54 = vmatpush1.msra.mxu0 %v26
  %55 = vmatprep.subr.mxu0 0.0
  %56 = vmatpush1.msra.mxu0 %v27
  %57 = vmatprep.subr.mxu0 0.0
  %58 = vmatpush1.msra.mxu0 %v28
  %59 = vmatprep.subr.mxu0 0.0
  %60 = vmatpush1.msra.mxu0 %v29
  %61 = vmatprep.subr.mxu0 0.0
  %62 = vmatpush1.msra.mxu0 %v30
  %63 = vmatprep.subr.mxu0 0.0
  %64 = vmatpush1.msra.mxu0 %v31
  %65 = vmatprep.subr.mxu0 0.0
  %66 = vmatpush1.msra.mxu0 %v32
  %67 = vmatprep.subr.mxu0 0.0
  %68 = vmatpush1.msra.mxu0 %v33
  %69 = vmatprep.subr.mxu0 0.0
  %70 = vmatpush1.msra.mxu0 %v34
  %71 = vmatprep.subr.mxu0 0.0
  %72 = vmatpush1.msra.mxu0 %v35
  %73 = vmatprep.subr.mxu0 0.0
  %74 = vmatpush1.msra.mxu0 %v36
  %75 = vmatprep.subr.mxu0 0.0
  %76 = vmatpush1.msra.mxu0 %v37
  %77 = vmatprep.subr.mxu0 0.0
  %78 = vmatpush1.msra.mxu0 0.0
  %79 = vmatprep.subr.mxu0 0.0
  %80 = vmatpush1.msra.mxu0 0.0
  %81 = vmatprep.subr.mxu0 0.0
  %82 = vmatpush1.msra.mxu0 0.0
  %83 = vmatprep.subr.mxu0 0.0
  %84 = vmatpush1.msra.mxu0 0.0
  %85 = vmatprep.subr.mxu0 0.0
  %86 = vmatpush1.msra.mxu0 0.0
  %87 = vmatprep.subr.mxu0 0.0
  %88 = vmatpush1.msra.mxu0 0.0
  %89 = vmatprep.subr.mxu0 0.0
  %90 = vmatpush1.msra.mxu0 0.0
  %91 = vmatprep.subr.mxu0 0.0
  %92 = vmatpush1.msra.mxu0 0.0
  %93 = vmatprep.subr.mxu0 0.0
  %94 = vmatpush1.msra.mxu0 0.0
  %95 = vmatprep.subr.mxu0 0.0
  %96 = vmatpush1.msra.mxu0 0.0
  %97 = vmatprep.subr.mxu0 0.0
  %98 = vmatpush1.msra.mxu0 0.0
  %99 = vmatprep.subr.mxu0 0.0
  %100 = vmatpush1.msra.mxu0 0.0
  %101 = vmatprep.subr.mxu0 0.0
  %102 = vmatpush1.msra.mxu0 0.0
  %103 = vmatprep.subr.mxu0 0.0
  %104 = vmatpush1.msra.mxu0 0.0
  %105 = vmatprep.subr.mxu0 0.0
  %106 = vmatpush1.msra.mxu0 0.0
  %107 = vmatprep.subr.mxu0 0.0
  %108 = vmatpush1.msra.mxu0 0.0
  %109 = vmatprep.mubr.f32.mxu0 0.0
  %110 = vmatmul.mubr.f32.gmra.mrb[0].mxu0 %v14
  %v111 = vpop.f32.mrb[0].mxu0
  %v112 = vadd.f32 %v43, %v111
  %v113 = vpop.f32.mrb[0].mxu0
  %114 = vmatprep.mubr.f32.mxu0 0.0
  %115 = vmatmul.mubr.f32.gmra.mrb[0].mxu0 %v15
  %v116 = vpop.f32.mrb[0].mxu0
  %v117 = vadd.f32 %v43, %v116
  %v118 = vpop.f32.mrb[0].mxu0
  %119 = vmatprep.mubr.f32.mxu0 0.0
  %120 = vmatmul.mubr.f32.gmra.mrb[0].mxu0 %v16
  %v121 = vpop.f32.mrb[0].mxu0
  %v122 = vadd.f32 %v43, %v121
  %v123 = vpop.f32.mrb[0].mxu0
  %124 = vmatprep.mubr.f32.mxu0 0.0
  %125 = vmatmul.mubr.f32.gmra.mrb[0].mxu0 %v17
  %v126 = vpop.f32.mrb[0].mxu0
  %v127 = vadd.f32 %v43, %v126
  %v128 = vpop.f32.mrb[0].mxu0
  %129 = vmatprep.mubr.f32.mxu0 0.0
  %130 = vmatmul.mubr.f32.gmra.mrb[0].mxu0 %v18
  %v131 = vpop.f32.mrb[0].mxu0
  %v132 = vadd.f32 %v43, %v131
  %v133 = vpop.f32.mrb[0].mxu0
  %134 = vmatprep.mubr.f32.mxu0 0.0
  %135 = vmatmul.mubr.f32.gmra.mrb[0].mxu0 %v19
  %v136 = vpop.f32.mrb[0].mxu0
  %v137 = vadd.f32 %v43, %v136
  %v138 = vpop.f32.mrb[0].mxu0
  %139 = vmatprep.mubr.f32.mxu0 0.0
  %140 = vmatmul.mubr.f32.gmra.mrb[0].mxu0 %v20
  %v141 = vpop.f32.mrb[0].mxu0
  %v142 = vadd.f32 %v43, %v141
  %v143 = vpop.f32.mrb[0].mxu0
  %144 = vmatprep.mubr.f32.mxu0 0.0
  %145 = vmatmul.mubr.f32.gmra.mrb[0].mxu0 %v21
  %v146 = vpop.f32.mrb[0].mxu0
  %v147 = vadd.f32 %v43, %v146
  %v148 = vpop.f32.mrb[0].mxu0
  %149 = vdwg.mxu0
  %150 = vst [vmem:[%s3] sm:$0xff] %v112
  %151 = vst [vmem:[%s3 + $0x8] sm:$0xff] %v117
  %152 = vst [vmem:[%s3 + $0x10] sm:$0xff] %v122
  %153 = vst [vmem:[%s3 + $0x18] sm:$0xff] %v127
  %154 = vst [vmem:[%s3 + $0x20] sm:$0xff] %v132
  %155 = vst [vmem:[%s3 + $0x28] sm:$0xff] %v137
  %156 = vst [vmem:[%s3 + $0x30] sm:$0xff] %v142
  %157 = vst [vmem:[%s3 + $0x38] sm:$0xff] %v147
  // Predicated region
  $region14: #{lm_lstm_forward.3} parent=0 // pred_check
    _
  $region15: #{lm_lstm_forward.3} parent=0 // pred_check_branch
    %159 = sbr.rel (0) target = $region17
  $region16: #{lm_lstm_forward.3} parent=0 // pred_region
    _
  $region17: #{lm_lstm_forward.3} parent=0 // pred_fallthru
    _
  // Predicated region
  $region18: #{lm_lstm_forward.3} parent=0 // pred_check
    _
  $region19: #{lm_lstm_forward.3} parent=0 // pred_check_branch
    %161 = sbr.rel (0) target = $region21
  $region20: #{lm_lstm_forward.3} parent=0 // pred_region
    _
  $region21: #{lm_lstm_forward.3} parent=0 // pred_fallthru
    _

// kernel: lm_lstm_forward.2
$region0: #{lm_lstm_forward.2}
  #allocation0 [shape = 'u32[]', space=smem, size = 0x4, offset = 0x4, fixed_abs, tag = 'smem constant byte address 0x4 - core index']
  #allocation1 [shape = 'u32[144,128]{1,0:T(1,128)}', space=vmem, size = 0x12000, scoped, tag = 'internal scratch']
  #allocation2 [shape = 'f32[8,8,512]{2,1,0:T(8,128)}', space=vmem, size = 0x20000, scoped, tag = 'scratch operand']
  #allocation3 [shape = 'f32[8,128]{1,0:T(8,128)}', space=vmem, size = 0x1000, scoped, tag = 'scratch operand']
  #allocation4 [shape = 'f32[8,128]{1,0:T(8,128)}', space=vmem, size = 0x1000, scoped, tag = 'scratch operand']
  %s0 = inlined_call_operand.vmem [shape: f32[8,8,16], index: 0, kind: input, shape index: {}]
  %s1 = inlined_call_operand.vmem [shape: f32[16,512], index: 1, kind: input, shape index: {}]
  %s2 = inlined_call_operand.vmem [shape: f32[1,512], index: 2, kind: input, shape index: {}]
  %s3 = inlined_call_operand.vmem [shape: f32[128,512], index: 3, kind: input, shape index: {}]
  %s4 = inlined_call_operand.vmem [shape: f32[8,8,128], index: 4, kind: output, shape index: {}]
  %s5 = sld [smem:[#allocation0]]
  $region30: #{lm_lstm_forward.2} parent=0
    _
  %s7 = ssub.s32 1, %s5
  %s8 = scalar_select 0, %s7, %s5
  // Predicated region
  $region2: #{lm_lstm_forward.2} parent=0 // pred_check
    _
  $region3: #{lm_lstm_forward.2} parent=0 // pred_check_branch
    %10 = sbr.rel (0) target = $region5
  $region4: #{lm_lstm_forward.2} parent=0 // pred_region
    _
  $region5: #{lm_lstm_forward.2} parent=0 // pred_fallthru
    _
  // Predicated region
  $region6: #{lm_lstm_forward.2} parent=0 // pred_check
    _
  $region7: #{lm_lstm_forward.2} parent=0 // pred_check_branch
    %12 = sbr.rel (0) target = $region9
  $region8: #{lm_lstm_forward.2} parent=0 // pred_region
    _
  $region9: #{lm_lstm_forward.2} parent=0 // pred_fallthru
    _
  // Predicated region
  $region10: #{lm_lstm_forward.2} parent=0 // pred_check
    _
  $region11: #{lm_lstm_forward.2} parent=0 // pred_check_branch
    %14 = sbr.rel (0) target = $region13
  $region12: #{lm_lstm_forward.2} parent=0 // pred_region
    _
  $region13: #{lm_lstm_forward.2} parent=0 // pred_fallthru
    _
  // Predicated region
  $region14: #{lm_lstm_forward.2} parent=0 // pred_check
    _
  $region15: #{lm_lstm_forward.2} parent=0 // pred_check_branch
    %16 = sbr.rel (0) target = $region17
  $region16: #{lm_lstm_forward.2} parent=0 // pred_region
    _
  $region17: #{lm_lstm_forward.2} parent=0 // pred_fallthru
    _
  %p17 = scmp.eq.s32.totalorder 0, 0
  // Predicated region
  $region18: #{lm_lstm_forward.2} parent=0 // pred_check
    %p18 = pneg %p17
  $region19: #{lm_lstm_forward.2} parent=0 // pred_check_branch
    %20 = sbr.rel (%p18) target = $region21
  $region20: #{lm_lstm_forward.2} parent=0 // pred_region
    %21 = vst [vmem:[#allocation3] sm:$0xff] 0.0
    %22 = vst [vmem:[#allocation4] sm:$0xff] 0.0
  $region21: #{lm_lstm_forward.2} parent=0 // pred_fallthru
    _
  %v23 = vld [vmem:[%s0] sm:$0xff]
  %v24 = vld [vmem:[%s0 + $0x8] sm:$0xff]
  %v25 = vld [vmem:[%s0 + $0x10] sm:$0xff]
  %v26 = vld [vmem:[%s0 + $0x18] sm:$0xff]
  %v27 = vld [vmem:[%s0 + $0x20] sm:$0xff]
  %v28 = vld [vmem:[%s0 + $0x28] sm:$0xff]
  %v29 = vld [vmem:[%s0 + $0x30] sm:$0xff]
  %v30 = vld [vmem:[%s0 + $0x38] sm:$0xff]
  %v31 = vld [vmem:[%s1] sm:$0xff]
  %v32 = vld [vmem:[%s1 + $0x8] sm:$0xff]
  %v33 = vld [vmem:[%s1 + $0x10] sm:$0xff]
  %v34 = vld [vmem:[%s1 + $0x18] sm:$0xff]
  %v35 = vld [vmem:[%s1 + $0x20] sm:$0xff]
  %v36 = vld [vmem:[%s1 + $0x28] sm:$0xff]
  %v37 = vld [vmem:[%s1 + $0x30] sm:$0xff]
  %v38 = vld [vmem:[%s1 + $0x38] sm:$0xff]
  %v39 = vld [vmem:[%s2] sm:$0xf]
  %v41 = vlaneseq
  %v42 = vshrl.u32 %v41, 7
  %v43 = vsub.s32 0, %v42
  %v44 = vrot.slane %v39, %v43
  %v45 = vlaneseq
  %v46 = vshrl.u32 %v45, 7
  %v47 = vsub.s32 1, %v46
  %v48 = vrot.slane %v39, %v47
  %v49 = vlaneseq
  %v50 = vshrl.u32 %v49, 7
  %v51 = vsub.s32 2, %v50
  %v52 = vrot.slane %v39, %v51
  %v53 = vlaneseq
  %v54 = vshrl.u32 %v53, 7
  %v55 = vsub.s32 3, %v54
  %v56 = vrot.slane %v39, %v55
  %vm61 = vcmask 130048
  %v63 = vsel %vm61, %v23, 0
  %v66 = vsel %vm61, %v24, 0
  %v69 = vsel %vm61, %v25, 0
  %v72 = vsel %vm61, %v26, 0
  %v75 = vsel %vm61, %v27, 0
  %v78 = vsel %vm61, %v28, 0
  %v81 = vsel %vm61, %v29, 0
  %v84 = vsel %vm61, %v30, 0
  %86 = vmatprep.subr.mxu0 %v32
  %87 = vmatpush1.msra.mxu0 %v31
  %88 = vmatprep.subr.mxu0 %v36
  %89 = vmatpush1.msra.mxu0 %v35
  %90 = vmatprep.subr.mxu0 0.0
  %91 = vmatpush1.msra.mxu0 0.0
  %92 = vmatprep.subr.mxu0 0.0
  %93 = vmatpush1.msra.mxu0 0.0
  %94 = vmatprep.subr.mxu0 0.0
  %95 = vmatpush1.msra.mxu0 0.0
  %96 = vmatprep.subr.mxu0 0.0
  %97 = vmatpush1.msra.mxu0 0.0
  %98 = vmatprep.subr.mxu0 0.0
  %99 = vmatpush1.msra.mxu0 0.0
  %100 = vmatprep.subr.mxu0 0.0
  %101 = vmatpush1.msra.mxu0 0.0
  %102 = vmatprep.subr.mxu0 0.0
  %103 = vmatpush1.msra.mxu0 0.0
  %104 = vmatprep.subr.mxu0 0.0
  %105 = vmatpush1.msra.mxu0 0.0
  %106 = vmatprep.subr.mxu0 0.0
  %107 = vmatpush1.msra.mxu0 0.0
  %108 = vmatprep.subr.mxu0 0.0
  %109 = vmatpush1.msra.mxu0 0.0
  %110 = vmatprep.subr.mxu0 0.0
  %111 = vmatpush1.msra.mxu0 0.0
  %112 = vmatprep.subr.mxu0 0.0
  %113 = vmatpush1.msra.mxu0 0.0
  %114 = vmatprep.subr.mxu0 0.0
  %115 = vmatpush1.msra.mxu0 0.0
  %116 = vmatprep.subr.mxu0 0.0
  %117 = vmatpush1.msra.mxu0 0.0
  %118 = vmatprep.subr.mxu0 0.0
  %119 = vmatpush1.msra.mxu0 0.0
  %120 = vmatprep.subr.mxu0 0.0
  %121 = vmatpush1.msra.mxu0 0.0
  %122 = vmatprep.subr.mxu0 0.0
  %123 = vmatpush1.msra.mxu0 0.0
  %124 = vmatprep.subr.mxu0 0.0
  %125 = vmatpush1.msra.mxu0 0.0
  %126 = vmatprep.subr.mxu0 0.0
  %127 = vmatpush1.msra.mxu0 0.0
  %128 = vmatprep.subr.mxu0 0.0
  %129 = vmatpush1.msra.mxu0 0.0
  %130 = vmatprep.subr.mxu0 0.0
  %131 = vmatpush1.msra.mxu0 0.0
  %132 = vmatprep.subr.mxu0 0.0
  %133 = vmatpush1.msra.mxu0 0.0
  %134 = vmatprep.subr.mxu0 0.0
  %135 = vmatpush1.msra.mxu0 0.0
  %136 = vmatprep.subr.mxu0 0.0
  %137 = vmatpush1.msra.mxu0 0.0
  %138 = vmatprep.subr.mxu0 0.0
  %139 = vmatpush1.msra.mxu0 0.0
  %140 = vmatprep.subr.mxu0 0.0
  %141 = vmatpush1.msra.mxu0 0.0
  %142 = vmatprep.subr.mxu0 0.0
  %143 = vmatpush1.msra.mxu0 0.0
  %144 = vmatprep.subr.mxu0 0.0
  %145 = vmatpush1.msra.mxu0 0.0
  %146 = vmatprep.subr.mxu0 0.0
  %147 = vmatpush1.msra.mxu0 0.0
  %148 = vmatprep.subr.mxu0 0.0
  %149 = vmatpush1.msra.mxu0 0.0
  %150 = vmatprep.mubr.f32.mxu0 0.0
  %151 = vmatmul.mubr.f32.gmra.mrb[0].mxu0 %v63
  %v152 = vpop.f32.mrb[0].mxu0
  %v153 = vadd.f32 %v44, %v152
  %v154 = vpop.f32.mrb[0].mxu0
  %v155 = vadd.f32 %v48, %v154
  %156 = vmatprep.mubr.f32.mxu0 0.0
  %157 = vmatmul.mubr.f32.gmra.mrb[0].mxu0 %v66
  %v158 = vpop.f32.mrb[0].mxu0
  %v159 = vadd.f32 %v44, %v158
  %v160 = vpop.f32.mrb[0].mxu0
  %v161 = vadd.f32 %v48, %v160
  %162 = vmatprep.mubr.f32.mxu0 0.0
  %163 = vmatmul.mubr.f32.gmra.mrb[0].mxu0 %v69
  %v164 = vpop.f32.mrb[0].mxu0
  %v165 = vadd.f32 %v44, %v164
  %v166 = vpop.f32.mrb[0].mxu0
  %v167 = vadd.f32 %v48, %v166
  %168 = vmatprep.mubr.f32.mxu0 0.0
  %169 = vmatmul.mubr.f32.gmra.mrb[0].mxu0 %v72
  %v170 = vpop.f32.mrb[0].mxu0
  %v171 = vadd.f32 %v44, %v170
  %v172 = vpop.f32.mrb[0].mxu0
  %v173 = vadd.f32 %v48, %v172
  %174 = vmatprep.mubr.f32.mxu0 0.0
  %175 = vmatmul.mubr.f32.gmra.mrb[0].mxu0 %v75
  %v176 = vpop.f32.mrb[0].mxu0
  %v177 = vadd.f32 %v44, %v176
  %v178 = vpop.f32.mrb[0].mxu0
  %v179 = vadd.f32 %v48, %v178
  %180 = vmatprep.mubr.f32.mxu0 0.0
  %181 = vmatmul.mubr.f32.gmra.mrb[0].mxu0 %v78
  %v182 = vpop.f32.mrb[0].mxu0
  %v183 = vadd.f32 %v44, %v182
  %v184 = vpop.f32.mrb[0].mxu0
  %v185 = vadd.f32 %v48, %v184
  %186 = vmatprep.mubr.f32.mxu0 0.0
  %187 = vmatmul.mubr.f32.gmra.mrb[0].mxu0 %v81
  %v188 = vpop.f32.mrb[0].mxu0
  %v189 = vadd.f32 %v44, %v188
  %v190 = vpop.f32.mrb[0].mxu0
  %v191 = vadd.f32 %v48, %v190
  %192 = vmatprep.mubr.f32.mxu0 0.0
  %193 = vmatmul.mubr.f32.gmra.mrb[0].mxu0 %v84
  %v194 = vpop.f32.mrb[0].mxu0
  %v195 = vadd.f32 %v44, %v194
  %v196 = vpop.f32.mrb[0].mxu0
  %v197 = vadd.f32 %v48, %v196
  %198 = vdwg.mxu0
  %199 = vmatprep.subr.mxu0 %v34
  %200 = vmatpush1.msra.mxu0 %v33
  %201 = vmatprep.subr.mxu0 %v38
  %202 = vmatpush1.msra.mxu0 %v37
  %203 = vmatprep.subr.mxu0 0.0
  %204 = vmatpush1.msra.mxu0 0.0
  %205 = vmatprep.subr.mxu0 0.0
  %206 = vmatpush1.msra.mxu0 0.0
  %207 = vmatprep.subr.mxu0 0.0
  %208 = vmatpush1.msra.mxu0 0.0
  %209 = vmatprep.subr.mxu0 0.0
  %210 = vmatpush1.msra.mxu0 0.0
  %211 = vmatprep.subr.mxu0 0.0
  %212 = vmatpush1.msra.mxu0 0.0
  %213 = vmatprep.subr.mxu0 0.0
  %214 = vmatpush1.msra.mxu0 0.0
  %215 = vmatprep.subr.mxu0 0.0
  %216 = vmatpush1.msra.mxu0 0.0
  %217 = vmatprep.subr.mxu0 0.0
  %218 = vmatpush1.msra.mxu0 0.0
  %219 = vmatprep.subr.mxu0 0.0
  %220 = vmatpush1.msra.mxu0 0.0
  %221 = vmatprep.subr.mxu0 0.0
  %222 = vmatpush1.msra.mxu0 0.0
  %223 = vmatprep.subr.mxu0 0.0
  %224 = vmatpush1.msra.mxu0 0.0
  %225 = vmatprep.subr.mxu0 0.0
  %226 = vmatpush1.msra.mxu0 0.0
  %227 = vmatprep.subr.mxu0 0.0
  %228 = vmatpush1.msra.mxu0 0.0
  %229 = vmatprep.subr.mxu0 0.0
  %230 = vmatpush1.msra.mxu0 0.0
  %231 = vmatprep.subr.mxu0 0.0
  %232 = vmatpush1.msra.mxu0 0.0
  %233 = vmatprep.subr.mxu0 0.0
  %234 = vmatpush1.msra.mxu0 0.0
  %235 = vmatprep.subr.mxu0 0.0
  %236 = vmatpush1.msra.mxu0 0.0
  %237 = vmatprep.subr.mxu0 0.0
  %238 = vmatpush1.msra.mxu0 0.0
  %239 = vmatprep.subr.mxu0 0.0
  %240 = vmatpush1.msra.mxu0 0.0
  %241 = vmatprep.subr.mxu0 0.0
  %242 = vmatpush1.msra.mxu0 0.0
  %243 = vmatprep.subr.mxu0 0.0
  %244 = vmatpush1.msra.mxu0 0.0
  %245 = vmatprep.subr.mxu0 0.0
  %246 = vmatpush1.msra.mxu0 0.0
  %247 = vmatprep.subr.mxu0 0.0
  %248 = vmatpush1.msra.mxu0 0.0
  %249 = vmatprep.subr.mxu0 0.0
  %250 = vmatpush1.msra.mxu0 0.0
  %251 = vmatprep.subr.mxu0 0.0
  %252 = vmatpush1.msra.mxu0 0.0
  %253 = vmatprep.subr.mxu0 0.0
  %254 = vmatpush1.msra.mxu0 0.0
  %255 = vmatprep.subr.mxu0 0.0
  %256 = vmatpush1.msra.mxu0 0.0
  %257 = vmatprep.subr.mxu0 0.0
  %258 = vmatpush1.msra.mxu0 0.0
  %259 = vmatprep.subr.mxu0 0.0
  %260 = vmatpush1.msra.mxu0 0.0
  %261 = vmatprep.subr.mxu0 0.0
  %262 = vmatpush1.msra.mxu0 0.0
  %263 = vmatprep.mubr.f32.mxu0 0.0
  %264 = vmatmul.mubr.f32.gmra.mrb[0].mxu0 %v63
  %v265 = vpop.f32.mrb[0].mxu0
  %v266 = vadd.f32 %v52, %v265
  %v267 = vpop.f32.mrb[0].mxu0
  %v268 = vadd.f32 %v56, %v267
  %269 = vmatprep.mubr.f32.mxu0 0.0
  %270 = vmatmul.mubr.f32.gmra.mrb[0].mxu0 %v66
  %v271 = vpop.f32.mrb[0].mxu0
  %v272 = vadd.f32 %v52, %v271
  %v273 = vpop.f32.mrb[0].mxu0
  %v274 = vadd.f32 %v56, %v273
  %275 = vmatprep.mubr.f32.mxu0 0.0
  %276 = vmatmul.mubr.f32.gmra.mrb[0].mxu0 %v69
  %v277 = vpop.f32.mrb[0].mxu0
  %v278 = vadd.f32 %v52, %v277
  %v279 = vpop.f32.mrb[0].mxu0
  %v280 = vadd.f32 %v56, %v279
  %281 = vmatprep.mubr.f32.mxu0 0.0
  %282 = vmatmul.mubr.f32.gmra.mrb[0].mxu0 %v72
  %v283 = vpop.f32.mrb[0].mxu0
  %v284 = vadd.f32 %v52, %v283
  %v285 = vpop.f32.mrb[0].mxu0
  %v286 = vadd.f32 %v56, %v285
  %287 = vmatprep.mubr.f32.mxu0 0.0
  %288 = vmatmul.mubr.f32.gmra.mrb[0].mxu0 %v75
  %v289 = vpop.f32.mrb[0].mxu0
  %v290 = vadd.f32 %v52, %v289
  %v291 = vpop.f32.mrb[0].mxu0
  %v292 = vadd.f32 %v56, %v291
  %293 = vmatprep.mubr.f32.mxu0 0.0
  %294 = vmatmul.mubr.f32.gmra.mrb[0].mxu0 %v78
  %v295 = vpop.f32.mrb[0].mxu0
  %v296 = vadd.f32 %v52, %v295
  %v297 = vpop.f32.mrb[0].mxu0
  %v298 = vadd.f32 %v56, %v297
  %299 = vmatprep.mubr.f32.mxu0 0.0
  %300 = vmatmul.mubr.f32.gmra.mrb[0].mxu0 %v81
  %v301 = vpop.f32.mrb[0].mxu0
  %v302 = vadd.f32 %v52, %v301
  %v303 = vpop.f32.mrb[0].mxu0
  %v304 = vadd.f32 %v56, %v303
  %305 = vmatprep.mubr.f32.mxu0 0.0
  %306 = vmatmul.mubr.f32.gmra.mrb[0].mxu0 %v84
  %v307 = vpop.f32.mrb[0].mxu0
  %v308 = vadd.f32 %v52, %v307
  %v309 = vpop.f32.mrb[0].mxu0
  %v310 = vadd.f32 %v56, %v309
  %311 = vdwg.mxu0
  %312 = vst [vmem:[#allocation2] sm:$0xff] %v153
  %313 = vst [vmem:[#allocation2 + $0x8] sm:$0xff] %v155
  %314 = vst [vmem:[#allocation2 + $0x10] sm:$0xff] %v266
  %315 = vst [vmem:[#allocation2 + $0x18] sm:$0xff] %v268
  %316 = vst [vmem:[#allocation2 + $0x20] sm:$0xff] %v159
  %317 = vst [vmem:[#allocation2 + $0x28] sm:$0xff] %v161
  %318 = vst [vmem:[#allocation2 + $0x30] sm:$0xff] %v272
  %319 = vst [vmem:[#allocation2 + $0x38] sm:$0xff] %v274
  %320 = vst [vmem:[#allocation2 + $0x40] sm:$0xff] %v165
  %321 = vst [vmem:[#allocation2 + $0x48] sm:$0xff] %v167
  %322 = vst [vmem:[#allocation2 + $0x50] sm:$0xff] %v278
  %323 = vst [vmem:[#allocation2 + $0x58] sm:$0xff] %v280
  %324 = vst [vmem:[#allocation2 + $0x60] sm:$0xff] %v171
  %325 = vst [vmem:[#allocation2 + $0x68] sm:$0xff] %v173
  %326 = vst [vmem:[#allocation2 + $0x70] sm:$0xff] %v284
  %327 = vst [vmem:[#allocation2 + $0x78] sm:$0xff] %v286
  %328 = vst [vmem:[#allocation2 + $0x80] sm:$0xff] %v177
  %329 = vst [vmem:[#allocation2 + $0x88] sm:$0xff] %v179
  %330 = vst [vmem:[#allocation2 + $0x90] sm:$0xff] %v290
  %331 = vst [vmem:[#allocation2 + $0x98] sm:$0xff] %v292
  %332 = vst [vmem:[#allocation2 + $0xa0] sm:$0xff] %v183
  %333 = vst [vmem:[#allocation2 + $0xa8] sm:$0xff] %v185
  %334 = vst [vmem:[#allocation2 + $0xb0] sm:$0xff] %v296
  %335 = vst [vmem:[#allocation2 + $0xb8] sm:$0xff] %v298
  %336 = vst [vmem:[#allocation2 + $0xc0] sm:$0xff] %v189
  %337 = vst [vmem:[#allocation2 + $0xc8] sm:$0xff] %v191
  %338 = vst [vmem:[#allocation2 + $0xd0] sm:$0xff] %v302
  %339 = vst [vmem:[#allocation2 + $0xd8] sm:$0xff] %v304
  %340 = vst [vmem:[#allocation2 + $0xe0] sm:$0xff] %v195
  %341 = vst [vmem:[#allocation2 + $0xe8] sm:$0xff] %v197
  %342 = vst [vmem:[#allocation2 + $0xf0] sm:$0xff] %v308
  %343 = vst [vmem:[#allocation2 + $0xf8] sm:$0xff] %v310
  %v344 = vld [vmem:[#allocation3] sm:$0xff]
  %v345 = vld [vmem:[#allocation4] sm:$0xff]
  %v346 = vld [vmem:[#allocation2] sm:$0xff]
  %v347 = vld [vmem:[#allocation2 + $0x8] sm:$0xff]
  %v348 = vld [vmem:[#allocation2 + $0x10] sm:$0xff]
  %v349 = vld [vmem:[#allocation2 + $0x18] sm:$0xff]
  %v350 = vld [vmem:[%s3] sm:$0xff]
  %v351 = vld [vmem:[%s3 + $0x8] sm:$0xff]
  %v352 = vld [vmem:[%s3 + $0x10] sm:$0xff]
  %v353 = vld [vmem:[%s3 + $0x18] sm:$0xff]
  %v354 = vld [vmem:[%s3 + $0x20] sm:$0xff]
  %v355 = vld [vmem:[%s3 + $0x28] sm:$0xff]
  %v356 = vld [vmem:[%s3 + $0x30] sm:$0xff]
  %v357 = vld [vmem:[%s3 + $0x38] sm:$0xff]
  %v358 = vld [vmem:[%s3 + $0x40] sm:$0xff]
  %v359 = vld [vmem:[%s3 + $0x48] sm:$0xff]
  %v360 = vld [vmem:[%s3 + $0x50] sm:$0xff]
  %v361 = vld [vmem:[%s3 + $0x58] sm:$0xff]
  %v362 = vld [vmem:[%s3 + $0x60] sm:$0xff]
  %v363 = vld [vmem:[%s3 + $0x68] sm:$0xff]
  %v364 = vld [vmem:[%s3 + $0x70] sm:$0xff]
  %v365 = vld [vmem:[%s3 + $0x78] sm:$0xff]
  %v366 = vld [vmem:[%s3 + $0x80] sm:$0xff]
  %v367 = vld [vmem:[%s3 + $0x88] sm:$0xff]
  %v368 = vld [vmem:[%s3 + $0x90] sm:$0xff]
  %v369 = vld [vmem:[%s3 + $0x98] sm:$0xff]
  %v370 = vld [vmem:[%s3 + $0xa0] sm:$0xff]
  %v371 = vld [vmem:[%s3 + $0xa8] sm:$0xff]
  %v372 = vld [vmem:[%s3 + $0xb0] sm:$0xff]
  %v373 = vld [vmem:[%s3 + $0xb8] sm:$0xff]
  %v374 = vld [vmem:[%s3 + $0xc0] sm:$0xff]
  %v375 = vld [vmem:[%s3 + $0xc8] sm:$0xff]
  %v376 = vld [vmem:[%s3 + $0xd0] sm:$0xff]
  %v377 = vld [vmem:[%s3 + $0xd8] sm:$0xff]
  %v378 = vld [vmem:[%s3 + $0xe0] sm:$0xff]
  %v379 = vld [vmem:[%s3 + $0xe8] sm:$0xff]
  %v380 = vld [vmem:[%s3 + $0xf0] sm:$0xff]
  %v381 = vld [vmem:[%s3 + $0xf8] sm:$0xff]
  %v382 = vld [vmem:[%s3 + $0x100] sm:$0xff]
  %v383 = vld [vmem:[%s3 + $0x108] sm:$0xff]
  %v384 = vld [vmem:[%s3 + $0x110] sm:$0xff]
  %v385 = vld [vmem:[%s3 + $0x118] sm:$0xff]
  %v386 = vld [vmem:[%s3 + $0x120] sm:$0xff]
  %v387 = vld [vmem:[%s3 + $0x128] sm:$0xff]
  %v388 = vld [vmem:[%s3 + $0x130] sm:$0xff]
  %v389 = vld [vmem:[%s3 + $0x138] sm:$0xff]
  %v390 = vld [vmem:[%s3 + $0x140] sm:$0xff]
  %v391 = vld [vmem:[%s3 + $0x148] sm:$0xff]
  %v392 = vld [vmem:[%s3 + $0x150] sm:$0xff]
  %v393 = vld [vmem:[%s3 + $0x158] sm:$0xff]
  %v394 = vld [vmem:[%s3 + $0x160] sm:$0xff]
  %v395 = vld [vmem:[%s3 + $0x168] sm:$0xff]
  %v396 = vld [vmem:[%s3 + $0x170] sm:$0xff]
  %v397 = vld [vmem:[%s3 + $0x178] sm:$0xff]
  %v398 = vld [vmem:[%s3 + $0x180] sm:$0xff]
  %v399 = vld [vmem:[%s3 + $0x188] sm:$0xff]
  %v400 = vld [vmem:[%s3 + $0x190] sm:$0xff]
  %v401 = vld [vmem:[%s3 + $0x198] sm:$0xff]
  %v402 = vld [vmem:[%s3 + $0x1a0] sm:$0xff]
  %v403 = vld [vmem:[%s3 + $0x1a8] sm:$0xff]
  %v404 = vld [vmem:[%s3 + $0x1b0] sm:$0xff]
  %v405 = vld [vmem:[%s3 + $0x1b8] sm:$0xff]
  %v406 = vld [vmem:[%s3 + $0x1c0] sm:$0xff]
  %v407 = vld [vmem:[%s3 + $0x1c8] sm:$0xff]
  %v408 = vld [vmem:[%s3 + $0x1d0] sm:$0xff]
  %v409 = vld [vmem:[%s3 + $0x1d8] sm:$0xff]
  %v410 = vld [vmem:[%s3 + $0x1e0] sm:$0xff]
  %v411 = vld [vmem:[%s3 + $0x1e8] sm:$0xff]
  %v412 = vld [vmem:[%s3 + $0x1f0] sm:$0xff]
  %v413 = vld [vmem:[%s3 + $0x1f8] sm:$0xff]
  %414 = vmatprep.subr.mxu0 %v351
  %415 = vmatpush1.msra.mxu0 %v350
  %416 = vmatprep.subr.mxu0 %v355
  %417 = vmatpush1.msra.mxu0 %v354
  %418 = vmatprep.subr.mxu0 %v359
  %419 = vmatpush1.msra.mxu0 %v358
  %420 = vmatprep.subr.mxu0 %v363
  %421 = vmatpush1.msra.mxu0 %v362
  %422 = vmatprep.subr.mxu0 %v367
  %423 = vmatpush1.msra.mxu0 %v366
  %424 = vmatprep.subr.mxu0 %v371
  %425 = vmatpush1.msra.mxu0 %v370
  %426 = vmatprep.subr.mxu0 %v375
  %427 = vmatpush1.msra.mxu0 %v374
  %428 = vmatprep.subr.mxu0 %v379
  %429 = vmatpush1.msra.mxu0 %v378
  %430 = vmatprep.subr.mxu0 %v383
  %431 = vmatpush1.msra.mxu0 %v382
  %432 = vmatprep.subr.mxu0 %v387
  %433 = vmatpush1.msra.mxu0 %v386
  %434 = vmatprep.subr.mxu0 %v391
  %435 = vmatpush1.msra.mxu0 %v390
  %436 = vmatprep.subr.mxu0 %v395
  %437 = vmatpush1.msra.mxu0 %v394
  %438 = vmatprep.subr.mxu0 %v399
  %439 = vmatpush1.msra.mxu0 %v398
  %440 = vmatprep.subr.mxu0 %v403
  %441 = vmatpush1.msra.mxu0 %v402
  %442 = vmatprep.subr.mxu0 %v407
  %443 = vmatpush1.msra.mxu0 %v406
  %444 = vmatprep.subr.mxu0 %v411
  %445 = vmatpush1.msra.mxu0 %v410
  %446 = vmatprep.subr.mxu0 0.0
  %447 = vmatpush1.msra.mxu0 0.0
  %448 = vmatprep.subr.mxu0 0.0
  %449 = vmatpush1.msra.mxu0 0.0
  %450 = vmatprep.subr.mxu0 0.0
  %451 = vmatpush1.msra.mxu0 0.0
  %452 = vmatprep.subr.mxu0 0.0
  %453 = vmatpush1.msra.mxu0 0.0
  %454 = vmatprep.subr.mxu0 0.0
  %455 = vmatpush1.msra.mxu0 0.0
  %456 = vmatprep.subr.mxu0 0.0
  %457 = vmatpush1.msra.mxu0 0.0
  %458 = vmatprep.subr.mxu0 0.0
  %459 = vmatpush1.msra.mxu0 0.0
  %460 = vmatprep.subr.mxu0 0.0
  %461 = vmatpush1.msra.mxu0 0.0
  %462 = vmatprep.subr.mxu0 0.0
  %463 = vmatpush1.msra.mxu0 0.0
  %464 = vmatprep.subr.mxu0 0.0
  %465 = vmatpush1.msra.mxu0 0.0
  %466 = vmatprep.subr.mxu0 0.0
  %467 = vmatpush1.msra.mxu0 0.0
  %468 = vmatprep.subr.mxu0 0.0
  %469 = vmatpush1.msra.mxu0 0.0
  %470 = vmatprep.subr.mxu0 0.0
  %471 = vmatpush1.msra.mxu0 0.0
  %472 = vmatprep.subr.mxu0 0.0
  %473 = vmatpush1.msra.mxu0 0.0
  %474 = vmatprep.subr.mxu0 0.0
  %475 = vmatpush1.msra.mxu0 0.0
  %476 = vmatprep.subr.mxu0 0.0
  %477 = vmatpush1.msra.mxu0 0.0
  %478 = vmatprep.mubr.f32.mxu0 0.0
  %479 = vmatmul.mubr.f32.gmra.mrb[0].mxu0 %v344
  %v480 = vpop.f32.mrb[0].mxu0
  %v481 = vadd.f32 0.0, %v480
  %v482 = vpop.f32.mrb[0].mxu0
  %v483 = vadd.f32 0.0, %v482
  %484 = vdwg.mxu0
  %485 = vmatprep.subr.mxu0 %v353
  %486 = vmatpush1.msra.mxu0 %v352
  %487 = vmatprep.subr.mxu0 %v357
  %488 = vmatpush1.msra.mxu0 %v356
  %489 = vmatprep.subr.mxu0 %v361
  %490 = vmatpush1.msra.mxu0 %v360
  %491 = vmatprep.subr.mxu0 %v365
  %492 = vmatpush1.msra.mxu0 %v364
  %493 = vmatprep.subr.mxu0 %v369
  %494 = vmatpush1.msra.mxu0 %v368
  %495 = vmatprep.subr.mxu0 %v373
  %496 = vmatpush1.msra.mxu0 %v372
  %497 = vmatprep.subr.mxu0 %v377
  %498 = vmatpush1.msra.mxu0 %v376
  %499 = vmatprep.subr.mxu0 %v381
  %500 = vmatpush1.msra.mxu0 %v380
  %501 = vmatprep.subr.mxu0 %v385
  %502 = vmatpush1.msra.mxu0 %v384
  %503 = vmatprep.subr.mxu0 %v389
  %504 = vmatpush1.msra.mxu0 %v388
  %505 = vmatprep.subr.mxu0 %v393
  %506 = vmatpush1.msra.mxu0 %v392
  %507 = vmatprep.subr.mxu0 %v397
  %508 = vmatpush1.msra.mxu0 %v396
  %509 = vmatprep.subr.mxu0 %v401
  %510 = vmatpush1.msra.mxu0 %v400
  %511 = vmatprep.subr.mxu0 %v405
  %512 = vmatpush1.msra.mxu0 %v404
  %513 = vmatprep.subr.mxu0 %v409
  %514 = vmatpush1.msra.mxu0 %v408
  %515 = vmatprep.subr.mxu0 %v413
  %516 = vmatpush1.msra.mxu0 %v412
  %517 = vmatprep.subr.mxu0 0.0
  %518 = vmatpush1.msra.mxu0 0.0
  %519 = vmatprep.subr.mxu0 0.0
  %520 = vmatpush1.msra.mxu0 0.0
  %521 = vmatprep.subr.mxu0 0.0
  %522 = vmatpush1.msra.mxu0 0.0
  %523 = vmatprep.subr.mxu0 0.0
  %524 = vmatpush1.msra.mxu0 0.0
  %525 = vmatprep.subr.mxu0 0.0
  %526 = vmatpush1.msra.mxu0 0.0
  %527 = vmatprep.subr.mxu0 0.0
  %528 = vmatpush1.msra.mxu0 0.0
  %529 = vmatprep.subr.mxu0 0.0
  %530 = vmatpush1.msra.mxu0 0.0
  %531 = vmatprep.subr.mxu0 0.0
  %532 = vmatpush1.msra.mxu0 0.0
  %533 = vmatprep.subr.mxu0 0.0
  %534 = vmatpush1.msra.mxu0 0.0
  %535 = vmatprep.subr.mxu0 0.0
  %536 = vmatpush1.msra.mxu0 0.0
  %537 = vmatprep.subr.mxu0 0.0
  %538 = vmatpush1.msra.mxu0 0.0
  %539 = vmatprep.subr.mxu0 0.0
  %540 = vmatpush1.msra.mxu0 0.0
  %541 = vmatprep.subr.mxu0 0.0
  %542 = vmatpush1.msra.mxu0 0.0
  %543 = vmatprep.subr.mxu0 0.0
  %544 = vmatpush1.msra.mxu0 0.0
  %545 = vmatprep.subr.mxu0 0.0
  %546 = vmatpush1.msra.mxu0 0.0
  %547 = vmatprep.subr.mxu0 0.0
  %548 = vmatpush1.msra.mxu0 0.0
  %549 = vmatprep.mubr.f32.mxu0 0.0
  %550 = vmatmul.mubr.f32.gmra.mrb[0].mxu0 %v344
  %v551 = vpop.f32.mrb[0].mxu0
  %v552 = vadd.f32 0.0, %v551
  %v553 = vpop.f32.mrb[0].mxu0
  %v554 = vadd.f32 0.0, %v553
  %555 = vdwg.mxu0
  %v556 = vadd.f32 %v346, %v481
  %v557 = vadd.f32 %v347, %v483
  %v558 = vadd.f32 %v348, %v552
  %v559 = vadd.f32 %v349, %v554
  %v560 = vxor.u32 %v556, 2147483648
  %v561 = vmul.f32 %v560, 1.442695
  %v562 = vpow.pop %v561
  %v563 = vadd.f32 %v562, 1.0
  %v564 = vrcp.pop %v563
  %v565 = vmul.f32 1.0, %v564
  %v566 = vxor.u32 %v557, 2147483648
  %v567 = vmul.f32 %v566, 1.442695
  %v568 = vpow.pop %v567
  %v569 = vadd.f32 %v568, 1.0
  %v570 = vrcp.pop %v569
  %v571 = vmul.f32 1.0, %v570
  %v572 = vtanh.pop %v558
  %v573 = vxor.u32 %v559, 2147483648
  %v574 = vmul.f32 %v573, 1.442695
  %v575 = vpow.pop %v574
  %v576 = vadd.f32 %v575, 1.0
  %v577 = vrcp.pop %v576
  %v578 = vmul.f32 1.0, %v577
  %v579 = vmul.f32 %v571, %v345
  %v580 = vmul.f32 %v565, %v572
  %v581 = vadd.f32 %v579, %v580
  %v582 = vtanh.pop %v581
  %v583 = vmul.f32 %v578, %v582
  %584 = vst [vmem:[%s4] sm:$0xff] %v583
  %s585 = scalar_lea.vmem [#allocation2], 32
  %v586 = vld [vmem:[%s585] sm:$0xff]
  %v587 = vld [vmem:[%s585 + $0x8] sm:$0xff]
  %v588 = vld [vmem:[%s585 + $0x10] sm:$0xff]
  %v589 = vld [vmem:[%s585 + $0x18] sm:$0xff]
  %v590 = vld [vmem:[%s3] sm:$0xff]
  %v591 = vld [vmem:[%s3 + $0x8] sm:$0xff]
  %v592 = vld [vmem:[%s3 + $0x10] sm:$0xff]
  %v593 = vld [vmem:[%s3 + $0x18] sm:$0xff]
  %v594 = vld [vmem:[%s3 + $0x20] sm:$0xff]
  %v595 = vld [vmem:[%s3 + $0x28] sm:$0xff]
  %v596 = vld [vmem:[%s3 + $0x30] sm:$0xff]
  %v597 = vld [vmem:[%s3 + $0x38] sm:$0xff]
  %v598 = vld [vmem:[%s3 + $0x40] sm:$0xff]
  %v599 = vld [vmem:[%s3 + $0x48] sm:$0xff]
  %v600 = vld [vmem:[%s3 + $0x50] sm:$0xff]
  %v601 = vld [vmem:[%s3 + $0x58] sm:$0xff]
  %v602 = vld [vmem:[%s3 + $0x60] sm:$0xff]
  %v603 = vld [vmem:[%s3 + $0x68] sm:$0xff]
  %v604 = vld [vmem:[%s3 + $0x70] sm:$0xff]
  %v605 = vld [vmem:[%s3 + $0x78] sm:$0xff]
  %v606 = vld [vmem:[%s3 + $0x80] sm:$0xff]
  %v607 = vld [vmem:[%s3 + $0x88] sm:$0xff]
  %v608 = vld [vmem:[%s3 + $0x90] sm:$0xff]
  %v609 = vld [vmem:[%s3 + $0x98] sm:$0xff]
  %v610 = vld [vmem:[%s3 + $0xa0] sm:$0xff]
  %v611 = vld [vmem:[%s3 + $0xa8] sm:$0xff]
  %v612 = vld [vmem:[%s3 + $0xb0] sm:$0xff]
  %v613 = vld [vmem:[%s3 + $0xb8] sm:$0xff]
  %v614 = vld [vmem:[%s3 + $0xc0] sm:$0xff]
  %v615 = vld [vmem:[%s3 + $0xc8] sm:$0xff]
  %v616 = vld [vmem:[%s3 + $0xd0] sm:$0xff]
  %v617 = vld [vmem:[%s3 + $0xd8] sm:$0xff]
  %v618 = vld [vmem:[%s3 + $0xe0] sm:$0xff]
  %v619 = vld [vmem:[%s3 + $0xe8] sm:$0xff]
  %v620 = vld [vmem:[%s3 + $0xf0] sm:$0xff]
  %v621 = vld [vmem:[%s3 + $0xf8] sm:$0xff]
  %v622 = vld [vmem:[%s3 + $0x100] sm:$0xff]
  %v623 = vld [vmem:[%s3 + $0x108] sm:$0xff]
  %v624 = vld [vmem:[%s3 + $0x110] sm:$0xff]
  %v625 = vld [vmem:[%s3 + $0x118] sm:$0xff]
  %v626 = vld [vmem:[%s3 + $0x120] sm:$0xff]
  %v627 = vld [vmem:[%s3 + $0x128] sm:$0xff]
  %v628 = vld [vmem:[%s3 + $0x130] sm:$0xff]
  %v629 = vld [vmem:[%s3 + $0x138] sm:$0xff]
  %v630 = vld [vmem:[%s3 + $0x140] sm:$0xff]
  %v631 = vld [vmem:[%s3 + $0x148] sm:$0xff]
  %v632 = vld [vmem:[%s3 + $0x150] sm:$0xff]
  %v633 = vld [vmem:[%s3 + $0x158] sm:$0xff]
  %v634 = vld [vmem:[%s3 + $0x160] sm:$0xff]
  %v635 = vld [vmem:[%s3 + $0x168] sm:$0xff]
  %v636 = vld [vmem:[%s3 + $0x170] sm:$0xff]
  %v637 = vld [vmem:[%s3 + $0x178] sm:$0xff]
  %v638 = vld [vmem:[%s3 + $0x180] sm:$0xff]
  %v639 = vld [vmem:[%s3 + $0x188] sm:$0xff]
  %v640 = vld [vmem:[%s3 + $0x190] sm:$0xff]
  %v641 = vld [vmem:[%s3 + $0x198] sm:$0xff]
  %v642 = vld [vmem:[%s3 + $0x1a0] sm:$0xff]
  %v643 = vld [vmem:[%s3 + $0x1a8] sm:$0xff]
  %v644 = vld [vmem:[%s3 + $0x1b0] sm:$0xff]
  %v645 = vld [vmem:[%s3 + $0x1b8] sm:$0xff]
  %v646 = vld [vmem:[%s3 + $0x1c0] sm:$0xff]
  %v647 = vld [vmem:[%s3 + $0x1c8] sm:$0xff]
  %v648 = vld [vmem:[%s3 + $0x1d0] sm:$0xff]
  %v649 = vld [vmem:[%s3 + $0x1d8] sm:$0xff]
  %v650 = vld [vmem:[%s3 + $0x1e0] sm:$0xff]
  %v651 = vld [vmem:[%s3 + $0x1e8] sm:$0xff]
  %v652 = vld [vmem:[%s3 + $0x1f0] sm:$0xff]
  %v653 = vld [vmem:[%s3 + $0x1f8] sm:$0xff]
  %654 = vmatprep.subr.mxu0 %v591
  %655 = vmatpush1.msra.mxu0 %v590
  %656 = vmatprep.subr.mxu0 %v595
  %657 = vmatpush1.msra.mxu0 %v594
  %658 = vmatprep.subr.mxu0 %v599
  %659 = vmatpush1.msra.mxu0 %v598
  %660 = vmatprep.subr.mxu0 %v603
  %661 = vmatpush1.msra.mxu0 %v602
  %662 = vmatprep.subr.mxu0 %v607
  %663 = vmatpush1.msra.mxu0 %v606
  %664 = vmatprep.subr.mxu0 %v611
  %665 = vmatpush1.msra.mxu0 %v610
  %666 = vmatprep.subr.mxu0 %v615
  %667 = vmatpush1.msra.mxu0 %v614
  %668 = vmatprep.subr.mxu0 %v619
  %669 = vmatpush1.msra.mxu0 %v618
  %670 = vmatprep.subr.mxu0 %v623
  %671 = vmatpush1.msra.mxu0 %v622
  %672 = vmatprep.subr.mxu0 %v627
  %673 = vmatpush1.msra.mxu0 %v626
  %674 = vmatprep.subr.mxu0 %v631
  %675 = vmatpush1.msra.mxu0 %v630
  %676 = vmatprep.subr.mxu0 %v635
  %677 = vmatpush1.msra.mxu0 %v634
  %678 = vmatprep.subr.mxu0 %v639
  %679 = vmatpush1.msra.mxu0 %v638
  %680 = vmatprep.subr.mxu0 %v643
  %681 = vmatpush1.msra.mxu0 %v642
  %682 = vmatprep.subr.mxu0 %v647
  %683 = vmatpush1.msra.mxu0 %v646
  %684 = vmatprep.subr.mxu0 %v651
  %685 = vmatpush1.msra.mxu0 %v650
  %686 = vmatprep.subr.mxu0 0.0
  %687 = vmatpush1.msra.mxu0 0.0
  %688 = vmatprep.subr.mxu0 0.0
  %689 = vmatpush1.msra.mxu0 0.0
  %690 = vmatprep.subr.mxu0 0.0
  %691 = vmatpush1.msra.mxu0 0.0
  %692 = vmatprep.subr.mxu0 0.0
  %693 = vmatpush1.msra.mxu0 0.0
  %694 = vmatprep.subr.mxu0 0.0
  %695 = vmatpush1.msra.mxu0 0.0
  %696 = vmatprep.subr.mxu0 0.0
  %697 = vmatpush1.msra.mxu0 0.0
  %698 = vmatprep.subr.mxu0 0.0
  %699 = vmatpush1.msra.mxu0 0.0
  %700 = vmatprep.subr.mxu0 0.0
  %701 = vmatpush1.msra.mxu0 0.0
  %702 = vmatprep.subr.mxu0 0.0
  %703 = vmatpush1.msra.mxu0 0.0
  %704 = vmatprep.subr.mxu0 0.0
  %705 = vmatpush1.msra.mxu0 0.0
  %706 = vmatprep.subr.mxu0 0.0
  %707 = vmatpush1.msra.mxu0 0.0
  %708 = vmatprep.subr.mxu0 0.0
  %709 = vmatpush1.msra.mxu0 0.0
  %710 = vmatprep.subr.mxu0 0.0
  %711 = vmatpush1.msra.mxu0 0.0
  %712 = vmatprep.subr.mxu0 0.0
  %713 = vmatpush1.msra.mxu0 0.0
  %714 = vmatprep.subr.mxu0 0.0
  %715 = vmatpush1.msra.mxu0 0.0
  %716 = vmatprep.subr.mxu0 0.0
  %717 = vmatpush1.msra.mxu0 0.0
  %718 = vmatprep.mubr.f32.mxu0 0.0
  %719 = vmatmul.mubr.f32.gmra.mrb[0].mxu0 %v583
  %v720 = vpop.f32.mrb[0].mxu0
  %v721 = vadd.f32 0.0, %v720
  %v722 = vpop.f32.mrb[0].mxu0
  %v723 = vadd.f32 0.0, %v722
  %724 = vdwg.mxu0
  %725 = vmatprep.subr.mxu0 %v593
  %726 = vmatpush1.msra.mxu0 %v592
  %727 = vmatprep.subr.mxu0 %v597
  %728 = vmatpush1.msra.mxu0 %v596
  %729 = vmatprep.subr.mxu0 %v601
  %730 = vmatpush1.msra.mxu0 %v600
  %731 = vmatprep.subr.mxu0 %v605
  %732 = vmatpush1.msra.mxu0 %v604
  %733 = vmatprep.subr.mxu0 %v609
  %734 = vmatpush1.msra.mxu0 %v608
  %735 = vmatprep.subr.mxu0 %v613
  %736 = vmatpush1.msra.mxu0 %v612
  %737 = vmatprep.subr.mxu0 %v617
  %738 = vmatpush1.msra.mxu0 %v616
  %739 = vmatprep.subr.mxu0 %v621
  %740 = vmatpush1.msra.mxu0 %v620
  %741 = vmatprep.subr.mxu0 %v625
  %742 = vmatpush1.msra.mxu0 %v624
  %743 = vmatprep.subr.mxu0 %v629
  %744 = vmatpush1.msra.mxu0 %v628
  %745 = vmatprep.subr.mxu0 %v633
  %746 = vmatpush1.msra.mxu0 %v632
  %747 = vmatprep.subr.mxu0 %v637
  %748 = vmatpush1.msra.mxu0 %v636
  %749 = vmatprep.subr.mxu0 %v641
  %750 = vmatpush1.msra.mxu0 %v640
  %751 = vmatprep.subr.mxu0 %v645
  %752 = vmatpush1.msra.mxu0 %v644
  %753 = vmatprep.subr.mxu0 %v649
  %754 = vmatpush1.msra.mxu0 %v648
  %755 = vmatprep.subr.mxu0 %v653
  %756 = vmatpush1.msra.mxu0 %v652
  %757 = vmatprep.subr.mxu0 0.0
  %758 = vmatpush1.msra.mxu0 0.0
  %759 = vmatprep.subr.mxu0 0.0
  %760 = vmatpush1.msra.mxu0 0.0
  %761 = vmatprep.subr.mxu0 0.0
  %762 = vmatpush1.msra.mxu0 0.0
  %763 = vmatprep.subr.mxu0 0.0
  %764 = vmatpush1.msra.mxu0 0.0
  %765 = vmatprep.subr.mxu0 0.0
  %766 = vmatpush1.msra.mxu0 0.0
  %767 = vmatprep.subr.mxu0 0.0
  %768 = vmatpush1.msra.mxu0 0.0
  %769 = vmatprep.subr.mxu0 0.0
  %770 = vmatpush1.msra.mxu0 0.0
  %771 = vmatprep.subr.mxu0 0.0
  %772 = vmatpush1.msra.mxu0 0.0
  %773 = vmatprep.subr.mxu0 0.0
  %774 = vmatpush1.msra.mxu0 0.0
  %775 = vmatprep.subr.mxu0 0.0
  %776 = vmatpush1.msra.mxu0 0.0
  %777 = vmatprep.subr.mxu0 0.0
  %778 = vmatpush1.msra.mxu0 0.0
  %779 = vmatprep.subr.mxu0 0.0
  %780 = vmatpush1.msra.mxu0 0.0
  %781 = vmatprep.subr.mxu0 0.0
  %782 = vmatpush1.msra.mxu0 0.0
  %783 = vmatprep.subr.mxu0 0.0
  %784 = vmatpush1.msra.mxu0 0.0
  %785 = vmatprep.subr.mxu0 0.0
  %786 = vmatpush1.msra.mxu0 0.0
  %787 = vmatprep.subr.mxu0 0.0
  %788 = vmatpush1.msra.mxu0 0.0
  %789 = vmatprep.mubr.f32.mxu0 0.0
  %790 = vmatmul.mubr.f32.gmra.mrb[0].mxu0 %v583
  %v791 = vpop.f32.mrb[0].mxu0
  %v792 = vadd.f32 0.0, %v791
  %v793 = vpop.f32.mrb[0].mxu0
  %v794 = vadd.f32 0.0, %v793
  %795 = vdwg.mxu0
  %v796 = vadd.f32 %v586, %v721
  %v797 = vadd.f32 %v587, %v723
  %v798 = vadd.f32 %v588, %v792
  %v799 = vadd.f32 %v589, %v794
  %v800 = vxor.u32 %v796, 2147483648
  %v801 = vmul.f32 %v800, 1.442695
  %v802 = vpow.pop %v801
  %v803 = vadd.f32 %v802, 1.0
  %v804 = vrcp.pop %v803
  %v805 = vmul.f32 1.0, %v804
  %v806 = vxor.u32 %v797, 2147483648
  %v807 = vmul.f32 %v806, 1.442695
  %v808 = vpow.pop %v807
  %v809 = vadd.f32 %v808, 1.0
  %v810 = vrcp.pop %v809
  %v811 = vmul.f32 1.0, %v810
  %v812 = vtanh.pop %v798
  %v813 = vxor.u32 %v799, 2147483648
  %v814 = vmul.f32 %v813, 1.442695
  %v815 = vpow.pop %v814
  %v816 = vadd.f32 %v815, 1.0
  %v817 = vrcp.pop %v816
  %v818 = vmul.f32 1.0, %v817
  %v819 = vmul.f32 %v811, %v581
  %v820 = vmul.f32 %v805, %v812
  %v821 = vadd.f32 %v819, %v820
  %v822 = vtanh.pop %v821
  %v823 = vmul.f32 %v818, %v822
  %s824 = scalar_lea.vmem %s4, 8
  %825 = vst [vmem:[%s824] sm:$0xff] %v823
  %s826 = scalar_lea.vmem [#allocation2], 64
  %v827 = vld [vmem:[%s826] sm:$0xff]
  %v828 = vld [vmem:[%s826 + $0x8] sm:$0xff]
  %v829 = vld [vmem:[%s826 + $0x10] sm:$0xff]
  %v830 = vld [vmem:[%s826 + $0x18] sm:$0xff]
  %v831 = vld [vmem:[%s3] sm:$0xff]
  %v832 = vld [vmem:[%s3 + $0x8] sm:$0xff]
  %v833 = vld [vmem:[%s3 + $0x10] sm:$0xff]
  %v834 = vld [vmem:[%s3 + $0x18] sm:$0xff]
  %v835 = vld [vmem:[%s3 + $0x20] sm:$0xff]
  %v836 = vld [vmem:[%s3 + $0x28] sm:$0xff]
  %v837 = vld [vmem:[%s3 + $0x30] sm:$0xff]
  %v838 = vld [vmem:[%s3 + $0x38] sm:$0xff]
  %v839 = vld [vmem:[%s3 + $0x40] sm:$0xff]
  %v840 = vld [vmem:[%s3 + $0x48] sm:$0xff]
  %v841 = vld [vmem:[%s3 + $0x50] sm:$0xff]
  %v842 = vld [vmem:[%s3 + $0x58] sm:$0xff]
  %v843 = vld [vmem:[%s3 + $0x60] sm:$0xff]
  %v844 = vld [vmem:[%s3 + $0x68] sm:$0xff]
  %v845 = vld [vmem:[%s3 + $0x70] sm:$0xff]
  %v846 = vld [vmem:[%s3 + $0x78] sm:$0xff]
  %v847 = vld [vmem:[%s3 + $0x80] sm:$0xff]
  %v848 = vld [vmem:[%s3 + $0x88] sm:$0xff]
  %v849 = vld [vmem:[%s3 + $0x90] sm:$0xff]
  %v850 = vld [vmem:[%s3 + $0x98] sm:$0xff]
  %v851 = vld [vmem:[%s3 + $0xa0] sm:$0xff]
  %v852 = vld [vmem:[%s3 + $0xa8] sm:$0xff]
  %v853 = vld [vmem:[%s3 + $0xb0] sm:$0xff]
  %v854 = vld [vmem:[%s3 + $0xb8] sm:$0xff]
  %v855 = vld [vmem:[%s3 + $0xc0] sm:$0xff]
  %v856 = vld [vmem:[%s3 + $0xc8] sm:$0xff]
  %v857 = vld [vmem:[%s3 + $0xd0] sm:$0xff]
  %v858 = vld [vmem:[%s3 + $0xd8] sm:$0xff]
  %v859 = vld [vmem:[%s3 + $0xe0] sm:$0xff]
  %v860 = vld [vmem:[%s3 + $0xe8] sm:$0xff]
  %v861 = vld [vmem:[%s3 + $0xf0] sm:$0xff]
  %v862 = vld [vmem:[%s3 + $0xf8] sm:$0xff]
  %v863 = vld [vmem:[%s3 + $0x100] sm:$0xff]
  %v864 = vld [vmem:[%s3 + $0x108] sm:$0xff]
  %v865 = vld [vmem:[%s3 + $0x110] sm:$0xff]
  %v866 = vld [vmem:[%s3 + $0x118] sm:$0xff]
  %v867 = vld [vmem:[%s3 + $0x120] sm:$0xff]
  %v868 = vld [vmem:[%s3 + $0x128] sm:$0xff]
  %v869 = vld [vmem:[%s3 + $0x130] sm:$0xff]
  %v870 = vld [vmem:[%s3 + $0x138] sm:$0xff]
  %v871 = vld [vmem:[%s3 + $0x140] sm:$0xff]
  %v872 = vld [vmem:[%s3 + $0x148] sm:$0xff]
  %v873 = vld [vmem:[%s3 + $0x150] sm:$0xff]
  %v874 = vld [vmem:[%s3 + $0x158] sm:$0xff]
  %v875 = vld [vmem:[%s3 + $0x160] sm:$0xff]
  %v876 = vld [vmem:[%s3 + $0x168] sm:$0xff]
  %v877 = vld [vmem:[%s3 + $0x170] sm:$0xff]
  %v878 = vld [vmem:[%s3 + $0x178] sm:$0xff]
  %v879 = vld [vmem:[%s3 + $0x180] sm:$0xff]
  %v880 = vld [vmem:[%s3 + $0x188] sm:$0xff]
  %v881 = vld [vmem:[%s3 + $0x190] sm:$0xff]
  %v882 = vld [vmem:[%s3 + $0x198] sm:$0xff]
  %v883 = vld [vmem:[%s3 + $0x1a0] sm:$0xff]
  %v884 = vld [vmem:[%s3 + $0x1a8] sm:$0xff]
  %v885 = vld [vmem:[%s3 + $0x1b0] sm:$0xff]
  %v886 = vld [vmem:[%s3 + $0x1b8] sm:$0xff]
  %v887 = vld [vmem:[%s3 + $0x1c0] sm:$0xff]
  %v888 = vld [vmem:[%s3 + $0x1c8] sm:$0xff]
  %v889 = vld [vmem:[%s3 + $0x1d0] sm:$0xff]
  %v890 = vld [vmem:[%s3 + $0x1d8] sm:$0xff]
  %v891 = vld [vmem:[%s3 + $0x1e0] sm:$0xff]
  %v892 = vld [vmem:[%s3 + $0x1e8] sm:$0xff]
  %v893 = vld [vmem:[%s3 + $0x1f0] sm:$0xff]
  %v894 = vld [vmem:[%s3 + $0x1f8] sm:$0xff]
  %895 = vmatprep.subr.mxu0 %v832
  %896 = vmatpush1.msra.mxu0 %v831
  %897 = vmatprep.subr.mxu0 %v836
  %898 = vmatpush1.msra.mxu0 %v835
  %899 = vmatprep.subr.mxu0 %v840
  %900 = vmatpush1.msra.mxu0 %v839
  %901 = vmatprep.subr.mxu0 %v844
  %902 = vmatpush1.msra.mxu0 %v843
  %903 = vmatprep.subr.mxu0 %v848
  %904 = vmatpush1.msra.mxu0 %v847
  %905 = vmatprep.subr.mxu0 %v852
  %906 = vmatpush1.msra.mxu0 %v851
  %907 = vmatprep.subr.mxu0 %v856
  %908 = vmatpush1.msra.mxu0 %v855
  %909 = vmatprep.subr.mxu0 %v860
  %910 = vmatpush1.msra.mxu0 %v859
  %911 = vmatprep.subr.mxu0 %v864
  %912 = vmatpush1.msra.mxu0 %v863
  %913 = vmatprep.subr.mxu0 %v868
  %914 = vmatpush1.msra.mxu0 %v867
  %915 = vmatprep.subr.mxu0 %v872
  %916 = vmatpush1.msra.mxu0 %v871
  %917 = vmatprep.subr.mxu0 %v876
  %918 = vmatpush1.msra.mxu0 %v875
  %919 = vmatprep.subr.mxu0 %v880
  %920 = vmatpush1.msra.mxu0 %v879
  %921 = vmatprep.subr.mxu0 %v884
  %922 = vmatpush1.msra.mxu0 %v883
  %923 = vmatprep.subr.mxu0 %v888
  %924 = vmatpush1.msra.mxu0 %v887
  %925 = vmatprep.subr.mxu0 %v892
  %926 = vmatpush1.msra.mxu0 %v891
  %927 = vmatprep.subr.mxu0 0.0
  %928 = vmatpush1.msra.mxu0 0.0
  %929 = vmatprep.subr.mxu0 0.0
  %930 = vmatpush1.msra.mxu0 0.0
  %931 = vmatprep.subr.mxu0 0.0
  %932 = vmatpush1.msra.mxu0 0.0
  %933 = vmatprep.subr.mxu0 0.0
  %934 = vmatpush1.msra.mxu0 0.0
  %935 = vmatprep.subr.mxu0 0.0
  %936 = vmatpush1.msra.mxu0 0.0
  %937 = vmatprep.subr.mxu0 0.0
  %938 = vmatpush1.msra.mxu0 0.0
  %939 = vmatprep.subr.mxu0 0.0
  %940 = vmatpush1.msra.mxu0 0.0
  %941 = vmatprep.subr.mxu0 0.0
  %942 = vmatpush1.msra.mxu0 0.0
  %943 = vmatprep.subr.mxu0 0.0
  %944 = vmatpush1.msra.mxu0 0.0
  %945 = vmatprep.subr.mxu0 0.0
  %946 = vmatpush1.msra.mxu0 0.0
  %947 = vmatprep.subr.mxu0 0.0
  %948 = vmatpush1.msra.mxu0 0.0
  %949 = vmatprep.subr.mxu0 0.0
  %950 = vmatpush1.msra.mxu0 0.0
  %951 = vmatprep.subr.mxu0 0.0
  %952 = vmatpush1.msra.mxu0 0.0
  %953 = vmatprep.subr.mxu0 0.0
  %954 = vmatpush1.msra.mxu0 0.0
  %955 = vmatprep.subr.mxu0 0.0
  %956 = vmatpush1.msra.mxu0 0.0
  %957 = vmatprep.subr.mxu0 0.0
  %958 = vmatpush1.msra.mxu0 0.0
  %959 = vmatprep.mubr.f32.mxu0 0.0
  %960 = vmatmul.mubr.f32.gmra.mrb[0].mxu0 %v823
  %v961 = vpop.f32.mrb[0].mxu0
  %v962 = vadd.f32 0.0, %v961
  %v963 = vpop.f32.mrb[0].mxu0
  %v964 = vadd.f32 0.0, %v963
  %965 = vdwg.mxu0
  %966 = vmatprep.subr.mxu0 %v834
  %967 = vmatpush1.msra.mxu0 %v833
  %968 = vmatprep.subr.mxu0 %v838
  %969 = vmatpush1.msra.mxu0 %v837
  %970 = vmatprep.subr.mxu0 %v842
  %971 = vmatpush1.msra.mxu0 %v841
  %972 = vmatprep.subr.mxu0 %v846
  %973 = vmatpush1.msra.mxu0 %v845
  %974 = vmatprep.subr.mxu0 %v850
  %975 = vmatpush1.msra.mxu0 %v849
  %976 = vmatprep.subr.mxu0 %v854
  %977 = vmatpush1.msra.mxu0 %v853
  %978 = vmatprep.subr.mxu0 %v858
  %979 = vmatpush1.msra.mxu0 %v857
  %980 = vmatprep.subr.mxu0 %v862
  %981 = vmatpush1.msra.mxu0 %v861
  %982 = vmatprep.subr.mxu0 %v866
  %983 = vmatpush1.msra.mxu0 %v865
  %984 = vmatprep.subr.mxu0 %v870
  %985 = vmatpush1.msra.mxu0 %v869
  %986 = vmatprep.subr.mxu0 %v874
  %987 = vmatpush1.msra.mxu0 %v873
  %988 = vmatprep.subr.mxu0 %v878
  %989 = vmatpush1.msra.mxu0 %v877
  %990 = vmatprep.subr.mxu0 %v882
  %991 = vmatpush1.msra.mxu0 %v881
  %992 = vmatprep.subr.mxu0 %v886
  %993 = vmatpush1.msra.mxu0 %v885
  %994 = vmatprep.subr.mxu0 %v890
  %995 = vmatpush1.msra.mxu0 %v889
  %996 = vmatprep.subr.mxu0 %v894
  %997 = vmatpush1.msra.mxu0 %v893
  %998 = vmatprep.subr.mxu0 0.0
  %999 = vmatpush1.msra.mxu0 0.0
  %1000 = vmatprep.subr.mxu0 0.0
  %1001 = vmatpush1.msra.mxu0 0.0
  %1002 = vmatprep.subr.mxu0 0.0
  %1003 = vmatpush1.msra.mxu0 0.0
  %1004 = vmatprep.subr.mxu0 0.0
  %1005 = vmatpush1.msra.mxu0 0.0
  %1006 = vmatprep.subr.mxu0 0.0
  %1007 = vmatpush1.msra.mxu0 0.0
  %1008 = vmatprep.subr.mxu0 0.0
  %1009 = vmatpush1.msra.mxu0 0.0
  %1010 = vmatprep.subr.mxu0 0.0
  %1011 = vmatpush1.msra.mxu0 0.0
  %1012 = vmatprep.subr.mxu0 0.0
  %1013 = vmatpush1.msra.mxu0 0.0
  %1014 = vmatprep.subr.mxu0 0.0
  %1015 = vmatpush1.msra.mxu0 0.0
  %1016 = vmatprep.subr.mxu0 0.0
  %1017 = vmatpush1.msra.mxu0 0.0
  %1018 = vmatprep.subr.mxu0 0.0
  %1019 = vmatpush1.msra.mxu0 0.0
  %1020 = vmatprep.subr.mxu0 0.0
  %1021 = vmatpush1.msra.mxu0 0.0
  %1022 = vmatprep.subr.mxu0 0.0
  %1023 = vmatpush1.msra.mxu0 0.0
  %1024 = vmatprep.subr.mxu0 0.0
  %1025 = vmatpush1.msra.mxu0 0.0
  %1026 = vmatprep.subr.mxu0 0.0
  %1027 = vmatpush1.msra.mxu0 0.0
  %1028 = vmatprep.subr.mxu0 0.0
  %1029 = vmatpush1.msra.mxu0 0.0
  %1030 = vmatprep.mubr.f32.mxu0 0.0
  %1031 = vmatmul.mubr.f32.gmra.mrb[0].mxu0 %v823
  %v1032 = vpop.f32.mrb[0].mxu0
  %v1033 = vadd.f32 0.0, %v1032
  %v1034 = vpop.f32.mrb[0].mxu0
  %v1035 = vadd.f32 0.0, %v1034
  %1036 = vdwg.mxu0
  %v1037 = vadd.f32 %v827, %v962
  %v1038 = vadd.f32 %v828, %v964
  %v1039 = vadd.f32 %v829, %v1033
  %v1040 = vadd.f32 %v830, %v1035
  %v1041 = vxor.u32 %v1037, 2147483648
  %v1042 = vmul.f32 %v1041, 1.442695
  %v1043 = vpow.pop %v1042
  %v1044 = vadd.f32 %v1043, 1.0
  %v1045 = vrcp.pop %v1044
  %v1046 = vmul.f32 1.0, %v1045
  %v1047 = vxor.u32 %v1038, 2147483648
  %v1048 = vmul.f32 %v1047, 1.442695
  %v1049 = vpow.pop %v1048
  %v1050 = vadd.f32 %v1049, 1.0
  %v1051 = vrcp.pop %v1050
  %v1052 = vmul.f32 1.0, %v1051
  %v1053 = vtanh.pop %v1039
  %v1054 = vxor.u32 %v1040, 2147483648
  %v1055 = vmul.f32 %v1054, 1.442695
  %v1056 = vpow.pop %v1055
  %v1057 = vadd.f32 %v1056, 1.0
  %v1058 = vrcp.pop %v1057
  %v1059 = vmul.f32 1.0, %v1058
  %v1060 = vmul.f32 %v1052, %v821
  %v1061 = vmul.f32 %v1046, %v1053
  %v1062 = vadd.f32 %v1060, %v1061
  %v1063 = vtanh.pop %v1062
  %v1064 = vmul.f32 %v1059, %v1063
  %s1065 = scalar_lea.vmem %s4, 16
  %1066 = vst [vmem:[%s1065] sm:$0xff] %v1064
  %s1067 = scalar_lea.vmem [#allocation2], 96
  %v1068 = vld [vmem:[%s1067] sm:$0xff]
  %v1069 = vld [vmem:[%s1067 + $0x8] sm:$0xff]
  %v1070 = vld [vmem:[%s1067 + $0x10] sm:$0xff]
  %v1071 = vld [vmem:[%s1067 + $0x18] sm:$0xff]
  %v1072 = vld [vmem:[%s3] sm:$0xff]
  %v1073 = vld [vmem:[%s3 + $0x8] sm:$0xff]
  %v1074 = vld [vmem:[%s3 + $0x10] sm:$0xff]
  %v1075 = vld [vmem:[%s3 + $0x18] sm:$0xff]
  %v1076 = vld [vmem:[%s3 + $0x20] sm:$0xff]
  %v1077 = vld [vmem:[%s3 + $0x28] sm:$0xff]
  %v1078 = vld [vmem:[%s3 + $0x30] sm:$0xff]
  %v1079 = vld [vmem:[%s3 + $0x38] sm:$0xff]
  %v1080 = vld [vmem:[%s3 + $0x40] sm:$0xff]
  %v1081 = vld [vmem:[%s3 + $0x48] sm:$0xff]
  %v1082 = vld [vmem:[%s3 + $0x50] sm:$0xff]
  %v1083 = vld [vmem:[%s3 + $0x58] sm:$0xff]
  %v1084 = vld [vmem:[%s3 + $0x60] sm:$0xff]
  %v1085 = vld [vmem:[%s3 + $0x68] sm:$0xff]
  %v1086 = vld [vmem:[%s3 + $0x70] sm:$0xff]
  %v1087 = vld [vmem:[%s3 + $0x78] sm:$0xff]
  %v1088 = vld [vmem:[%s3 + $0x80] sm:$0xff]
  %v1089 = vld [vmem:[%s3 + $0x88] sm:$0xff]
  %v1090 = vld [vmem:[%s3 + $0x90] sm:$0xff]
  %v1091 = vld [vmem:[%s3 + $0x98] sm:$0xff]
  %v1092 = vld [vmem:[%s3 + $0xa0] sm:$0xff]
  %v1093 = vld [vmem:[%s3 + $0xa8] sm:$0xff]
  %v1094 = vld [vmem:[%s3 + $0xb0] sm:$0xff]
  %v1095 = vld [vmem:[%s3 + $0xb8] sm:$0xff]
  %v1096 = vld [vmem:[%s3 + $0xc0] sm:$0xff]
  %v1097 = vld [vmem:[%s3 + $0xc8] sm:$0xff]
  %v1098 = vld [vmem:[%s3 + $0xd0] sm:$0xff]
  %v1099 = vld [vmem:[%s3 + $0xd8] sm:$0xff]
  %v1100 = vld [vmem:[%s3 + $0xe0] sm:$0xff]
  %v1101 = vld [vmem:[%s3 + $0xe8] sm:$0xff]
  %v1102 = vld [vmem:[%s3 + $0xf0] sm:$0xff]
  %v1103 = vld [vmem:[%s3 + $0xf8] sm:$0xff]
  %v1104 = vld [vmem:[%s3 + $0x100] sm:$0xff]
  %v1105 = vld [vmem:[%s3 + $0x108] sm:$0xff]
  %v1106 = vld [vmem:[%s3 + $0x110] sm:$0xff]
  %v1107 = vld [vmem:[%s3 + $0x118] sm:$0xff]
  %v1108 = vld [vmem:[%s3 + $0x120] sm:$0xff]
  %v1109 = vld [vmem:[%s3 + $0x128] sm:$0xff]
  %v1110 = vld [vmem:[%s3 + $0x130] sm:$0xff]
  %v1111 = vld [vmem:[%s3 + $0x138] sm:$0xff]
  %v1112 = vld [vmem:[%s3 + $0x140] sm:$0xff]
  %v1113 = vld [vmem:[%s3 + $0x148] sm:$0xff]
  %v1114 = vld [vmem:[%s3 + $0x150] sm:$0xff]
  %v1115 = vld [vmem:[%s3 + $0x158] sm:$0xff]
  %v1116 = vld [vmem:[%s3 + $0x160] sm:$0xff]
  %v1117 = vld [vmem:[%s3 + $0x168] sm:$0xff]
  %v1118 = vld [vmem:[%s3 + $0x170] sm:$0xff]
  %v1119 = vld [vmem:[%s3 + $0x178] sm:$0xff]
  %v1120 = vld [vmem:[%s3 + $0x180] sm:$0xff]
  %v1121 = vld [vmem:[%s3 + $0x188] sm:$0xff]
  %v1122 = vld [vmem:[%s3 + $0x190] sm:$0xff]
  %v1123 = vld [vmem:[%s3 + $0x198] sm:$0xff]
  %v1124 = vld [vmem:[%s3 + $0x1a0] sm:$0xff]
  %v1125 = vld [vmem:[%s3 + $0x1a8] sm:$0xff]
  %v1126 = vld [vmem:[%s3 + $0x1b0] sm:$0xff]
  %v1127 = vld [vmem:[%s3 + $0x1b8] sm:$0xff]
  %v1128 = vld [vmem:[%s3 + $0x1c0] sm:$0xff]
  %v1129 = vld [vmem:[%s3 + $0x1c8] sm:$0xff]
  %v1130 = vld [vmem:[%s3 + $0x1d0] sm:$0xff]
  %v1131 = vld [vmem:[%s3 + $0x1d8] sm:$0xff]
  %v1132 = vld [vmem:[%s3 + $0x1e0] sm:$0xff]
  %v1133 = vld [vmem:[%s3 + $0x1e8] sm:$0xff]
  %v1134 = vld [vmem:[%s3 + $0x1f0] sm:$0xff]
  %v1135 = vld [vmem:[%s3 + $0x1f8] sm:$0xff]
  %1136 = vmatprep.subr.mxu0 %v1073
  %1137 = vmatpush1.msra.mxu0 %v1072
  %1138 = vmatprep.subr.mxu0 %v1077
  %1139 = vmatpush1.msra.mxu0 %v1076
  %1140 = vmatprep.subr.mxu0 %v1081
  %1141 = vmatpush1.msra.mxu0 %v1080
  %1142 = vmatprep.subr.mxu0 %v1085
  %1143 = vmatpush1.msra.mxu0 %v1084
  %1144 = vmatprep.subr.mxu0 %v1089
  %1145 = vmatpush1.msra.mxu0 %v1088
  %1146 = vmatprep.subr.mxu0 %v1093
  %1147 = vmatpush1.msra.mxu0 %v1092
  %1148 = vmatprep.subr.mxu0 %v1097
  %1149 = vmatpush1.msra.mxu0 %v1096
  %1150 = vmatprep.subr.mxu0 %v1101
  %1151 = vmatpush1.msra.mxu0 %v1100
  %1152 = vmatprep.subr.mxu0 %v1105
  %1153 = vmatpush1.msra.mxu0 %v1104
  %1154 = vmatprep.subr.mxu0 %v1109
  %1155 = vmatpush1.msra.mxu0 %v1108
  %1156 = vmatprep.subr.mxu0 %v1113
  %1157 = vmatpush1.msra.mxu0 %v1112
  %1158 = vmatprep.subr.mxu0 %v1117
  %1159 = vmatpush1.msra.mxu0 %v1116
  %1160 = vmatprep.subr.mxu0 %v1121
  %1161 = vmatpush1.msra.mxu0 %v1120
  %1162 = vmatprep.subr.mxu0 %v1125
  %1163 = vmatpush1.msra.mxu0 %v1124
  %1164 = vmatprep.subr.mxu0 %v1129
  %1165 = vmatpush1.msra.mxu0 %v1128
  %1166 = vmatprep.subr.mxu0 %v1133
  %1167 = vmatpush1.msra.mxu0 %v1132
  %1168 = vmatprep.subr.mxu0 0.0
  %1169 = vmatpush1.msra.mxu0 0.0
  %1170 = vmatprep.subr.mxu0 0.0
  %1171 = vmatpush1.msra.mxu0 0.0
  %1172 = vmatprep.subr.mxu0 0.0
  %1173 = vmatpush1.msra.mxu0 0.0
  %1174 = vmatprep.subr.mxu0 0.0
  %1175 = vmatpush1.msra.mxu0 0.0
  %1176 = vmatprep.subr.mxu0 0.0
  %1177 = vmatpush1.msra.mxu0 0.0
  %1178 = vmatprep.subr.mxu0 0.0
  %1179 = vmatpush1.msra.mxu0 0.0
  %1180 = vmatprep.subr.mxu0 0.0
  %1181 = vmatpush1.msra.mxu0 0.0
  %1182 = vmatprep.subr.mxu0 0.0
  %1183 = vmatpush1.msra.mxu0 0.0
  %1184 = vmatprep.subr.mxu0 0.0
  %1185 = vmatpush1.msra.mxu0 0.0
  %1186 = vmatprep.subr.mxu0 0.0
  %1187 = vmatpush1.msra.mxu0 0.0
  %1188 = vmatprep.subr.mxu0 0.0
  %1189 = vmatpush1.msra.mxu0 0.0
  %1190 = vmatprep.subr.mxu0 0.0
  %1191 = vmatpush1.msra.mxu0 0.0
  %1192 = vmatprep.subr.mxu0 0.0
  %1193 = vmatpush1.msra.mxu0 0.0
  %1194 = vmatprep.subr.mxu0 0.0
  %1195 = vmatpush1.msra.mxu0 0.0
  %1196 = vmatprep.subr.mxu0 0.0
  %1197 = vmatpush1.msra.mxu0 0.0
  %1198 = vmatprep.subr.mxu0 0.0
  %1199 = vmatpush1.msra.mxu0 0.0
  %1200 = vmatprep.mubr.f32.mxu0 0.0
  %1201 = vmatmul.mubr.f32.gmra.mrb[0].mxu0 %v1064
  %v1202 = vpop.f32.mrb[0].mxu0
  %v1203 = vadd.f32 0.0, %v1202
  %v1204 = vpop.f32.mrb[0].mxu0
  %v1205 = vadd.f32 0.0, %v1204
  %1206 = vdwg.mxu0
  %1207 = vmatprep.subr.mxu0 %v1075
  %1208 = vmatpush1.msra.mxu0 %v1074
  %1209 = vmatprep.subr.mxu0 %v1079
  %1210 = vmatpush1.msra.mxu0 %v1078
  %1211 = vmatprep.subr.mxu0 %v1083
  %1212 = vmatpush1.msra.mxu0 %v1082
  %1213 = vmatprep.subr.mxu0 %v1087
  %1214 = vmatpush1.msra.mxu0 %v1086
  %1215 = vmatprep.subr.mxu0 %v1091
  %1216 = vmatpush1.msra.mxu0 %v1090
  %1217 = vmatprep.subr.mxu0 %v1095
  %1218 = vmatpush1.msra.mxu0 %v1094
  %1219 = vmatprep.subr.mxu0 %v1099
  %1220 = vmatpush1.msra.mxu0 %v1098
  %1221 = vmatprep.subr.mxu0 %v1103
  %1222 = vmatpush1.msra.mxu0 %v1102
  %1223 = vmatprep.subr.mxu0 %v1107
  %1224 = vmatpush1.msra.mxu0 %v1106
  %1225 = vmatprep.subr.mxu0 %v1111
  %1226 = vmatpush1.msra.mxu0 %v1110
  %1227 = vmatprep.subr.mxu0 %v1115
  %1228 = vmatpush1.msra.mxu0 %v1114
  %1229 = vmatprep.subr.mxu0 %v1119
  %1230 = vmatpush1.msra.mxu0 %v1118
  %1231 = vmatprep.subr.mxu0 %v1123
  %1232 = vmatpush1.msra.mxu0 %v1122
  %1233 = vmatprep.subr.mxu0 %v1127
  %1234 = vmatpush1.msra.mxu0 %v1126
  %1235 = vmatprep.subr.mxu0 %v1131
  %1236 = vmatpush1.msra.mxu0 %v1130
  %1237 = vmatprep.subr.mxu0 %v1135
  %1238 = vmatpush1.msra.mxu0 %v1134
  %1239 = vmatprep.subr.mxu0 0.0
  %1240 = vmatpush1.msra.mxu0 0.0
  %1241 = vmatprep.subr.mxu0 0.0
  %1242 = vmatpush1.msra.mxu0 0.0
  %1243 = vmatprep.subr.mxu0 0.0
  %1244 = vmatpush1.msra.mxu0 0.0
  %1245 = vmatprep.subr.mxu0 0.0
  %1246 = vmatpush1.msra.mxu0 0.0
  %1247 = vmatprep.subr.mxu0 0.0
  %1248 = vmatpush1.msra.mxu0 0.0
  %1249 = vmatprep.subr.mxu0 0.0
  %1250 = vmatpush1.msra.mxu0 0.0
  %1251 = vmatprep.subr.mxu0 0.0
  %1252 = vmatpush1.msra.mxu0 0.0
  %1253 = vmatprep.subr.mxu0 0.0
  %1254 = vmatpush1.msra.mxu0 0.0
  %1255 = vmatprep.subr.mxu0 0.0
  %1256 = vmatpush1.msra.mxu0 0.0
  %1257 = vmatprep.subr.mxu0 0.0
  %1258 = vmatpush1.msra.mxu0 0.0
  %1259 = vmatprep.subr.mxu0 0.0
  %1260 = vmatpush1.msra.mxu0 0.0
  %1261 = vmatprep.subr.mxu0 0.0
  %1262 = vmatpush1.msra.mxu0 0.0
  %1263 = vmatprep.subr.mxu0 0.0
  %1264 = vmatpush1.msra.mxu0 0.0
  %1265 = vmatprep.subr.mxu0 0.0
  %1266 = vmatpush1.msra.mxu0 0.0
  %1267 = vmatprep.subr.mxu0 0.0
  %1268 = vmatpush1.msra.mxu0 0.0
  %1269 = vmatprep.subr.mxu0 0.0
  %1270 = vmatpush1.msra.mxu0 0.0
  %1271 = vmatprep.mubr.f32.mxu0 0.0
  %1272 = vmatmul.mubr.f32.gmra.mrb[0].mxu0 %v1064
  %v1273 = vpop.f32.mrb[0].mxu0
  %v1274 = vadd.f32 0.0, %v1273
  %v1275 = vpop.f32.mrb[0].mxu0
  %v1276 = vadd.f32 0.0, %v1275
  %1277 = vdwg.mxu0
  %v1278 = vadd.f32 %v1068, %v1203
  %v1279 = vadd.f32 %v1069, %v1205
  %v1280 = vadd.f32 %v1070, %v1274
  %v1281 = vadd.f32 %v1071, %v1276
  %v1282 = vxor.u32 %v1278, 2147483648
  %v1283 = vmul.f32 %v1282, 1.442695
  %v1284 = vpow.pop %v1283
  %v1285 = vadd.f32 %v1284, 1.0
  %v1286 = vrcp.pop %v1285
  %v1287 = vmul.f32 1.0, %v1286
  %v1288 = vxor.u32 %v1279, 2147483648
  %v1289 = vmul.f32 %v1288, 1.442695
  %v1290 = vpow.pop %v1289
  %v1291 = vadd.f32 %v1290, 1.0
  %v1292 = vrcp.pop %v1291
  %v1293 = vmul.f32 1.0, %v1292
  %v1294 = vtanh.pop %v1280
  %v1295 = vxor.u32 %v1281, 2147483648
  %v1296 = vmul.f32 %v1295, 1.442695
  %v1297 = vpow.pop %v1296
  %v1298 = vadd.f32 %v1297, 1.0
  %v1299 = vrcp.pop %v1298
  %v1300 = vmul.f32 1.0, %v1299
  %v1301 = vmul.f32 %v1293, %v1062
  %v1302 = vmul.f32 %v1287, %v1294
  %v1303 = vadd.f32 %v1301, %v1302
  %v1304 = vtanh.pop %v1303
  %v1305 = vmul.f32 %v1300, %v1304
  %s1306 = scalar_lea.vmem %s4, 24
  %1307 = vst [vmem:[%s1306] sm:$0xff] %v1305
  %s1308 = scalar_lea.vmem [#allocation2], 128
  %v1309 = vld [vmem:[%s1308] sm:$0xff]
  %v1310 = vld [vmem:[%s1308 + $0x8] sm:$0xff]
  %v1311 = vld [vmem:[%s1308 + $0x10] sm:$0xff]
  %v1312 = vld [vmem:[%s1308 + $0x18] sm:$0xff]
  %v1313 = vld [vmem:[%s3] sm:$0xff]
  %v1314 = vld [vmem:[%s3 + $0x8] sm:$0xff]
  %v1315 = vld [vmem:[%s3 + $0x10] sm:$0xff]
  %v1316 = vld [vmem:[%s3 + $0x18] sm:$0xff]
  %v1317 = vld [vmem:[%s3 + $0x20] sm:$0xff]
  %v1318 = vld [vmem:[%s3 + $0x28] sm:$0xff]
  %v1319 = vld [vmem:[%s3 + $0x30] sm:$0xff]
  %v1320 = vld [vmem:[%s3 + $0x38] sm:$0xff]
  %v1321 = vld [vmem:[%s3 + $0x40] sm:$0xff]
  %v1322 = vld [vmem:[%s3 + $0x48] sm:$0xff]
  %v1323 = vld [vmem:[%s3 + $0x50] sm:$0xff]
  %v1324 = vld [vmem:[%s3 + $0x58] sm:$0xff]
  %v1325 = vld [vmem:[%s3 + $0x60] sm:$0xff]
  %v1326 = vld [vmem:[%s3 + $0x68] sm:$0xff]
  %v1327 = vld [vmem:[%s3 + $0x70] sm:$0xff]
  %v1328 = vld [vmem:[%s3 + $0x78] sm:$0xff]
  %v1329 = vld [vmem:[%s3 + $0x80] sm:$0xff]
  %v1330 = vld [vmem:[%s3 + $0x88] sm:$0xff]
  %v1331 = vld [vmem:[%s3 + $0x90] sm:$0xff]
  %v1332 = vld [vmem:[%s3 + $0x98] sm:$0xff]
  %v1333 = vld [vmem:[%s3 + $0xa0] sm:$0xff]
  %v1334 = vld [vmem:[%s3 + $0xa8] sm:$0xff]
  %v1335 = vld [vmem:[%s3 + $0xb0] sm:$0xff]
  %v1336 = vld [vmem:[%s3 + $0xb8] sm:$0xff]
  %v1337 = vld [vmem:[%s3 + $0xc0] sm:$0xff]
  %v1338 = vld [vmem:[%s3 + $0xc8] sm:$0xff]
  %v1339 = vld [vmem:[%s3 + $0xd0] sm:$0xff]
  %v1340 = vld [vmem:[%s3 + $0xd8] sm:$0xff]
  %v1341 = vld [vmem:[%s3 + $0xe0] sm:$0xff]
  %v1342 = vld [vmem:[%s3 + $0xe8] sm:$0xff]
  %v1343 = vld [vmem:[%s3 + $0xf0] sm:$0xff]
  %v1344 = vld [vmem:[%s3 + $0xf8] sm:$0xff]
  %v1345 = vld [vmem:[%s3 + $0x100] sm:$0xff]
  %v1346 = vld [vmem:[%s3 + $0x108] sm:$0xff]
  %v1347 = vld [vmem:[%s3 + $0x110] sm:$0xff]
  %v1348 = vld [vmem:[%s3 + $0x118] sm:$0xff]
  %v1349 = vld [vmem:[%s3 + $0x120] sm:$0xff]
  %v1350 = vld [vmem:[%s3 + $0x128] sm:$0xff]
  %v1351 = vld [vmem:[%s3 + $0x130] sm:$0xff]
  %v1352 = vld [vmem:[%s3 + $0x138] sm:$0xff]
  %v1353 = vld [vmem:[%s3 + $0x140] sm:$0xff]
  %v1354 = vld [vmem:[%s3 + $0x148] sm:$0xff]
  %v1355 = vld [vmem:[%s3 + $0x150] sm:$0xff]
  %v1356 = vld [vmem:[%s3 + $0x158] sm:$0xff]
  %v1357 = vld [vmem:[%s3 + $0x160] sm:$0xff]
  %v1358 = vld [vmem:[%s3 + $0x168] sm:$0xff]
  %v1359 = vld [vmem:[%s3 + $0x170] sm:$0xff]
  %v1360 = vld [vmem:[%s3 + $0x178] sm:$0xff]
  %v1361 = vld [vmem:[%s3 + $0x180] sm:$0xff]
  %v1362 = vld [vmem:[%s3 + $0x188] sm:$0xff]
  %v1363 = vld [vmem:[%s3 + $0x190] sm:$0xff]
  %v1364 = vld [vmem:[%s3 + $0x198] sm:$0xff]
  %v1365 = vld [vmem:[%s3 + $0x1a0] sm:$0xff]
  %v1366 = vld [vmem:[%s3 + $0x1a8] sm:$0xff]
  %v1367 = vld [vmem:[%s3 + $0x1b0] sm:$0xff]
  %v1368 = vld [vmem:[%s3 + $0x1b8] sm:$0xff]
  %v1369 = vld [vmem:[%s3 + $0x1c0] sm:$0xff]
  %v1370 = vld [vmem:[%s3 + $0x1c8] sm:$0xff]
  %v1371 = vld [vmem:[%s3 + $0x1d0] sm:$0xff]
  %v1372 = vld [vmem:[%s3 + $0x1d8] sm:$0xff]
  %v1373 = vld [vmem:[%s3 + $0x1e0] sm:$0xff]
  %v1374 = vld [vmem:[%s3 + $0x1e8] sm:$0xff]
  %v1375 = vld [vmem:[%s3 + $0x1f0] sm:$0xff]
  %v1376 = vld [vmem:[%s3 + $0x1f8] sm:$0xff]
  %1377 = vmatprep.subr.mxu0 %v1314
  %1378 = vmatpush1.msra.mxu0 %v1313
  %1379 = vmatprep.subr.mxu0 %v1318
  %1380 = vmatpush1.msra.mxu0 %v1317
  %1381 = vmatprep.subr.mxu0 %v1322
  %1382 = vmatpush1.msra.mxu0 %v1321
  %1383 = vmatprep.subr.mxu0 %v1326
  %1384 = vmatpush1.msra.mxu0 %v1325
  %1385 = vmatprep.subr.mxu0 %v1330
  %1386 = vmatpush1.msra.mxu0 %v1329
  %1387 = vmatprep.subr.mxu0 %v1334
  %1388 = vmatpush1.msra.mxu0 %v1333
  %1389 = vmatprep.subr.mxu0 %v1338
  %1390 = vmatpush1.msra.mxu0 %v1337
  %1391 = vmatprep.subr.mxu0 %v1342
  %1392 = vmatpush1.msra.mxu0 %v1341
  %1393 = vmatprep.subr.mxu0 %v1346
  %1394 = vmatpush1.msra.mxu0 %v1345
  %1395 = vmatprep.subr.mxu0 %v1350
  %1396 = vmatpush1.msra.mxu0 %v1349
  %1397 = vmatprep.subr.mxu0 %v1354
  %1398 = vmatpush1.msra.mxu0 %v1353
  %1399 = vmatprep.subr.mxu0 %v1358
  %1400 = vmatpush1.msra.mxu0 %v1357
  %1401 = vmatprep.subr.mxu0 %v1362
  %1402 = vmatpush1.msra.mxu0 %v1361
  %1403 = vmatprep.subr.mxu0 %v1366
  %1404 = vmatpush1.msra.mxu0 %v1365
  %1405 = vmatprep.subr.mxu0 %v1370
  %1406 = vmatpush1.msra.mxu0 %v1369
  %1407 = vmatprep.subr.mxu0 %v1374
  %1408 = vmatpush1.msra.mxu0 %v1373
  %1409 = vmatprep.subr.mxu0 0.0
  %1410 = vmatpush1.msra.mxu0 0.0
  %1411 = vmatprep.subr.mxu0 0.0
  %1412 = vmatpush1.msra.mxu0 0.0
  %1413 = vmatprep.subr.mxu0 0.0
  %1414 = vmatpush1.msra.mxu0 0.0
  %1415 = vmatprep.subr.mxu0 0.0
  %1416 = vmatpush1.msra.mxu0 0.0
  %1417 = vmatprep.subr.mxu0 0.0
  %1418 = vmatpush1.msra.mxu0 0.0
  %1419 = vmatprep.subr.mxu0 0.0
  %1420 = vmatpush1.msra.mxu0 0.0
  %1421 = vmatprep.subr.mxu0 0.0
  %1422 = vmatpush1.msra.mxu0 0.0
  %1423 = vmatprep.subr.mxu0 0.0
  %1424 = vmatpush1.msra.mxu0 0.0
  %1425 = vmatprep.subr.mxu0 0.0
  %1426 = vmatpush1.msra.mxu0 0.0
  %1427 = vmatprep.subr.mxu0 0.0
  %1428 = vmatpush1.msra.mxu0 0.0
  %1429 = vmatprep.subr.mxu0 0.0
  %1430 = vmatpush1.msra.mxu0 0.0
  %1431 = vmatprep.subr.mxu0 0.0
  %1432 = vmatpush1.msra.mxu0 0.0
  %1433 = vmatprep.subr.mxu0 0.0
  %1434 = vmatpush1.msra.mxu0 0.0
  %1435 = vmatprep.subr.mxu0 0.0
  %1436 = vmatpush1.msra.mxu0 0.0
  %1437 = vmatprep.subr.mxu0 0.0
  %1438 = vmatpush1.msra.mxu0 0.0
  %1439 = vmatprep.subr.mxu0 0.0
  %1440 = vmatpush1.msra.mxu0 0.0
  %1441 = vmatprep.mubr.f32.mxu0 0.0
  %1442 = vmatmul.mubr.f32.gmra.mrb[0].mxu0 %v1305
  %v1443 = vpop.f32.mrb[0].mxu0
  %v1444 = vadd.f32 0.0, %v1443
  %v1445 = vpop.f32.mrb[0].mxu0
  %v1446 = vadd.f32 0.0, %v1445
  %1447 = vdwg.mxu0
  %1448 = vmatprep.subr.mxu0 %v1316
  %1449 = vmatpush1.msra.mxu0 %v1315
  %1450 = vmatprep.subr.mxu0 %v1320
  %1451 = vmatpush1.msra.mxu0 %v1319
  %1452 = vmatprep.subr.mxu0 %v1324
  %1453 = vmatpush1.msra.mxu0 %v1323
  %1454 = vmatprep.subr.mxu0 %v1328
  %1455 = vmatpush1.msra.mxu0 %v1327
  %1456 = vmatprep.subr.mxu0 %v1332
  %1457 = vmatpush1.msra.mxu0 %v1331
  %1458 = vmatprep.subr.mxu0 %v1336
  %1459 = vmatpush1.msra.mxu0 %v1335
  %1460 = vmatprep.subr.mxu0 %v1340
  %1461 = vmatpush1.msra.mxu0 %v1339
  %1462 = vmatprep.subr.mxu0 %v1344
  %1463 = vmatpush1.msra.mxu0 %v1343
  %1464 = vmatprep.subr.mxu0 %v1348
  %1465 = vmatpush1.msra.mxu0 %v1347
  %1466 = vmatprep.subr.mxu0 %v1352
  %1467 = vmatpush1.msra.mxu0 %v1351
  %1468 = vmatprep.subr.mxu0 %v1356
  %1469 = vmatpush1.msra.mxu0 %v1355
  %1470 = vmatprep.subr.mxu0 %v1360
  %1471 = vmatpush1.msra.mxu0 %v1359
  %1472 = vmatprep.subr.mxu0 %v1364
  %1473 = vmatpush1.msra.mxu0 %v1363
  %1474 = vmatprep.subr.mxu0 %v1368
  %1475 = vmatpush1.msra.mxu0 %v1367
  %1476 = vmatprep.subr.mxu0 %v1372
  %1477 = vmatpush1.msra.mxu0 %v1371
  %1478 = vmatprep.subr.mxu0 %v1376
  %1479 = vmatpush1.msra.mxu0 %v1375
  %1480 = vmatprep.subr.mxu0 0.0
  %1481 = vmatpush1.msra.mxu0 0.0
  %1482 = vmatprep.subr.mxu0 0.0
  %1483 = vmatpush1.msra.mxu0 0.0
  %1484 = vmatprep.subr.mxu0 0.0
  %1485 = vmatpush1.msra.mxu0 0.0
  %1486 = vmatprep.subr.mxu0 0.0
  %1487 = vmatpush1.msra.mxu0 0.0
  %1488 = vmatprep.subr.mxu0 0.0
  %1489 = vmatpush1.msra.mxu0 0.0
  %1490 = vmatprep.subr.mxu0 0.0
  %1491 = vmatpush1.msra.mxu0 0.0
  %1492 = vmatprep.subr.mxu0 0.0
  %1493 = vmatpush1.msra.mxu0 0.0
  %1494 = vmatprep.subr.mxu0 0.0
  %1495 = vmatpush1.msra.mxu0 0.0
  %1496 = vmatprep.subr.mxu0 0.0
  %1497 = vmatpush1.msra.mxu0 0.0
  %1498 = vmatprep.subr.mxu0 0.0
  %1499 = vmatpush1.msra.mxu0 0.0
  %1500 = vmatprep.subr.mxu0 0.0
  %1501 = vmatpush1.msra.mxu0 0.0
  %1502 = vmatprep.subr.mxu0 0.0
  %1503 = vmatpush1.msra.mxu0 0.0
  %1504 = vmatprep.subr.mxu0 0.0
  %1505 = vmatpush1.msra.mxu0 0.0
  %1506 = vmatprep.subr.mxu0 0.0
  %1507 = vmatpush1.msra.mxu0 0.0
  %1508 = vmatprep.subr.mxu0 0.0
  %1509 = vmatpush1.msra.mxu0 0.0
  %1510 = vmatprep.subr.mxu0 0.0
  %1511 = vmatpush1.msra.mxu0 0.0
  %1512 = vmatprep.mubr.f32.mxu0 0.0
  %1513 = vmatmul.mubr.f32.gmra.mrb[0].mxu0 %v1305
  %v1514 = vpop.f32.mrb[0].mxu0
  %v1515 = vadd.f32 0.0, %v1514
  %v1516 = vpop.f32.mrb[0].mxu0
  %v1517 = vadd.f32 0.0, %v1516
  %1518 = vdwg.mxu0
  %v1519 = vadd.f32 %v1309, %v1444
  %v1520 = vadd.f32 %v1310, %v1446
  %v1521 = vadd.f32 %v1311, %v1515
  %v1522 = vadd.f32 %v1312, %v1517
  %v1523 = vxor.u32 %v1519, 2147483648
  %v1524 = vmul.f32 %v1523, 1.442695
  %v1525 = vpow.pop %v1524
  %v1526 = vadd.f32 %v1525, 1.0
  %v1527 = vrcp.pop %v1526
  %v1528 = vmul.f32 1.0, %v1527
  %v1529 = vxor.u32 %v1520, 2147483648
  %v1530 = vmul.f32 %v1529, 1.442695
  %v1531 = vpow.pop %v1530
  %v1532 = vadd.f32 %v1531, 1.0
  %v1533 = vrcp.pop %v1532
  %v1534 = vmul.f32 1.0, %v1533
  %v1535 = vtanh.pop %v1521
  %v1536 = vxor.u32 %v1522, 2147483648
  %v1537 = vmul.f32 %v1536, 1.442695
  %v1538 = vpow.pop %v1537
  %v1539 = vadd.f32 %v1538, 1.0
  %v1540 = vrcp.pop %v1539
  %v1541 = vmul.f32 1.0, %v1540
  %v1542 = vmul.f32 %v1534, %v1303
  %v1543 = vmul.f32 %v1528, %v1535
  %v1544 = vadd.f32 %v1542, %v1543
  %v1545 = vtanh.pop %v1544
  %v1546 = vmul.f32 %v1541, %v1545
  %s1547 = scalar_lea.vmem %s4, 32
  %1548 = vst [vmem:[%s1547] sm:$0xff] %v1546
  %s1549 = scalar_lea.vmem [#allocation2], 160
  %v1550 = vld [vmem:[%s1549] sm:$0xff]
  %v1551 = vld [vmem:[%s1549 + $0x8] sm:$0xff]
  %v1552 = vld [vmem:[%s1549 + $0x10] sm:$0xff]
  %v1553 = vld [vmem:[%s1549 + $0x18] sm:$0xff]
  %v1554 = vld [vmem:[%s3] sm:$0xff]
  %v1555 = vld [vmem:[%s3 + $0x8] sm:$0xff]
  %v1556 = vld [vmem:[%s3 + $0x10] sm:$0xff]
  %v1557 = vld [vmem:[%s3 + $0x18] sm:$0xff]
  %v1558 = vld [vmem:[%s3 + $0x20] sm:$0xff]
  %v1559 = vld [vmem:[%s3 + $0x28] sm:$0xff]
  %v1560 = vld [vmem:[%s3 + $0x30] sm:$0xff]
  %v1561 = vld [vmem:[%s3 + $0x38] sm:$0xff]
  %v1562 = vld [vmem:[%s3 + $0x40] sm:$0xff]
  %v1563 = vld [vmem:[%s3 + $0x48] sm:$0xff]
  %v1564 = vld [vmem:[%s3 + $0x50] sm:$0xff]
  %v1565 = vld [vmem:[%s3 + $0x58] sm:$0xff]
  %v1566 = vld [vmem:[%s3 + $0x60] sm:$0xff]
  %v1567 = vld [vmem:[%s3 + $0x68] sm:$0xff]
  %v1568 = vld [vmem:[%s3 + $0x70] sm:$0xff]
  %v1569 = vld [vmem:[%s3 + $0x78] sm:$0xff]
  %v1570 = vld [vmem:[%s3 + $0x80] sm:$0xff]
  %v1571 = vld [vmem:[%s3 + $0x88] sm:$0xff]
  %v1572 = vld [vmem:[%s3 + $0x90] sm:$0xff]
  %v1573 = vld [vmem:[%s3 + $0x98] sm:$0xff]
  %v1574 = vld [vmem:[%s3 + $0xa0] sm:$0xff]
  %v1575 = vld [vmem:[%s3 + $0xa8] sm:$0xff]
  %v1576 = vld [vmem:[%s3 + $0xb0] sm:$0xff]
  %v1577 = vld [vmem:[%s3 + $0xb8] sm:$0xff]
  %v1578 = vld [vmem:[%s3 + $0xc0] sm:$0xff]
  %v1579 = vld [vmem:[%s3 + $0xc8] sm:$0xff]
  %v1580 = vld [vmem:[%s3 + $0xd0] sm:$0xff]
  %v1581 = vld [vmem:[%s3 + $0xd8] sm:$0xff]
  %v1582 = vld [vmem:[%s3 + $0xe0] sm:$0xff]
  %v1583 = vld [vmem:[%s3 + $0xe8] sm:$0xff]
  %v1584 = vld [vmem:[%s3 + $0xf0] sm:$0xff]
  %v1585 = vld [vmem:[%s3 + $0xf8] sm:$0xff]
  %v1586 = vld [vmem:[%s3 + $0x100] sm:$0xff]
  %v1587 = vld [vmem:[%s3 + $0x108] sm:$0xff]
  %v1588 = vld [vmem:[%s3 + $0x110] sm:$0xff]
  %v1589 = vld [vmem:[%s3 + $0x118] sm:$0xff]
  %v1590 = vld [vmem:[%s3 + $0x120] sm:$0xff]
  %v1591 = vld [vmem:[%s3 + $0x128] sm:$0xff]
  %v1592 = vld [vmem:[%s3 + $0x130] sm:$0xff]
  %v1593 = vld [vmem:[%s3 + $0x138] sm:$0xff]
  %v1594 = vld [vmem:[%s3 + $0x140] sm:$0xff]
  %v1595 = vld [vmem:[%s3 + $0x148] sm:$0xff]
  %v1596 = vld [vmem:[%s3 + $0x150] sm:$0xff]
  %v1597 = vld [vmem:[%s3 + $0x158] sm:$0xff]
  %v1598 = vld [vmem:[%s3 + $0x160] sm:$0xff]
  %v1599 = vld [vmem:[%s3 + $0x168] sm:$0xff]
  %v1600 = vld [vmem:[%s3 + $0x170] sm:$0xff]
  %v1601 = vld [vmem:[%s3 + $0x178] sm:$0xff]
  %v1602 = vld [vmem:[%s3 + $0x180] sm:$0xff]
  %v1603 = vld [vmem:[%s3 + $0x188] sm:$0xff]
  %v1604 = vld [vmem:[%s3 + $0x190] sm:$0xff]
  %v1605 = vld [vmem:[%s3 + $0x198] sm:$0xff]
  %v1606 = vld [vmem:[%s3 + $0x1a0] sm:$0xff]
  %v1607 = vld [vmem:[%s3 + $0x1a8] sm:$0xff]
  %v1608 = vld [vmem:[%s3 + $0x1b0] sm:$0xff]
  %v1609 = vld [vmem:[%s3 + $0x1b8] sm:$0xff]
  %v1610 = vld [vmem:[%s3 + $0x1c0] sm:$0xff]
  %v1611 = vld [vmem:[%s3 + $0x1c8] sm:$0xff]
  %v1612 = vld [vmem:[%s3 + $0x1d0] sm:$0xff]
  %v1613 = vld [vmem:[%s3 + $0x1d8] sm:$0xff]
  %v1614 = vld [vmem:[%s3 + $0x1e0] sm:$0xff]
  %v1615 = vld [vmem:[%s3 + $0x1e8] sm:$0xff]
  %v1616 = vld [vmem:[%s3 + $0x1f0] sm:$0xff]
  %v1617 = vld [vmem:[%s3 + $0x1f8] sm:$0xff]
  %1618 = vmatprep.subr.mxu0 %v1555
  %1619 = vmatpush1.msra.mxu0 %v1554
  %1620 = vmatprep.subr.mxu0 %v1559
  %1621 = vmatpush1.msra.mxu0 %v1558
  %1622 = vmatprep.subr.mxu0 %v1563
  %1623 = vmatpush1.msra.mxu0 %v1562
  %1624 = vmatprep.subr.mxu0 %v1567
  %1625 = vmatpush1.msra.mxu0 %v1566
  %1626 = vmatprep.subr.mxu0 %v1571
  %1627 = vmatpush1.msra.mxu0 %v1570
  %1628 = vmatprep.subr.mxu0 %v1575
  %1629 = vmatpush1.msra.mxu0 %v1574
  %1630 = vmatprep.subr.mxu0 %v1579
  %1631 = vmatpush1.msra.mxu0 %v1578
  %1632 = vmatprep.subr.mxu0 %v1583
  %1633 = vmatpush1.msra.mxu0 %v1582
  %1634 = vmatprep.subr.mxu0 %v1587
  %1635 = vmatpush1.msra.mxu0 %v1586
  %1636 = vmatprep.subr.mxu0 %v1591
  %1637 = vmatpush1.msra.mxu0 %v1590
  %1638 = vmatprep.subr.mxu0 %v1595
  %1639 = vmatpush1.msra.mxu0 %v1594
  %1640 = vmatprep.subr.mxu0 %v1599
  %1641 = vmatpush1.msra.mxu0 %v1598
  %1642 = vmatprep.subr.mxu0 %v1603
  %1643 = vmatpush1.msra.mxu0 %v1602
  %1644 = vmatprep.subr.mxu0 %v1607
  %1645 = vmatpush1.msra.mxu0 %v1606
  %1646 = vmatprep.subr.mxu0 %v1611
  %1647 = vmatpush1.msra.mxu0 %v1610
  %1648 = vmatprep.subr.mxu0 %v1615
  %1649 = vmatpush1.msra.mxu0 %v1614
  %1650 = vmatprep.subr.mxu0 0.0
  %1651 = vmatpush1.msra.mxu0 0.0
  %1652 = vmatprep.subr.mxu0 0.0
  %1653 = vmatpush1.msra.mxu0 0.0
  %1654 = vmatprep.subr.mxu0 0.0
  %1655 = vmatpush1.msra.mxu0 0.0
  %1656 = vmatprep.subr.mxu0 0.0
  %1657 = vmatpush1.msra.mxu0 0.0
  %1658 = vmatprep.subr.mxu0 0.0
  %1659 = vmatpush1.msra.mxu0 0.0
  %1660 = vmatprep.subr.mxu0 0.0
  %1661 = vmatpush1.msra.mxu0 0.0
  %1662 = vmatprep.subr.mxu0 0.0
  %1663 = vmatpush1.msra.mxu0 0.0
  %1664 = vmatprep.subr.mxu0 0.0
  %1665 = vmatpush1.msra.mxu0 0.0
  %1666 = vmatprep.subr.mxu0 0.0
  %1667 = vmatpush1.msra.mxu0 0.0
  %1668 = vmatprep.subr.mxu0 0.0
  %1669 = vmatpush1.msra.mxu0 0.0
  %1670 = vmatprep.subr.mxu0 0.0
  %1671 = vmatpush1.msra.mxu0 0.0
  %1672 = vmatprep.subr.mxu0 0.0
  %1673 = vmatpush1.msra.mxu0 0.0
  %1674 = vmatprep.subr.mxu0 0.0
  %1675 = vmatpush1.msra.mxu0 0.0
  %1676 = vmatprep.subr.mxu0 0.0
  %1677 = vmatpush1.msra.mxu0 0.0
  %1678 = vmatprep.subr.mxu0 0.0
  %1679 = vmatpush1.msra.mxu0 0.0
  %1680 = vmatprep.subr.mxu0 0.0
  %1681 = vmatpush1.msra.mxu0 0.0
  %1682 = vmatprep.mubr.f32.mxu0 0.0
  %1683 = vmatmul.mubr.f32.gmra.mrb[0].mxu0 %v1546
  %v1684 = vpop.f32.mrb[0].mxu0
  %v1685 = vadd.f32 0.0, %v1684
  %v1686 = vpop.f32.mrb[0].mxu0
  %v1687 = vadd.f32 0.0, %v1686
  %1688 = vdwg.mxu0
  %1689 = vmatprep.subr.mxu0 %v1557
  %1690 = vmatpush1.msra.mxu0 %v1556
  %1691 = vmatprep.subr.mxu0 %v1561
  %1692 = vmatpush1.msra.mxu0 %v1560
  %1693 = vmatprep.subr.mxu0 %v1565
  %1694 = vmatpush1.msra.mxu0 %v1564
  %1695 = vmatprep.subr.mxu0 %v1569
  %1696 = vmatpush1.msra.mxu0 %v1568
  %1697 = vmatprep.subr.mxu0 %v1573
  %1698 = vmatpush1.msra.mxu0 %v1572
  %1699 = vmatprep.subr.mxu0 %v1577
  %1700 = vmatpush1.msra.mxu0 %v1576
  %1701 = vmatprep.subr.mxu0 %v1581
  %1702 = vmatpush1.msra.mxu0 %v1580
  %1703 = vmatprep.subr.mxu0 %v1585
  %1704 = vmatpush1.msra.mxu0 %v1584
  %1705 = vmatprep.subr.mxu0 %v1589
  %1706 = vmatpush1.msra.mxu0 %v1588
  %1707 = vmatprep.subr.mxu0 %v1593
  %1708 = vmatpush1.msra.mxu0 %v1592
  %1709 = vmatprep.subr.mxu0 %v1597
  %1710 = vmatpush1.msra.mxu0 %v1596
  %1711 = vmatprep.subr.mxu0 %v1601
  %1712 = vmatpush1.msra.mxu0 %v1600
  %1713 = vmatprep.subr.mxu0 %v1605
  %1714 = vmatpush1.msra.mxu0 %v1604
  %1715 = vmatprep.subr.mxu0 %v1609
  %1716 = vmatpush1.msra.mxu0 %v1608
  %1717 = vmatprep.subr.mxu0 %v1613
  %1718 = vmatpush1.msra.mxu0 %v1612
  %1719 = vmatprep.subr.mxu0 %v1617
  %1720 = vmatpush1.msra.mxu0 %v1616
  %1721 = vmatprep.subr.mxu0 0.0
  %1722 = vmatpush1.msra.mxu0 0.0
  %1723 = vmatprep.subr.mxu0 0.0
  %1724 = vmatpush1.msra.mxu0 0.0
  %1725 = vmatprep.subr.mxu0 0.0
  %1726 = vmatpush1.msra.mxu0 0.0
  %1727 = vmatprep.subr.mxu0 0.0
  %1728 = vmatpush1.msra.mxu0 0.0
  %1729 = vmatprep.subr.mxu0 0.0
  %1730 = vmatpush1.msra.mxu0 0.0
  %1731 = vmatprep.subr.mxu0 0.0
  %1732 = vmatpush1.msra.mxu0 0.0
  %1733 = vmatprep.subr.mxu0 0.0
  %1734 = vmatpush1.msra.mxu0 0.0
  %1735 = vmatprep.subr.mxu0 0.0
  %1736 = vmatpush1.msra.mxu0 0.0
  %1737 = vmatprep.subr.mxu0 0.0
  %1738 = vmatpush1.msra.mxu0 0.0
  %1739 = vmatprep.subr.mxu0 0.0
  %1740 = vmatpush1.msra.mxu0 0.0
  %1741 = vmatprep.subr.mxu0 0.0
  %1742 = vmatpush1.msra.mxu0 0.0
  %1743 = vmatprep.subr.mxu0 0.0
  %1744 = vmatpush1.msra.mxu0 0.0
  %1745 = vmatprep.subr.mxu0 0.0
  %1746 = vmatpush1.msra.mxu0 0.0
  %1747 = vmatprep.subr.mxu0 0.0
  %1748 = vmatpush1.msra.mxu0 0.0
  %1749 = vmatprep.subr.mxu0 0.0
  %1750 = vmatpush1.msra.mxu0 0.0
  %1751 = vmatprep.subr.mxu0 0.0
  %1752 = vmatpush1.msra.mxu0 0.0
  %1753 = vmatprep.mubr.f32.mxu0 0.0
  %1754 = vmatmul.mubr.f32.gmra.mrb[0].mxu0 %v1546
  %v1755 = vpop.f32.mrb[0].mxu0
  %v1756 = vadd.f32 0.0, %v1755
  %v1757 = vpop.f32.mrb[0].mxu0
  %v1758 = vadd.f32 0.0, %v1757
  %1759 = vdwg.mxu0
  %v1760 = vadd.f32 %v1550, %v1685
  %v1761 = vadd.f32 %v1551, %v1687
  %v1762 = vadd.f32 %v1552, %v1756
  %v1763 = vadd.f32 %v1553, %v1758
  %v1764 = vxor.u32 %v1760, 2147483648
  %v1765 = vmul.f32 %v1764, 1.442695
  %v1766 = vpow.pop %v1765
  %v1767 = vadd.f32 %v1766, 1.0
  %v1768 = vrcp.pop %v1767
  %v1769 = vmul.f32 1.0, %v1768
  %v1770 = vxor.u32 %v1761, 2147483648
  %v1771 = vmul.f32 %v1770, 1.442695
  %v1772 = vpow.pop %v1771
  %v1773 = vadd.f32 %v1772, 1.0
  %v1774 = vrcp.pop %v1773
  %v1775 = vmul.f32 1.0, %v1774
  %v1776 = vtanh.pop %v1762
  %v1777 = vxor.u32 %v1763, 2147483648
  %v1778 = vmul.f32 %v1777, 1.442695
  %v1779 = vpow.pop %v1778
  %v1780 = vadd.f32 %v1779, 1.0
  %v1781 = vrcp.pop %v1780
  %v1782 = vmul.f32 1.0, %v1781
  %v1783 = vmul.f32 %v1775, %v1544
  %v1784 = vmul.f32 %v1769, %v1776
  %v1785 = vadd.f32 %v1783, %v1784
  %v1786 = vtanh.pop %v1785
  %v1787 = vmul.f32 %v1782, %v1786
  %s1788 = scalar_lea.vmem %s4, 40
  %1789 = vst [vmem:[%s1788] sm:$0xff] %v1787
  %s1790 = scalar_lea.vmem [#allocation2], 192
  %v1791 = vld [vmem:[%s1790] sm:$0xff]
  %v1792 = vld [vmem:[%s1790 + $0x8] sm:$0xff]
  %v1793 = vld [vmem:[%s1790 + $0x10] sm:$0xff]
  %v1794 = vld [vmem:[%s1790 + $0x18] sm:$0xff]
  %v1795 = vld [vmem:[%s3] sm:$0xff]
  %v1796 = vld [vmem:[%s3 + $0x8] sm:$0xff]
  %v1797 = vld [vmem:[%s3 + $0x10] sm:$0xff]
  %v1798 = vld [vmem:[%s3 + $0x18] sm:$0xff]
  %v1799 = vld [vmem:[%s3 + $0x20] sm:$0xff]
  %v1800 = vld [vmem:[%s3 + $0x28] sm:$0xff]
  %v1801 = vld [vmem:[%s3 + $0x30] sm:$0xff]
  %v1802 = vld [vmem:[%s3 + $0x38] sm:$0xff]
  %v1803 = vld [vmem:[%s3 + $0x40] sm:$0xff]
  %v1804 = vld [vmem:[%s3 + $0x48] sm:$0xff]
  %v1805 = vld [vmem:[%s3 + $0x50] sm:$0xff]
  %v1806 = vld [vmem:[%s3 + $0x58] sm:$0xff]
  %v1807 = vld [vmem:[%s3 + $0x60] sm:$0xff]
  %v1808 = vld [vmem:[%s3 + $0x68] sm:$0xff]
  %v1809 = vld [vmem:[%s3 + $0x70] sm:$0xff]
  %v1810 = vld [vmem:[%s3 + $0x78] sm:$0xff]
  %v1811 = vld [vmem:[%s3 + $0x80] sm:$0xff]
  %v1812 = vld [vmem:[%s3 + $0x88] sm:$0xff]
  %v1813 = vld [vmem:[%s3 + $0x90] sm:$0xff]
  %v1814 = vld [vmem:[%s3 + $0x98] sm:$0xff]
  %v1815 = vld [vmem:[%s3 + $0xa0] sm:$0xff]
  %v1816 = vld [vmem:[%s3 + $0xa8] sm:$0xff]
  %v1817 = vld [vmem:[%s3 + $0xb0] sm:$0xff]
  %v1818 = vld [vmem:[%s3 + $0xb8] sm:$0xff]
  %v1819 = vld [vmem:[%s3 + $0xc0] sm:$0xff]
  %v1820 = vld [vmem:[%s3 + $0xc8] sm:$0xff]
  %v1821 = vld [vmem:[%s3 + $0xd0] sm:$0xff]
  %v1822 = vld [vmem:[%s3 + $0xd8] sm:$0xff]
  %v1823 = vld [vmem:[%s3 + $0xe0] sm:$0xff]
  %v1824 = vld [vmem:[%s3 + $0xe8] sm:$0xff]
  %v1825 = vld [vmem:[%s3 + $0xf0] sm:$0xff]
  %v1826 = vld [vmem:[%s3 + $0xf8] sm:$0xff]
  %v1827 = vld [vmem:[%s3 + $0x100] sm:$0xff]
  %v1828 = vld [vmem:[%s3 + $0x108] sm:$0xff]
  %v1829 = vld [vmem:[%s3 + $0x110] sm:$0xff]
  %v1830 = vld [vmem:[%s3 + $0x118] sm:$0xff]
  %v1831 = vld [vmem:[%s3 + $0x120] sm:$0xff]
  %v1832 = vld [vmem:[%s3 + $0x128] sm:$0xff]
  %v1833 = vld [vmem:[%s3 + $0x130] sm:$0xff]
  %v1834 = vld [vmem:[%s3 + $0x138] sm:$0xff]
  %v1835 = vld [vmem:[%s3 + $0x140] sm:$0xff]
  %v1836 = vld [vmem:[%s3 + $0x148] sm:$0xff]
  %v1837 = vld [vmem:[%s3 + $0x150] sm:$0xff]
  %v1838 = vld [vmem:[%s3 + $0x158] sm:$0xff]
  %v1839 = vld [vmem:[%s3 + $0x160] sm:$0xff]
  %v1840 = vld [vmem:[%s3 + $0x168] sm:$0xff]
  %v1841 = vld [vmem:[%s3 + $0x170] sm:$0xff]
  %v1842 = vld [vmem:[%s3 + $0x178] sm:$0xff]
  %v1843 = vld [vmem:[%s3 + $0x180] sm:$0xff]
  %v1844 = vld [vmem:[%s3 + $0x188] sm:$0xff]
  %v1845 = vld [vmem:[%s3 + $0x190] sm:$0xff]
  %v1846 = vld [vmem:[%s3 + $0x198] sm:$0xff]
  %v1847 = vld [vmem:[%s3 + $0x1a0] sm:$0xff]
  %v1848 = vld [vmem:[%s3 + $0x1a8] sm:$0xff]
  %v1849 = vld [vmem:[%s3 + $0x1b0] sm:$0xff]
  %v1850 = vld [vmem:[%s3 + $0x1b8] sm:$0xff]
  %v1851 = vld [vmem:[%s3 + $0x1c0] sm:$0xff]
  %v1852 = vld [vmem:[%s3 + $0x1c8] sm:$0xff]
  %v1853 = vld [vmem:[%s3 + $0x1d0] sm:$0xff]
  %v1854 = vld [vmem:[%s3 + $0x1d8] sm:$0xff]
  %v1855 = vld [vmem:[%s3 + $0x1e0] sm:$0xff]
  %v1856 = vld [vmem:[%s3 + $0x1e8] sm:$0xff]
  %v1857 = vld [vmem:[%s3 + $0x1f0] sm:$0xff]
  %v1858 = vld [vmem:[%s3 + $0x1f8] sm:$0xff]
  %1859 = vmatprep.subr.mxu0 %v1796
  %1860 = vmatpush1.msra.mxu0 %v1795
  %1861 = vmatprep.subr.mxu0 %v1800
  %1862 = vmatpush1.msra.mxu0 %v1799
  %1863 = vmatprep.subr.mxu0 %v1804
  %1864 = vmatpush1.msra.mxu0 %v1803
  %1865 = vmatprep.subr.mxu0 %v1808
  %1866 = vmatpush1.msra.mxu0 %v1807
  %1867 = vmatprep.subr.mxu0 %v1812
  %1868 = vmatpush1.msra.mxu0 %v1811
  %1869 = vmatprep.subr.mxu0 %v1816
  %1870 = vmatpush1.msra.mxu0 %v1815
  %1871 = vmatprep.subr.mxu0 %v1820
  %1872 = vmatpush1.msra.mxu0 %v1819
  %1873 = vmatprep.subr.mxu0 %v1824
  %1874 = vmatpush1.msra.mxu0 %v1823
  %1875 = vmatprep.subr.mxu0 %v1828
  %1876 = vmatpush1.msra.mxu0 %v1827
  %1877 = vmatprep.subr.mxu0 %v1832
  %1878 = vmatpush1.msra.mxu0 %v1831
  %1879 = vmatprep.subr.mxu0 %v1836
  %1880 = vmatpush1.msra.mxu0 %v1835
  %1881 = vmatprep.subr.mxu0 %v1840
  %1882 = vmatpush1.msra.mxu0 %v1839
  %1883 = vmatprep.subr.mxu0 %v1844
  %1884 = vmatpush1.msra.mxu0 %v1843
  %1885 = vmatprep.subr.mxu0 %v1848
  %1886 = vmatpush1.msra.mxu0 %v1847
  %1887 = vmatprep.subr.mxu0 %v1852
  %1888 = vmatpush1.msra.mxu0 %v1851
  %1889 = vmatprep.subr.mxu0 %v1856
  %1890 = vmatpush1.msra.mxu0 %v1855
  %1891 = vmatprep.subr.mxu0 0.0
  %1892 = vmatpush1.msra.mxu0 0.0
  %1893 = vmatprep.subr.mxu0 0.0
  %1894 = vmatpush1.msra.mxu0 0.0
  %1895 = vmatprep.subr.mxu0 0.0
  %1896 = vmatpush1.msra.mxu0 0.0
  %1897 = vmatprep.subr.mxu0 0.0
  %1898 = vmatpush1.msra.mxu0 0.0
  %1899 = vmatprep.subr.mxu0 0.0
  %1900 = vmatpush1.msra.mxu0 0.0
  %1901 = vmatprep.subr.mxu0 0.0
  %1902 = vmatpush1.msra.mxu0 0.0
  %1903 = vmatprep.subr.mxu0 0.0
  %1904 = vmatpush1.msra.mxu0 0.0
  %1905 = vmatprep.subr.mxu0 0.0
  %1906 = vmatpush1.msra.mxu0 0.0
  %1907 = vmatprep.subr.mxu0 0.0
  %1908 = vmatpush1.msra.mxu0 0.0
  %1909 = vmatprep.subr.mxu0 0.0
  %1910 = vmatpush1.msra.mxu0 0.0
  %1911 = vmatprep.subr.mxu0 0.0
  %1912 = vmatpush1.msra.mxu0 0.0
  %1913 = vmatprep.subr.mxu0 0.0
  %1914 = vmatpush1.msra.mxu0 0.0
  %1915 = vmatprep.subr.mxu0 0.0
  %1916 = vmatpush1.msra.mxu0 0.0
  %1917 = vmatprep.subr.mxu0 0.0
  %1918 = vmatpush1.msra.mxu0 0.0
  %1919 = vmatprep.subr.mxu0 0.0
  %1920 = vmatpush1.msra.mxu0 0.0
  %1921 = vmatprep.subr.mxu0 0.0
  %1922 = vmatpush1.msra.mxu0 0.0
  %1923 = vmatprep.mubr.f32.mxu0 0.0
  %1924 = vmatmul.mubr.f32.gmra.mrb[0].mxu0 %v1787
  %v1925 = vpop.f32.mrb[0].mxu0
  %v1926 = vadd.f32 0.0, %v1925
  %v1927 = vpop.f32.mrb[0].mxu0
  %v1928 = vadd.f32 0.0, %v1927
  %1929 = vdwg.mxu0
  %1930 = vmatprep.subr.mxu0 %v1798
  %1931 = vmatpush1.msra.mxu0 %v1797
  %1932 = vmatprep.subr.mxu0 %v1802
  %1933 = vmatpush1.msra.mxu0 %v1801
  %1934 = vmatprep.subr.mxu0 %v1806
  %1935 = vmatpush1.msra.mxu0 %v1805
  %1936 = vmatprep.subr.mxu0 %v1810
  %1937 = vmatpush1.msra.mxu0 %v1809
  %1938 = vmatprep.subr.mxu0 %v1814
  %1939 = vmatpush1.msra.mxu0 %v1813
  %1940 = vmatprep.subr.mxu0 %v1818
  %1941 = vmatpush1.msra.mxu0 %v1817
  %1942 = vmatprep.subr.mxu0 %v1822
  %1943 = vmatpush1.msra.mxu0 %v1821
  %1944 = vmatprep.subr.mxu0 %v1826
  %1945 = vmatpush1.msra.mxu0 %v1825
  %1946 = vmatprep.subr.mxu0 %v1830
  %1947 = vmatpush1.msra.mxu0 %v1829
  %1948 = vmatprep.subr.mxu0 %v1834
  %1949 = vmatpush1.msra.mxu0 %v1833
  %1950 = vmatprep.subr.mxu0 %v1838
  %1951 = vmatpush1.msra.mxu0 %v1837
  %1952 = vmatprep.subr.mxu0 %v1842
  %1953 = vmatpush1.msra.mxu0 %v1841
  %1954 = vmatprep.subr.mxu0 %v1846
  %1955 = vmatpush1.msra.mxu0 %v1845
  %1956 = vmatprep.subr.mxu0 %v1850
  %1957 = vmatpush1.msra.mxu0 %v1849
  %1958 = vmatprep.subr.mxu0 %v1854
  %1959 = vmatpush1.msra.mxu0 %v1853
  %1960 = vmatprep.subr.mxu0 %v1858
  %1961 = vmatpush1.msra.mxu0 %v1857
  %1962 = vmatprep.subr.mxu0 0.0
  %1963 = vmatpush1.msra.mxu0 0.0
  %1964 = vmatprep.subr.mxu0 0.0
  %1965 = vmatpush1.msra.mxu0 0.0
  %1966 = vmatprep.subr.mxu0 0.0
  %1967 = vmatpush1.msra.mxu0 0.0
  %1968 = vmatprep.subr.mxu0 0.0
  %1969 = vmatpush1.msra.mxu0 0.0
  %1970 = vmatprep.subr.mxu0 0.0
  %1971 = vmatpush1.msra.mxu0 0.0
  %1972 = vmatprep.subr.mxu0 0.0
  %1973 = vmatpush1.msra.mxu0 0.0
  %1974 = vmatprep.subr.mxu0 0.0
  %1975 = vmatpush1.msra.mxu0 0.0
  %1976 = vmatprep.subr.mxu0 0.0
  %1977 = vmatpush1.msra.mxu0 0.0
  %1978 = vmatprep.subr.mxu0 0.0
  %1979 = vmatpush1.msra.mxu0 0.0
  %1980 = vmatprep.subr.mxu0 0.0
  %1981 = vmatpush1.msra.mxu0 0.0
  %1982 = vmatprep.subr.mxu0 0.0
  %1983 = vmatpush1.msra.mxu0 0.0
  %1984 = vmatprep.subr.mxu0 0.0
  %1985 = vmatpush1.msra.mxu0 0.0
  %1986 = vmatprep.subr.mxu0 0.0
  %1987 = vmatpush1.msra.mxu0 0.0
  %1988 = vmatprep.subr.mxu0 0.0
  %1989 = vmatpush1.msra.mxu0 0.0
  %1990 = vmatprep.subr.mxu0 0.0
  %1991 = vmatpush1.msra.mxu0 0.0
  %1992 = vmatprep.subr.mxu0 0.0
  %1993 = vmatpush1.msra.mxu0 0.0
  %1994 = vmatprep.mubr.f32.mxu0 0.0
  %1995 = vmatmul.mubr.f32.gmra.mrb[0].mxu0 %v1787
  %v1996 = vpop.f32.mrb[0].mxu0
  %v1997 = vadd.f32 0.0, %v1996
  %v1998 = vpop.f32.mrb[0].mxu0
  %v1999 = vadd.f32 0.0, %v1998
  %2000 = vdwg.mxu0
  %v2001 = vadd.f32 %v1791, %v1926
  %v2002 = vadd.f32 %v1792, %v1928
  %v2003 = vadd.f32 %v1793, %v1997
  %v2004 = vadd.f32 %v1794, %v1999
  %v2005 = vxor.u32 %v2001, 2147483648
  %v2006 = vmul.f32 %v2005, 1.442695
  %v2007 = vpow.pop %v2006
  %v2008 = vadd.f32 %v2007, 1.0
  %v2009 = vrcp.pop %v2008
  %v2010 = vmul.f32 1.0, %v2009
  %v2011 = vxor.u32 %v2002, 2147483648
  %v2012 = vmul.f32 %v2011, 1.442695
  %v2013 = vpow.pop %v2012
  %v2014 = vadd.f32 %v2013, 1.0
  %v2015 = vrcp.pop %v2014
  %v2016 = vmul.f32 1.0, %v2015
  %v2017 = vtanh.pop %v2003
  %v2018 = vxor.u32 %v2004, 2147483648
  %v2019 = vmul.f32 %v2018, 1.442695
  %v2020 = vpow.pop %v2019
  %v2021 = vadd.f32 %v2020, 1.0
  %v2022 = vrcp.pop %v2021
  %v2023 = vmul.f32 1.0, %v2022
  %v2024 = vmul.f32 %v2016, %v1785
  %v2025 = vmul.f32 %v2010, %v2017
  %v2026 = vadd.f32 %v2024, %v2025
  %v2027 = vtanh.pop %v2026
  %v2028 = vmul.f32 %v2023, %v2027
  %s2029 = scalar_lea.vmem %s4, 48
  %2030 = vst [vmem:[%s2029] sm:$0xff] %v2028
  %s2031 = scalar_lea.vmem [#allocation2], 224
  %v2032 = vld [vmem:[%s2031] sm:$0xff]
  %v2033 = vld [vmem:[%s2031 + $0x8] sm:$0xff]
  %v2034 = vld [vmem:[%s2031 + $0x10] sm:$0xff]
  %v2035 = vld [vmem:[%s2031 + $0x18] sm:$0xff]
  %v2036 = vld [vmem:[%s3] sm:$0xff]
  %v2037 = vld [vmem:[%s3 + $0x8] sm:$0xff]
  %v2038 = vld [vmem:[%s3 + $0x10] sm:$0xff]
  %v2039 = vld [vmem:[%s3 + $0x18] sm:$0xff]
  %v2040 = vld [vmem:[%s3 + $0x20] sm:$0xff]
  %v2041 = vld [vmem:[%s3 + $0x28] sm:$0xff]
  %v2042 = vld [vmem:[%s3 + $0x30] sm:$0xff]
  %v2043 = vld [vmem:[%s3 + $0x38] sm:$0xff]
  %v2044 = vld [vmem:[%s3 + $0x40] sm:$0xff]
  %v2045 = vld [vmem:[%s3 + $0x48] sm:$0xff]
  %v2046 = vld [vmem:[%s3 + $0x50] sm:$0xff]
  %v2047 = vld [vmem:[%s3 + $0x58] sm:$0xff]
  %v2048 = vld [vmem:[%s3 + $0x60] sm:$0xff]
  %v2049 = vld [vmem:[%s3 + $0x68] sm:$0xff]
  %v2050 = vld [vmem:[%s3 + $0x70] sm:$0xff]
  %v2051 = vld [vmem:[%s3 + $0x78] sm:$0xff]
  %v2052 = vld [vmem:[%s3 + $0x80] sm:$0xff]
  %v2053 = vld [vmem:[%s3 + $0x88] sm:$0xff]
  %v2054 = vld [vmem:[%s3 + $0x90] sm:$0xff]
  %v2055 = vld [vmem:[%s3 + $0x98] sm:$0xff]
  %v2056 = vld [vmem:[%s3 + $0xa0] sm:$0xff]
  %v2057 = vld [vmem:[%s3 + $0xa8] sm:$0xff]
  %v2058 = vld [vmem:[%s3 + $0xb0] sm:$0xff]
  %v2059 = vld [vmem:[%s3 + $0xb8] sm:$0xff]
  %v2060 = vld [vmem:[%s3 + $0xc0] sm:$0xff]
  %v2061 = vld [vmem:[%s3 + $0xc8] sm:$0xff]
  %v2062 = vld [vmem:[%s3 + $0xd0] sm:$0xff]
  %v2063 = vld [vmem:[%s3 + $0xd8] sm:$0xff]
  %v2064 = vld [vmem:[%s3 + $0xe0] sm:$0xff]
  %v2065 = vld [vmem:[%s3 + $0xe8] sm:$0xff]
  %v2066 = vld [vmem:[%s3 + $0xf0] sm:$0xff]
  %v2067 = vld [vmem:[%s3 + $0xf8] sm:$0xff]
  %v2068 = vld [vmem:[%s3 + $0x100] sm:$0xff]
  %v2069 = vld [vmem:[%s3 + $0x108] sm:$0xff]
  %v2070 = vld [vmem:[%s3 + $0x110] sm:$0xff]
  %v2071 = vld [vmem:[%s3 + $0x118] sm:$0xff]
  %v2072 = vld [vmem:[%s3 + $0x120] sm:$0xff]
  %v2073 = vld [vmem:[%s3 + $0x128] sm:$0xff]
  %v2074 = vld [vmem:[%s3 + $0x130] sm:$0xff]
  %v2075 = vld [vmem:[%s3 + $0x138] sm:$0xff]
  %v2076 = vld [vmem:[%s3 + $0x140] sm:$0xff]
  %v2077 = vld [vmem:[%s3 + $0x148] sm:$0xff]
  %v2078 = vld [vmem:[%s3 + $0x150] sm:$0xff]
  %v2079 = vld [vmem:[%s3 + $0x158] sm:$0xff]
  %v2080 = vld [vmem:[%s3 + $0x160] sm:$0xff]
  %v2081 = vld [vmem:[%s3 + $0x168] sm:$0xff]
  %v2082 = vld [vmem:[%s3 + $0x170] sm:$0xff]
  %v2083 = vld [vmem:[%s3 + $0x178] sm:$0xff]
  %v2084 = vld [vmem:[%s3 + $0x180] sm:$0xff]
  %v2085 = vld [vmem:[%s3 + $0x188] sm:$0xff]
  %v2086 = vld [vmem:[%s3 + $0x190] sm:$0xff]
  %v2087 = vld [vmem:[%s3 + $0x198] sm:$0xff]
  %v2088 = vld [vmem:[%s3 + $0x1a0] sm:$0xff]
  %v2089 = vld [vmem:[%s3 + $0x1a8] sm:$0xff]
  %v2090 = vld [vmem:[%s3 + $0x1b0] sm:$0xff]
  %v2091 = vld [vmem:[%s3 + $0x1b8] sm:$0xff]
  %v2092 = vld [vmem:[%s3 + $0x1c0] sm:$0xff]
  %v2093 = vld [vmem:[%s3 + $0x1c8] sm:$0xff]
  %v2094 = vld [vmem:[%s3 + $0x1d0] sm:$0xff]
  %v2095 = vld [vmem:[%s3 + $0x1d8] sm:$0xff]
  %v2096 = vld [vmem:[%s3 + $0x1e0] sm:$0xff]
  %v2097 = vld [vmem:[%s3 + $0x1e8] sm:$0xff]
  %v2098 = vld [vmem:[%s3 + $0x1f0] sm:$0xff]
  %v2099 = vld [vmem:[%s3 + $0x1f8] sm:$0xff]
  %2100 = vmatprep.subr.mxu0 %v2037
  %2101 = vmatpush1.msra.mxu0 %v2036
  %2102 = vmatprep.subr.mxu0 %v2041
  %2103 = vmatpush1.msra.mxu0 %v2040
  %2104 = vmatprep.subr.mxu0 %v2045
  %2105 = vmatpush1.msra.mxu0 %v2044
  %2106 = vmatprep.subr.mxu0 %v2049
  %2107 = vmatpush1.msra.mxu0 %v2048
  %2108 = vmatprep.subr.mxu0 %v2053
  %2109 = vmatpush1.msra.mxu0 %v2052
  %2110 = vmatprep.subr.mxu0 %v2057
  %2111 = vmatpush1.msra.mxu0 %v2056
  %2112 = vmatprep.subr.mxu0 %v2061
  %2113 = vmatpush1.msra.mxu0 %v2060
  %2114 = vmatprep.subr.mxu0 %v2065
  %2115 = vmatpush1.msra.mxu0 %v2064
  %2116 = vmatprep.subr.mxu0 %v2069
  %2117 = vmatpush1.msra.mxu0 %v2068
  %2118 = vmatprep.subr.mxu0 %v2073
  %2119 = vmatpush1.msra.mxu0 %v2072
  %2120 = vmatprep.subr.mxu0 %v2077
  %2121 = vmatpush1.msra.mxu0 %v2076
  %2122 = vmatprep.subr.mxu0 %v2081
  %2123 = vmatpush1.msra.mxu0 %v2080
  %2124 = vmatprep.subr.mxu0 %v2085
  %2125 = vmatpush1.msra.mxu0 %v2084
  %2126 = vmatprep.subr.mxu0 %v2089
  %2127 = vmatpush1.msra.mxu0 %v2088
  %2128 = vmatprep.subr.mxu0 %v2093
  %2129 = vmatpush1.msra.mxu0 %v2092
  %2130 = vmatprep.subr.mxu0 %v2097
  %2131 = vmatpush1.msra.mxu0 %v2096
  %2132 = vmatprep.subr.mxu0 0.0
  %2133 = vmatpush1.msra.mxu0 0.0
  %2134 = vmatprep.subr.mxu0 0.0
  %2135 = vmatpush1.msra.mxu0 0.0
  %2136 = vmatprep.subr.mxu0 0.0
  %2137 = vmatpush1.msra.mxu0 0.0
  %2138 = vmatprep.subr.mxu0 0.0
  %2139 = vmatpush1.msra.mxu0 0.0
  %2140 = vmatprep.subr.mxu0 0.0
  %2141 = vmatpush1.msra.mxu0 0.0
  %2142 = vmatprep.subr.mxu0 0.0
  %2143 = vmatpush1.msra.mxu0 0.0
  %2144 = vmatprep.subr.mxu0 0.0
  %2145 = vmatpush1.msra.mxu0 0.0
  %2146 = vmatprep.subr.mxu0 0.0
  %2147 = vmatpush1.msra.mxu0 0.0
  %2148 = vmatprep.subr.mxu0 0.0
  %2149 = vmatpush1.msra.mxu0 0.0
  %2150 = vmatprep.subr.mxu0 0.0
  %2151 = vmatpush1.msra.mxu0 0.0
  %2152 = vmatprep.subr.mxu0 0.0
  %2153 = vmatpush1.msra.mxu0 0.0
  %2154 = vmatprep.subr.mxu0 0.0
  %2155 = vmatpush1.msra.mxu0 0.0
  %2156 = vmatprep.subr.mxu0 0.0
  %2157 = vmatpush1.msra.mxu0 0.0
  %2158 = vmatprep.subr.mxu0 0.0
  %2159 = vmatpush1.msra.mxu0 0.0
  %2160 = vmatprep.subr.mxu0 0.0
  %2161 = vmatpush1.msra.mxu0 0.0
  %2162 = vmatprep.subr.mxu0 0.0
  %2163 = vmatpush1.msra.mxu0 0.0
  %2164 = vmatprep.mubr.f32.mxu0 0.0
  %2165 = vmatmul.mubr.f32.gmra.mrb[0].mxu0 %v2028
  %v2166 = vpop.f32.mrb[0].mxu0
  %v2167 = vadd.f32 0.0, %v2166
  %v2168 = vpop.f32.mrb[0].mxu0
  %v2169 = vadd.f32 0.0, %v2168
  %2170 = vdwg.mxu0
  %2171 = vmatprep.subr.mxu0 %v2039
  %2172 = vmatpush1.msra.mxu0 %v2038
  %2173 = vmatprep.subr.mxu0 %v2043
  %2174 = vmatpush1.msra.mxu0 %v2042
  %2175 = vmatprep.subr.mxu0 %v2047
  %2176 = vmatpush1.msra.mxu0 %v2046
  %2177 = vmatprep.subr.mxu0 %v2051
  %2178 = vmatpush1.msra.mxu0 %v2050
  %2179 = vmatprep.subr.mxu0 %v2055
  %2180 = vmatpush1.msra.mxu0 %v2054
  %2181 = vmatprep.subr.mxu0 %v2059
  %2182 = vmatpush1.msra.mxu0 %v2058
  %2183 = vmatprep.subr.mxu0 %v2063
  %2184 = vmatpush1.msra.mxu0 %v2062
  %2185 = vmatprep.subr.mxu0 %v2067
  %2186 = vmatpush1.msra.mxu0 %v2066
  %2187 = vmatprep.subr.mxu0 %v2071
  %2188 = vmatpush1.msra.mxu0 %v2070
  %2189 = vmatprep.subr.mxu0 %v2075
  %2190 = vmatpush1.msra.mxu0 %v2074
  %2191 = vmatprep.subr.mxu0 %v2079
  %2192 = vmatpush1.msra.mxu0 %v2078
  %2193 = vmatprep.subr.mxu0 %v2083
  %2194 = vmatpush1.msra.mxu0 %v2082
  %2195 = vmatprep.subr.mxu0 %v2087
  %2196 = vmatpush1.msra.mxu0 %v2086
  %2197 = vmatprep.subr.mxu0 %v2091
  %2198 = vmatpush1.msra.mxu0 %v2090
  %2199 = vmatprep.subr.mxu0 %v2095
  %2200 = vmatpush1.msra.mxu0 %v2094
  %2201 = vmatprep.subr.mxu0 %v2099
  %2202 = vmatpush1.msra.mxu0 %v2098
  %2203 = vmatprep.subr.mxu0 0.0
  %2204 = vmatpush1.msra.mxu0 0.0
  %2205 = vmatprep.subr.mxu0 0.0
  %2206 = vmatpush1.msra.mxu0 0.0
  %2207 = vmatprep.subr.mxu0 0.0
  %2208 = vmatpush1.msra.mxu0 0.0
  %2209 = vmatprep.subr.mxu0 0.0
  %2210 = vmatpush1.msra.mxu0 0.0
  %2211 = vmatprep.subr.mxu0 0.0
  %2212 = vmatpush1.msra.mxu0 0.0
  %2213 = vmatprep.subr.mxu0 0.0
  %2214 = vmatpush1.msra.mxu0 0.0
  %2215 = vmatprep.subr.mxu0 0.0
  %2216 = vmatpush1.msra.mxu0 0.0
  %2217 = vmatprep.subr.mxu0 0.0
  %2218 = vmatpush1.msra.mxu0 0.0
  %2219 = vmatprep.subr.mxu0 0.0
  %2220 = vmatpush1.msra.mxu0 0.0
  %2221 = vmatprep.subr.mxu0 0.0
  %2222 = vmatpush1.msra.mxu0 0.0
  %2223 = vmatprep.subr.mxu0 0.0
  %2224 = vmatpush1.msra.mxu0 0.0
  %2225 = vmatprep.subr.mxu0 0.0
  %2226 = vmatpush1.msra.mxu0 0.0
  %2227 = vmatprep.subr.mxu0 0.0
  %2228 = vmatpush1.msra.mxu0 0.0
  %2229 = vmatprep.subr.mxu0 0.0
  %2230 = vmatpush1.msra.mxu0 0.0
  %2231 = vmatprep.subr.mxu0 0.0
  %2232 = vmatpush1.msra.mxu0 0.0
  %2233 = vmatprep.subr.mxu0 0.0
  %2234 = vmatpush1.msra.mxu0 0.0
  %2235 = vmatprep.mubr.f32.mxu0 0.0
  %2236 = vmatmul.mubr.f32.gmra.mrb[0].mxu0 %v2028
  %v2237 = vpop.f32.mrb[0].mxu0
  %v2238 = vadd.f32 0.0, %v2237
  %v2239 = vpop.f32.mrb[0].mxu0
  %v2240 = vadd.f32 0.0, %v2239
  %2241 = vdwg.mxu0
  %v2242 = vadd.f32 %v2032, %v2167
  %v2243 = vadd.f32 %v2033, %v2169
  %v2244 = vadd.f32 %v2034, %v2238
  %v2245 = vadd.f32 %v2035, %v2240
  %v2246 = vxor.u32 %v2242, 2147483648
  %v2247 = vmul.f32 %v2246, 1.442695
  %v2248 = vpow.pop %v2247
  %v2249 = vadd.f32 %v2248, 1.0
  %v2250 = vrcp.pop %v2249
  %v2251 = vmul.f32 1.0, %v2250
  %v2252 = vxor.u32 %v2243, 2147483648
  %v2253 = vmul.f32 %v2252, 1.442695
  %v2254 = vpow.pop %v2253
  %v2255 = vadd.f32 %v2254, 1.0
  %v2256 = vrcp.pop %v2255
  %v2257 = vmul.f32 1.0, %v2256
  %v2258 = vtanh.pop %v2244
  %v2259 = vxor.u32 %v2245, 2147483648
  %v2260 = vmul.f32 %v2259, 1.442695
  %v2261 = vpow.pop %v2260
  %v2262 = vadd.f32 %v2261, 1.0
  %v2263 = vrcp.pop %v2262
  %v2264 = vmul.f32 1.0, %v2263
  %v2265 = vmul.f32 %v2257, %v2026
  %v2266 = vmul.f32 %v2251, %v2258
  %v2267 = vadd.f32 %v2265, %v2266
  %v2268 = vtanh.pop %v2267
  %v2269 = vmul.f32 %v2264, %v2268
  %s2270 = scalar_lea.vmem %s4, 56
  %2271 = vst [vmem:[%s2270] sm:$0xff] %v2269
  %2272 = vst [vmem:[#allocation3] sm:$0xff] %v2269
  %2273 = vst [vmem:[#allocation4] sm:$0xff] %v2267
  // Predicated region
  $region22: #{lm_lstm_forward.2} parent=0 // pred_check
    _
  $region23: #{lm_lstm_forward.2} parent=0 // pred_check_branch
    %2275 = sbr.rel (0) target = $region25
  $region24: #{lm_lstm_forward.2} parent=0 // pred_region
    _
  $region25: #{lm_lstm_forward.2} parent=0 // pred_fallthru
    _
  // Predicated region
  $region26: #{lm_lstm_forward.2} parent=0 // pred_check
    _
  $region27: #{lm_lstm_forward.2} parent=0 // pred_check_branch
    %2277 = sbr.rel (0) target = $region29
  $region28: #{lm_lstm_forward.2} parent=0 // pred_region
    _
  $region29: #{lm_lstm_forward.2} parent=0 // pred_fallthru
    _

</llo_original>
